<compile_context>
chip_gen: v7x
topology: tpu7x:2x2x1
jax: 0.10.0
libtpu: 0.0.40
codegen_flags: <defaults>
</compile_context>

<pallas_src>
import jax
import jax.numpy as jnp
from jax.experimental import pallas as pl
from jax.experimental.pallas import tpu as pltpu

TOPK = 4  # K in the reference forward()


def _choose_tiling(n, core_split, dtype_bytes, vmem_budget_bytes):
    """Pick (tile_r, tiles_per_split) from a VMEM budget.

    Estimate ~10 full-tile-sized (tile_r, N) arrays live at once:
    2 similarity inputs x 2 pipeline buffers + ~6 compute temporaries from the
    unrolled top-k loop.  The seg blocks and the (4, N) output are negligible.
    """
    rows = n // core_split
    live_tiles = 10
    cap = max(8, vmem_budget_bytes // (live_tiles * n * dtype_bytes))
    if rows <= cap:
        return rows, 1  # single grid step per (batch, split)
    # Largest multiple-of-8 divisor of `rows` that fits the budget.
    best = None
    t = 8
    while t <= rows:
        if rows % t == 0 and t <= cap:
            best = t
        t += 8
    if best is None:
        best = rows  # full extent fallback (no mult-of-8 divisor); still legal
    return best, rows // best


def _make_matcher_kernel(tile_r, tiles_per_split, core_split):
    single_step = (tiles_per_split == 1)
    static_rows = single_step and core_split == 1  # row offset is always 0

    def kernel(gsim_ref, lsim_ref, iseg_ref, pseg_ref, out_ref):
        # gsim_ref/lsim_ref: (tile_r, N); iseg_ref/pseg_ref: (N, 2)
        # out_ref: (4, N) — written once when single_step, else a running-max
        # accumulator resident across the row-tile axis.
        s = pl.program_id(1)
        r = pl.program_id(2)

        if not single_step:
            @pl.when(r == 0)
            def _():
                out_ref[...] = jnp.full(out_ref.shape, -jnp.inf,
                                        dtype=out_ref.dtype)

        if static_rows:
            iw = iseg_ref[...]                                   # (tile_r, 2)
            pw = pseg_ref[...]
        else:
            row_start = pl.multiple_of(
                (s * tiles_per_split + r) * tile_r, tile_r)
            iw = iseg_ref[pl.ds(row_start, tile_r), :]           # (tile_r, 2)
            pw = pseg_ref[pl.ds(row_start, tile_r), :]

        # ---------------- global path ----------------
        G = gsim_ref[...]
        for c in range(2):
            part = jnp.max(G * iw[:, c:c + 1], axis=0, keepdims=True)  # (1, N)
            if single_step:
                out_ref[c:c + 1, :] = part
            else:
                out_ref[c:c + 1, :] = jnp.maximum(out_ref[c:c + 1, :], part)

        # ---------------- local path ----------------
        L = lsim_ref[...]
        row_min = jnp.min(L, axis=1, keepdims=True)              # (tile_r, 1)

        # Exact K-th largest per row (with multiplicity), matching
        # torch.topk(...)[0][:, :, -1].  Computed ONCE on L and shared by both
        # segmentation channels (prev_seg_16 is softmax => weights >= 0, so the
        # per-row order of w*L equals the order of L).
        cut = jnp.zeros_like(row_min)        # placeholder; never read unless set
        found = jnp.zeros(row_min.shape, dtype=jnp.bool_)
        thresh = None
        for it in range(TOPK):
            # it == 0: thresh is +inf, so the mask is a no-op — skip it.
            masked = L if it == 0 else jnp.where(L < thresh, L, -jnp.inf)
            m = jnp.max(masked, axis=1, keepdims=True)           # next distinct max
            if it < TOPK - 1:
                # Fused cumulative count of elements >= m (ties included).
                cum = jnp.sum(jnp.where(L >= m, 1.0, 0.0),
                              axis=1, keepdims=True)
                hit = cum >= TOPK
                cut = jnp.where(jnp.logical_and(jnp.logical_not(found), hit),
                                m, cut)
                found = jnp.logical_or(found, hit)
                thresh = m
            else:
                # After K distinct maxima the cumulative count is >= K by
                # construction, so the cutoff is m if not already found.
                cut = jnp.where(found, cut, m)

        # score[score < cut] = row_min, shared across both channels.
        L2 = jnp.where(L < cut, row_min, L)
        for c in range(2):
            part = jnp.max(L2 * pw[:, c:c + 1], axis=0, keepdims=True)  # (1, N)
            if single_step:
                out_ref[2 + c:3 + c, :] = part
            else:
                out_ref[2 + c:3 + c, :] = jnp.maximum(out_ref[2 + c:3 + c, :],
                                                      part)

    return kernel


def matcher_forward(global_sim, local_sim, init_seg_16, prev_seg_16,
                    core_split=None, vmem_budget_bytes=24 << 20):
    """global_sim/local_sim: (B, H*W, H, W); *_seg_16: (B, 2, H, W) (softmax)."""
    B, N, H, W = global_sim.shape
    assert N == H * W
    assert N >= TOPK, "torch.topk(k=4) requires H*W >= 4"

    # Row-axis core split: use it when the batch axis alone can't feed both
    # TensorCores (v7x megacore); harmless elsewhere (tiny extra max outside).
    if core_split is None:
        core_split = 2 if (B % 2 == 1) else 1
    if core_split > 1 and not (N % core_split == 0
                               and (N // core_split) % 8 == 0):
        core_split = 1

    g = global_sim.reshape(B, N, N)
    l = local_sim.reshape(B, N, N)
    iseg = init_seg_16.reshape(B, 2, N).transpose(0, 2, 1)   # (B, N, 2)
    pseg = prev_seg_16.reshape(B, 2, N).transpose(0, 2, 1)   # (B, N, 2)

    dtype_bytes = jnp.dtype(global_sim.dtype).itemsize
    tile_r, tiles_per_split = _choose_tiling(N, core_split, dtype_bytes,
                                             vmem_budget_bytes)

    kernel = _make_matcher_kernel(tile_r, tiles_per_split, core_split)

    def sim_map(b, s, r):
        return (b, s * tiles_per_split + r, 0)

    def seg_map(b, s, r):
        return (b, 0, 0)   # one DMA per batch element; resident across s, r

    out = pl.pallas_call(
        kernel,
        out_shape=jax.ShapeDtypeStruct((B, core_split, 4, N),
                                       global_sim.dtype),
        grid_spec=pltpu.PrefetchScalarGridSpec(
            num_scalar_prefetch=0,
            grid=(B, core_split, tiles_per_split),
            in_specs=[
                pl.BlockSpec((None, tile_r, N), sim_map),
                pl.BlockSpec((None, tile_r, N), sim_map),
                pl.BlockSpec((None, N, 2), seg_map),
                pl.BlockSpec((None, N, 2), seg_map),
            ],
            out_specs=pl.BlockSpec((None, None, 4, N),
                                   lambda b, s, r: (b, s, 0, 0)),
        ),
        compiler_params=pltpu.CompilerParams(
            dimension_semantics=("parallel", "parallel", "arbitrary"),
            vmem_limit_bytes=48 << 20),
    )(g, l, iseg, pseg)

    out = jnp.max(out, axis=1) if core_split > 1 else out[:, 0]
    return out.reshape(B, 4, H, W)


def matcher_ref(global_sim, local_sim, init_seg_16, prev_seg_16):
    """Pure-JAX reference mirroring the PyTorch forward exactly."""
    B, N, H, W = global_sim.shape
    g = global_sim.reshape(B, N, N)
    l = local_sim.reshape(B, N, N)
    iseg = init_seg_16.reshape(B, 2, N)
    pseg = prev_seg_16.reshape(B, 2, N)

    def gscore(c):
        return jnp.max(g * iseg[:, c][:, :, None], axis=1)      # (B, N)

    def lscore(c):
        S = l * pseg[:, c][:, :, None]                           # (B, N, N)
        topk = jax.lax.top_k(S, TOPK)[0]                         # (B, N, K)
        cut = topk[..., -1:]
        mn = jnp.min(S, axis=2, keepdims=True)
        S2 = jnp.where(S < cut, mn, S)
        return jnp.max(S2, axis=1)                               # (B, N)

    out = jnp.stack([gscore(0), gscore(1), lscore(0), lscore(1)], axis=1)
    return out.reshape(B, 4, H, W)


if __name__ == "__main__":
    key = jax.random.PRNGKey(0)
    B, H, W = 2, 16, 16
    N = H * W
    k1, k2, k3, k4, k5 = jax.random.split(key, 5)

    global_sim = jax.random.normal(k1, (B, N, H, W), dtype=jnp.float32)
    local_sim = jax.random.normal(k2, (B, N, H, W), dtype=jnp.float32)
    init_seg_16 = jax.nn.softmax(
        jax.random.normal(k3, (B, 2, H, W), dtype=jnp.float32), axis=1)
    prev_seg_16 = jax.nn.softmax(
        jax.random.normal(k4, (B, 2, H, W), dtype=jnp.float32), axis=1)

    # Matcher.__init__ parameters: 1x1 Conv(in_c, out_c) with kaiming_uniform
    # weights and zero bias.  They are only used by get_key(), NOT by forward(),
    # so they are initialized deterministically here but unused below.
    # TODO(synk): get_key() (1x1 conv + L2-normalize) is not part of forward()
    # and is therefore not implemented as a Pallas kernel.
    in_c, out_c = 8, 4
    bound = (6.0 / in_c) ** 0.5
    conv_w = jax.random.uniform(k5, (out_c, in_c, 1, 1), jnp.float32,
                                minval=-bound, maxval=bound)
    conv_b = jnp.zeros((out_c,), jnp.float32)

    ref = matcher_ref(global_sim, local_sim, init_seg_16, prev_seg_16)

    # 1) Default config: single grid step per batch (TILE_R = N).
    out = jax.block_until_ready(
        matcher_forward(global_sim, local_sim, init_seg_16, prev_seg_16))
    assert out.shape == (B, 4, H, W), out.shape
    assert jnp.allclose(out, ref, atol=1e-5, rtol=1e-5), float(
        jnp.max(jnp.abs(out - ref)))

    # 2) Row-axis core split (v7x megacore path when B is small/odd).
    out2 = jax.block_until_ready(
        matcher_forward(global_sim, local_sim, init_seg_16, prev_seg_16,
                        core_split=2))
    assert jnp.allclose(out2, ref, atol=1e-5, rtol=1e-5), float(
        jnp.max(jnp.abs(out2 - ref)))

    # 3) Tiny VMEM budget: exercises the multi-row-tile accumulator path.
    out3 = jax.block_until_ready(
        matcher_forward(global_sim, local_sim, init_seg_16, prev_seg_16,
                        vmem_budget_bytes=1 << 20))
    assert jnp.allclose(out3, ref, atol=1e-5, rtol=1e-5), float(
        jnp.max(jnp.abs(out3 - ref)))

    print("KERNEL_OK")
</pallas_src>

<mosaic_0001>
module attributes {stable_mosaic.version = 11 : i64} {
  func.func @kernel(%arg0: i32, %arg1: i32, %arg2: i32, %arg3: memref<1x256x256xf32, #tpu.memory_space<vmem>>, %arg4: memref<1x256x256xf32, #tpu.memory_space<vmem>>, %arg5: memref<1x256x2xf32, #tpu.memory_space<vmem>>, %arg6: memref<1x256x2xf32, #tpu.memory_space<vmem>>, %arg7: memref<1x1x4x256xf32, #tpu.memory_space<vmem>>) attributes {dimension_semantics = [#tpu.dimension_semantics<parallel>, #tpu.dimension_semantics<parallel>, #tpu.dimension_semantics<arbitrary>], iteration_bounds = array<i64: 2, 1, 1>, scalar_prefetch = 0 : i64, scratch_operands = 0 : i64, tpu.core_type = #tpu.core_type<tc>, window_params = [{transform_indices = @transform_0, window_bounds = array<i64: 1, 256, 256>}, {transform_indices = @transform_1, window_bounds = array<i64: 1, 256, 256>}, {transform_indices = @transform_2, window_bounds = array<i64: 1, 256, 2>}, {transform_indices = @transform_3, window_bounds = array<i64: 1, 256, 2>}, {transform_indices = @transform_4, window_bounds = array<i64: 1, 1, 4, 256>}]} {
    %c0 = arith.constant 0 : index
    %c0_0 = arith.constant 0 : index
    %c0_1 = arith.constant 0 : index
    %0 = vector.load %arg5[%c0, %c0_0, %c0_1] : memref<1x256x2xf32, #tpu.memory_space<vmem>>, vector<1x256x2xf32>
    %1 = vector.shape_cast %0 : vector<1x256x2xf32> to vector<256x2xf32>
    %c0_2 = arith.constant 0 : index
    %c0_3 = arith.constant 0 : index
    %c0_4 = arith.constant 0 : index
    %2 = vector.load %arg6[%c0_2, %c0_3, %c0_4] : memref<1x256x2xf32, #tpu.memory_space<vmem>>, vector<1x256x2xf32>
    %3 = vector.shape_cast %2 : vector<1x256x2xf32> to vector<256x2xf32>
    %c0_5 = arith.constant 0 : index
    %c0_6 = arith.constant 0 : index
    %c0_7 = arith.constant 0 : index
    %4 = vector.load %arg3[%c0_5, %c0_6, %c0_7] : memref<1x256x256xf32, #tpu.memory_space<vmem>>, vector<1x256x256xf32>
    %5 = vector.shape_cast %4 : vector<1x256x256xf32> to vector<256x256xf32>
    %6 = vector.extract_strided_slice %1 {offsets = [0, 0], sizes = [256, 1], strides = [1, 1]} : vector<256x2xf32> to vector<256x1xf32>
    %7 = vector.broadcast %6 : vector<256x1xf32> to vector<256x256xf32>
    %8 = arith.mulf %5, %7 : vector<256x256xf32>
    %cst = arith.constant dense<0xFF800000> : vector<256xf32>
    %9 = vector.multi_reduction <maximumf>, %8, %cst [0] : vector<256x256xf32> to vector<256xf32>
    %10 = vector.shape_cast %9 : vector<256xf32> to vector<1x256xf32>
    %c0_8 = arith.constant 0 : index
    %c0_9 = arith.constant 0 : index
    %c0_10 = arith.constant 0 : index
    %c0_11 = arith.constant 0 : index
    %11 = vector.load %arg7[%c0_8, %c0_9, %c0_10, %c0_11] : memref<1x1x4x256xf32, #tpu.memory_space<vmem>>, vector<1x1x1x256xf32>
    %12 = vector.shape_cast %11 : vector<1x1x1x256xf32> to vector<1x256xf32>
    %13 = vector.shape_cast %10 : vector<1x256xf32> to vector<1x1x1x256xf32>
    tpu.vector_store %arg7[%c0_8, %c0_9, %c0_10, %c0_11], %13 {strides = array<i32>} : memref<1x1x4x256xf32, #tpu.memory_space<vmem>>, vector<1x1x1x256xf32>,
    %14 = vector.extract_strided_slice %1 {offsets = [0, 1], sizes = [256, 1], strides = [1, 1]} : vector<256x2xf32> to vector<256x1xf32>
    %15 = vector.broadcast %14 : vector<256x1xf32> to vector<256x256xf32>
    %16 = arith.mulf %5, %15 : vector<256x256xf32>
    %cst_12 = arith.constant dense<0xFF800000> : vector<256xf32>
    %17 = vector.multi_reduction <maximumf>, %16, %cst_12 [0] : vector<256x256xf32> to vector<256xf32>
    %18 = vector.shape_cast %17 : vector<256xf32> to vector<1x256xf32>
    %c0_13 = arith.constant 0 : index
    %c0_14 = arith.constant 0 : index
    %c1 = arith.constant 1 : index
    %c0_15 = arith.constant 0 : index
    %19 = vector.load %arg7[%c0_13, %c0_14, %c1, %c0_15] : memref<1x1x4x256xf32, #tpu.memory_space<vmem>>, vector<1x1x1x256xf32>
    %20 = vector.shape_cast %19 : vector<1x1x1x256xf32> to vector<1x256xf32>
    %21 = vector.shape_cast %18 : vector<1x256xf32> to vector<1x1x1x256xf32>
    tpu.vector_store %arg7[%c0_13, %c0_14, %c1, %c0_15], %21 {strides = array<i32>} : memref<1x1x4x256xf32, #tpu.memory_space<vmem>>, vector<1x1x1x256xf32>,
    %c0_16 = arith.constant 0 : index
    %c0_17 = arith.constant 0 : index
    %c0_18 = arith.constant 0 : index
    %22 = vector.load %arg4[%c0_16, %c0_17, %c0_18] : memref<1x256x256xf32, #tpu.memory_space<vmem>>, vector<1x256x256xf32>
    %23 = vector.shape_cast %22 : vector<1x256x256xf32> to vector<256x256xf32>
    %cst_19 = arith.constant dense<0x7F800000> : vector<256xf32>
    %24 = vector.multi_reduction <minimumf>, %23, %cst_19 [1] : vector<256x256xf32> to vector<256xf32>
    %25 = vector.shape_cast %24 : vector<256xf32> to vector<256x1xf32>
    %cst_20 = arith.constant 0.000000e+00 : f32
    %26 = vector.broadcast %cst_20 : f32 to vector<256x1xf32>
    %false = arith.constant false
    %27 = vector.broadcast %false : i1 to vector<256x1xi1>
    %cst_21 = arith.constant dense<0xFF800000> : vector<256xf32>
    %28 = vector.multi_reduction <maximumf>, %23, %cst_21 [1] : vector<256x256xf32> to vector<256xf32>
    %29 = vector.shape_cast %28 : vector<256xf32> to vector<256x1xf32>
    %30 = vector.broadcast %29 : vector<256x1xf32> to vector<256x256xf32>
    %31 = arith.cmpf oge, %23, %30 : vector<256x256xf32>
    %cst_22 = arith.constant 1.000000e+00 : f32
    %cst_23 = arith.constant 0.000000e+00 : f32
    %32 = vector.broadcast %cst_22 : f32 to vector<256x256xf32>
    %33 = vector.broadcast %cst_23 : f32 to vector<256x256xf32>
    %34 = arith.select %31, %32, %33 : vector<256x256xi1>, vector<256x256xf32>
    %cst_24 = arith.constant dense<0.000000e+00> : vector<256xf32>
    %35 = vector.multi_reduction <add>, %34, %cst_24 [1] : vector<256x256xf32> to vector<256xf32>
    %36 = vector.shape_cast %35 : vector<256xf32> to vector<256x1xf32>
    %cst_25 = arith.constant 4.000000e+00 : f32
    %37 = vector.broadcast %cst_25 : f32 to vector<256x1xf32>
    %38 = arith.cmpf oge, %36, %37 : vector<256x1xf32>
    %cst_26 = arith.constant dense<true> : vector<256x1xi1>
    %39 = arith.xori %27, %cst_26 : vector<256x1xi1>
    %40 = arith.andi %39, %38 : vector<256x1xi1>
    %41 = arith.select %40, %29, %26 : vector<256x1xi1>, vector<256x1xf32>
    %42 = arith.ori %27, %38 : vector<256x1xi1>
    %43 = vector.broadcast %29 : vector<256x1xf32> to vector<256x256xf32>
    %44 = arith.cmpf olt, %23, %43 : vector<256x256xf32>
    %cst_27 = arith.constant 0xFF800000 : f32
    %45 = vector.broadcast %cst_27 : f32 to vector<256x256xf32>
    %46 = arith.select %44, %23, %45 : vector<256x256xi1>, vector<256x256xf32>
    %cst_28 = arith.constant dense<0xFF800000> : vector<256xf32>
    %47 = vector.multi_reduction <maximumf>, %46, %cst_28 [1] : vector<256x256xf32> to vector<256xf32>
    %48 = vector.shape_cast %47 : vector<256xf32> to vector<256x1xf32>
    %49 = vector.broadcast %48 : vector<256x1xf32> to vector<256x256xf32>
    %50 = arith.cmpf oge, %23, %49 : vector<256x256xf32>
    %cst_29 = arith.constant 1.000000e+00 : f32
    %cst_30 = arith.constant 0.000000e+00 : f32
    %51 = vector.broadcast %cst_29 : f32 to vector<256x256xf32>
    %52 = vector.broadcast %cst_30 : f32 to vector<256x256xf32>
    %53 = arith.select %50, %51, %52 : vector<256x256xi1>, vector<256x256xf32>
    %cst_31 = arith.constant dense<0.000000e+00> : vector<256xf32>
    %54 = vector.multi_reduction <add>, %53, %cst_31 [1] : vector<256x256xf32> to vector<256xf32>
    %55 = vector.shape_cast %54 : vector<256xf32> to vector<256x1xf32>
    %cst_32 = arith.constant 4.000000e+00 : f32
    %56 = vector.broadcast %cst_32 : f32 to vector<256x1xf32>
    %57 = arith.cmpf oge, %55, %56 : vector<256x1xf32>
    %cst_33 = arith.constant dense<true> : vector<256x1xi1>
    %58 = arith.xori %42, %cst_33 : vector<256x1xi1>
    %59 = arith.andi %58, %57 : vector<256x1xi1>
    %60 = arith.select %59, %48, %41 : vector<256x1xi1>, vector<256x1xf32>
    %61 = arith.ori %42, %57 : vector<256x1xi1>
    %62 = vector.broadcast %48 : vector<256x1xf32> to vector<256x256xf32>
    %63 = arith.cmpf olt, %23, %62 : vector<256x256xf32>
    %cst_34 = arith.constant 0xFF800000 : f32
    %64 = vector.broadcast %cst_34 : f32 to vector<256x256xf32>
    %65 = arith.select %63, %23, %64 : vector<256x256xi1>, vector<256x256xf32>
    %cst_35 = arith.constant dense<0xFF800000> : vector<256xf32>
    %66 = vector.multi_reduction <maximumf>, %65, %cst_35 [1] : vector<256x256xf32> to vector<256xf32>
    %67 = vector.shape_cast %66 : vector<256xf32> to vector<256x1xf32>
    %68 = vector.broadcast %67 : vector<256x1xf32> to vector<256x256xf32>
    %69 = arith.cmpf oge, %23, %68 : vector<256x256xf32>
    %cst_36 = arith.constant 1.000000e+00 : f32
    %cst_37 = arith.constant 0.000000e+00 : f32
    %70 = vector.broadcast %cst_36 : f32 to vector<256x256xf32>
    %71 = vector.broadcast %cst_37 : f32 to vector<256x256xf32>
    %72 = arith.select %69, %70, %71 : vector<256x256xi1>, vector<256x256xf32>
    %cst_38 = arith.constant dense<0.000000e+00> : vector<256xf32>
    %73 = vector.multi_reduction <add>, %72, %cst_38 [1] : vector<256x256xf32> to vector<256xf32>
    %74 = vector.shape_cast %73 : vector<256xf32> to vector<256x1xf32>
    %cst_39 = arith.constant 4.000000e+00 : f32
    %75 = vector.broadcast %cst_39 : f32 to vector<256x1xf32>
    %76 = arith.cmpf oge, %74, %75 : vector<256x1xf32>
    %cst_40 = arith.constant dense<true> : vector<256x1xi1>
    %77 = arith.xori %61, %cst_40 : vector<256x1xi1>
    %78 = arith.andi %77, %76 : vector<256x1xi1>
    %79 = arith.select %78, %67, %60 : vector<256x1xi1>, vector<256x1xf32>
    %80 = arith.ori %61, %76 : vector<256x1xi1>
    %81 = vector.broadcast %67 : vector<256x1xf32> to vector<256x256xf32>
    %82 = arith.cmpf olt, %23, %81 : vector<256x256xf32>
    %cst_41 = arith.constant 0xFF800000 : f32
    %83 = vector.broadcast %cst_41 : f32 to vector<256x256xf32>
    %84 = arith.select %82, %23, %83 : vector<256x256xi1>, vector<256x256xf32>
    %cst_42 = arith.constant dense<0xFF800000> : vector<256xf32>
    %85 = vector.multi_reduction <maximumf>, %84, %cst_42 [1] : vector<256x256xf32> to vector<256xf32>
    %86 = vector.shape_cast %85 : vector<256xf32> to vector<256x1xf32>
    %87 = arith.select %80, %79, %86 : vector<256x1xi1>, vector<256x1xf32>
    %88 = vector.broadcast %87 : vector<256x1xf32> to vector<256x256xf32>
    %89 = arith.cmpf olt, %23, %88 : vector<256x256xf32>
    %90 = vector.shape_cast %25 : vector<256x1xf32> to vector<256x1xf32>
    %91 = vector.broadcast %90 : vector<256x1xf32> to vector<256x256xf32>
    %92 = arith.select %89, %91, %23 : vector<256x256xi1>, vector<256x256xf32>
    %93 = vector.extract_strided_slice %3 {offsets = [0, 0], sizes = [256, 1], strides = [1, 1]} : vector<256x2xf32> to vector<256x1xf32>
    %94 = vector.broadcast %93 : vector<256x1xf32> to vector<256x256xf32>
    %95 = arith.mulf %92, %94 : vector<256x256xf32>
    %cst_43 = arith.constant dense<0xFF800000> : vector<256xf32>
    %96 = vector.multi_reduction <maximumf>, %95, %cst_43 [0] : vector<256x256xf32> to vector<256xf32>
    %97 = vector.shape_cast %96 : vector<256xf32> to vector<1x256xf32>
    %c0_44 = arith.constant 0 : index
    %c0_45 = arith.constant 0 : index
    %c2 = arith.constant 2 : index
    %c0_46 = arith.constant 0 : index
    %98 = vector.load %arg7[%c0_44, %c0_45, %c2, %c0_46] : memref<1x1x4x256xf32, #tpu.memory_space<vmem>>, vector<1x1x1x256xf32>
    %99 = vector.shape_cast %98 : vector<1x1x1x256xf32> to vector<1x256xf32>
    %100 = vector.shape_cast %97 : vector<1x256xf32> to vector<1x1x1x256xf32>
    tpu.vector_store %arg7[%c0_44, %c0_45, %c2, %c0_46], %100 {strides = array<i32>} : memref<1x1x4x256xf32, #tpu.memory_space<vmem>>, vector<1x1x1x256xf32>,
    %101 = vector.extract_strided_slice %3 {offsets = [0, 1], sizes = [256, 1], strides = [1, 1]} : vector<256x2xf32> to vector<256x1xf32>
    %102 = vector.broadcast %101 : vector<256x1xf32> to vector<256x256xf32>
    %103 = arith.mulf %92, %102 : vector<256x256xf32>
    %cst_47 = arith.constant dense<0xFF800000> : vector<256xf32>
    %104 = vector.multi_reduction <maximumf>, %103, %cst_47 [0] : vector<256x256xf32> to vector<256xf32>
    %105 = vector.shape_cast %104 : vector<256xf32> to vector<1x256xf32>
    %c0_48 = arith.constant 0 : index
    %c0_49 = arith.constant 0 : index
    %c3 = arith.constant 3 : index
    %c0_50 = arith.constant 0 : index
    %106 = vector.load %arg7[%c0_48, %c0_49, %c3, %c0_50] : memref<1x1x4x256xf32, #tpu.memory_space<vmem>>, vector<1x1x1x256xf32>
    %107 = vector.shape_cast %106 : vector<1x1x1x256xf32> to vector<1x256xf32>
    %108 = vector.shape_cast %105 : vector<1x256xf32> to vector<1x1x1x256xf32>
    tpu.vector_store %arg7[%c0_48, %c0_49, %c3, %c0_50], %108 {strides = array<i32>} : memref<1x1x4x256xf32, #tpu.memory_space<vmem>>, vector<1x1x1x256xf32>,
    return
  }
  func.func @transform_0(%arg0: i32, %arg1: i32, %arg2: i32) -> (i32, i32, i32) {
    %c1_i32 = arith.constant 1 : i32
    %0 = arith.muli %arg1, %c1_i32 : i32
    %1 = arith.addi %0, %arg2 : i32
    %c0_i32 = arith.constant 0 : i32
    %c0_i32_0 = arith.constant 0 : i32
    return %arg0, %1, %c0_i32 : i32, i32, i32
  }
  func.func @transform_1(%arg0: i32, %arg1: i32, %arg2: i32) -> (i32, i32, i32) {
    %c1_i32 = arith.constant 1 : i32
    %0 = arith.muli %arg1, %c1_i32 : i32
    %1 = arith.addi %0, %arg2 : i32
    %c0_i32 = arith.constant 0 : i32
    %c0_i32_0 = arith.constant 0 : i32
    return %arg0, %1, %c0_i32 : i32, i32, i32
  }
  func.func @transform_2(%arg0: i32, %arg1: i32, %arg2: i32) -> (i32, i32, i32) {
    %c0_i32 = arith.constant 0 : i32
    %c0_i32_0 = arith.constant 0 : i32
    %c0_i32_1 = arith.constant 0 : i32
    return %arg0, %c0_i32, %c0_i32_0 : i32, i32, i32
  }
  func.func @transform_3(%arg0: i32, %arg1: i32, %arg2: i32) -> (i32, i32, i32) {
    %c0_i32 = arith.constant 0 : i32
    %c0_i32_0 = arith.constant 0 : i32
    %c0_i32_1 = arith.constant 0 : i32
    return %arg0, %c0_i32, %c0_i32_0 : i32, i32, i32
  }
  func.func @transform_4(%arg0: i32, %arg1: i32, %arg2: i32) -> (i32, i32, i32, i32) {
    %c0_i32 = arith.constant 0 : i32
    %c0_i32_0 = arith.constant 0 : i32
    %c0_i32_1 = arith.constant 0 : i32
    return %arg0, %arg1, %c0_i32, %c0_i32_0 : i32, i32, i32, i32
  }
}

</mosaic_0001>

<llo_original>
// kernel: tpu_custom_call.1
$region0: #{tpu_custom_call.1}
  #allocation0 [shape = 'u32[]', space=smem, size = 0x4, offset = 0x4, fixed_abs, tag = 'smem constant byte address 0x4 - core index']
  #allocation1 [shape = 'u32[144,128]{1,0:T(1,128)}', space=vmem, size = 0x12000, scoped, tag = 'internal scratch']
  %s0 = inlined_call_operand.vmem [shape: f32[2,256,256], index: 0, kind: input, shape index: {}]
  %s1 = inlined_call_operand.hbm [shape: f32[2,256,256], index: 1, kind: input, shape index: {}]
  %s2 = inlined_call_operand.vmem [shape: f32[2,256,2], index: 2, kind: input, shape index: {}]
  %s3 = inlined_call_operand.vmem [shape: f32[2,256,2], index: 3, kind: input, shape index: {}]
  %s4 = inlined_call_operand.hbm [shape: f32[2,1,4,256], index: 4, kind: output, shape index: {}]
  %s5 = sld [smem:[#allocation0]]
  $region53: #{tpu_custom_call.1} parent=0
    _
  %s7 = ssub.s32 1, %s5
  %s8 = scalar_select 0, %s7, %s5
  $region1: #{tpu_custom_call.1} parent=0
    #allocation2 [shape = 'u8[524288]{0}', space=vmem, size = 0x80000, scoped, tag = 'input window, operand 1']
    #allocation3 [shape = 's32[2]{0}', space=sflag, size = 0x8, scoped, tag = 'scoped memory for tpu_custom_call.1']
    #allocation4 [shape = 's32[2]{0}', space=sflag, size = 0x8, scoped, tag = 'scoped memory for tpu_custom_call.1']
    #allocation5 [shape = 'u8[8192]{0}', space=vmem, size = 0x2000, scoped, tag = 'output window, operand 0']
    %9 = vsyncpa [#allocation3], 0
    %s10 = scalar_lea.sflag [#allocation3], 1
    %11 = vsyncpa %s10, 0
    %12 = vsyncpa [#allocation4], 0
    %s13 = scalar_lea.sflag [#allocation4], 1
    %14 = vsyncpa %s13, 0
    loop: start=0, step=1, limit=4
    $region2: #{tpu_custom_call.1} parent=1 // loop_pre_header
      _
    $region3: #{tpu_custom_call.1} parent=1 // loop_header
      %s16 = sphi 0, %s20
      %p17 = scmp.ge.s32.totalorder %s16, 4
      %s23 = sphi 0, %s42
      %s24 = sphi 0, %s38
      %s25 = sphi 0, %s34
      %s26 = sphi 0, %s23
      %s27 = sphi 0, %s24
      %s28 = sphi 0, %s25
      %s29 = sphi 0, %s26
      %s30 = sphi 0, %s27
      %s31 = sphi 0, %s28
      %s49 = sphi 0, %s51
      %s52 = sphi 0, %s49
      %s53 = sphi 0, %s52
      %s69 = sphi 0, %s53
      %s79 = sphi 0, %s81
      %s82 = sphi 0, %s79
      %s83 = sphi 0, %s82
      %s99 = sphi 0, %s83
      %s105 = sphi 0, %s107
      %s108 = sphi 0, %s105
      %s109 = sphi 0, %s108
      %s125 = sphi 0, %s109
      %s131 = sphi 0, %s133
      %s134 = sphi 0, %s131
      %s135 = sphi 0, %s134
      %s151 = sphi 0, %s135
      %s159 = sphi 0, %s161
      %s162 = sphi 0, %s159
      %s163 = sphi 0, %s162
      %s179 = sphi 0, %s163
    $region4: #{tpu_custom_call.1} parent=1 // loop_header_branch
      %19 = sbr.rel (%p17) target = $region8
    $region5: #{tpu_custom_call.1} parent=1 // loop_body
      %s21 = ssub.s32 %s16, 1
      %s22 = ssub.s32 %s16, 2
      %s32 = sadd.s32 1, %s25
      %p33 = scmp.ge.s32.totalorder %s32, 1
      %s34 = scalar_select %p33, 0, %s32
      %s35 = sadd.s32 1, %s24
      %s36 = scalar_select %p33, %s35, %s24
      %p37 = scmp.ge.s32.totalorder %s36, 1
      %s38 = scalar_select %p37, 0, %s36
      %s39 = sadd.s32 1, %s23
      %s40 = scalar_select %p37, %s39, %s23
      %p41 = scmp.ge.s32.totalorder %s40, 2
      %s42 = scalar_select %p41, 0, %s40
      %s43 = sadd.s32 %s24, %s25
      %s44 = sadd.s32 %s38, %s34
      %s45 = ssub.s32 %s23, %s42
      %s46 = ssub.s32 %s43, %s44
      %s47 = sor.u32 %s45, %s46
      %p48 = scmp.eq.s32.totalorder %s47, 0
      %s50 = sadd.s32 %s49, 1
      %s51 = scalar_select %p48, %s49, %s50
      %p54 = pneg %p48
      %p55 = scmp.eq.s32.totalorder %s16, 1
      %p56 = por %p54, %p55
      %p57 = scmp.ne.s32.totalorder %s49, %s52
      %p58 = scmp.eq.s32.totalorder %s16, 0
      %p59 = por %p57, %p58
      %p60 = scmp.ne.s32.totalorder %s49, %s52
      %p61 = scmp.eq.s32.totalorder %s21, 1
      %p62 = por %p60, %p61
      %p63 = scmp.ne.s32.totalorder %s52, %s53
      %p64 = scmp.eq.s32.totalorder %s21, 0
      %p65 = por %p63, %p64
      %p66 = scmp.ne.s32.totalorder %s52, %s53
      %p67 = scmp.eq.s32.totalorder %s22, 1
      %p68 = por %p66, %p67
      %p70 = scmp.ne.s32.totalorder %s53, %s69
      %p71 = scmp.eq.s32.totalorder %s22, 0
      %p72 = por %p70, %p71
      %s73 = sadd.s32 %s24, %s25
      %s74 = sadd.s32 %s38, %s34
      %s75 = ssub.s32 %s23, %s42
      %s76 = ssub.s32 %s73, %s74
      %s77 = sor.u32 %s75, %s76
      %p78 = scmp.eq.s32.totalorder %s77, 0
      %s80 = sadd.s32 %s79, 1
      %s81 = scalar_select %p78, %s79, %s80
      %p84 = pneg %p78
      %p85 = scmp.eq.s32.totalorder %s16, 1
      %p86 = por %p84, %p85
      %p87 = scmp.ne.s32.totalorder %s79, %s82
      %p88 = scmp.eq.s32.totalorder %s16, 0
      %p89 = por %p87, %p88
      %p90 = scmp.ne.s32.totalorder %s79, %s82
      %p91 = scmp.eq.s32.totalorder %s21, 1
      %p92 = por %p90, %p91
      %p93 = scmp.ne.s32.totalorder %s82, %s83
      %p94 = scmp.eq.s32.totalorder %s21, 0
      %p95 = por %p93, %p94
      %p96 = scmp.ne.s32.totalorder %s82, %s83
      %p97 = scmp.eq.s32.totalorder %s22, 1
      %p98 = por %p96, %p97
      %p100 = scmp.ne.s32.totalorder %s83, %s99
      %p101 = scmp.eq.s32.totalorder %s22, 0
      %p102 = por %p100, %p101
      %s103 = ssub.s32 %s23, %s42
      %p104 = scmp.eq.s32.totalorder %s103, 0
      %s106 = sadd.s32 %s105, 1
      %s107 = scalar_select %p104, %s105, %s106
      %p110 = pneg %p104
      %p111 = scmp.eq.s32.totalorder %s16, 1
      %p112 = por %p110, %p111
      %p113 = scmp.ne.s32.totalorder %s105, %s108
      %p114 = scmp.eq.s32.totalorder %s16, 0
      %p115 = por %p113, %p114
      %p116 = scmp.ne.s32.totalorder %s105, %s108
      %p117 = scmp.eq.s32.totalorder %s21, 1
      %p118 = por %p116, %p117
      %p119 = scmp.ne.s32.totalorder %s108, %s109
      %p120 = scmp.eq.s32.totalorder %s21, 0
      %p121 = por %p119, %p120
      %p122 = scmp.ne.s32.totalorder %s108, %s109
      %p123 = scmp.eq.s32.totalorder %s22, 1
      %p124 = por %p122, %p123
      %p126 = scmp.ne.s32.totalorder %s109, %s125
      %p127 = scmp.eq.s32.totalorder %s22, 0
      %p128 = por %p126, %p127
      %s129 = ssub.s32 %s23, %s42
      %p130 = scmp.eq.s32.totalorder %s129, 0
      %s132 = sadd.s32 %s131, 1
      %s133 = scalar_select %p130, %s131, %s132
      %p136 = pneg %p130
      %p137 = scmp.eq.s32.totalorder %s16, 1
      %p138 = por %p136, %p137
      %p139 = scmp.ne.s32.totalorder %s131, %s134
      %p140 = scmp.eq.s32.totalorder %s16, 0
      %p141 = por %p139, %p140
      %p142 = scmp.ne.s32.totalorder %s131, %s134
      %p143 = scmp.eq.s32.totalorder %s21, 1
      %p144 = por %p142, %p143
      %p145 = scmp.ne.s32.totalorder %s134, %s135
      %p146 = scmp.eq.s32.totalorder %s21, 0
      %p147 = por %p145, %p146
      %p148 = scmp.ne.s32.totalorder %s134, %s135
      %p149 = scmp.eq.s32.totalorder %s22, 1
      %p150 = por %p148, %p149
      %p152 = scmp.ne.s32.totalorder %s135, %s151
      %p153 = scmp.eq.s32.totalorder %s22, 0
      %p154 = por %p152, %p153
      %s155 = ssub.s32 %s23, %s42
      %s156 = ssub.s32 %s24, %s38
      %s157 = sor.u32 %s155, %s156
      %p158 = scmp.eq.s32.totalorder %s157, 0
      %s160 = sadd.s32 %s159, 1
      %s161 = scalar_select %p158, %s159, %s160
      %p164 = pneg %p158
      %p165 = scmp.eq.s32.totalorder %s16, 1
      %p166 = por %p164, %p165
      %p167 = scmp.ne.s32.totalorder %s159, %s162
      %p168 = scmp.eq.s32.totalorder %s16, 0
      %p169 = por %p167, %p168
      %p170 = scmp.ne.s32.totalorder %s159, %s162
      %p171 = scmp.eq.s32.totalorder %s21, 1
      %p172 = por %p170, %p171
      %p173 = scmp.ne.s32.totalorder %s162, %s163
      %p174 = scmp.eq.s32.totalorder %s21, 0
      %p175 = por %p173, %p174
      %p176 = scmp.ne.s32.totalorder %s162, %s163
      %p177 = scmp.eq.s32.totalorder %s22, 1
      %p178 = por %p176, %p177
      %p180 = scmp.ne.s32.totalorder %s163, %s179
      %p181 = scmp.eq.s32.totalorder %s22, 0
      %p182 = por %p180, %p181
      %p183 = scmp.le.s32.totalorder 1, %s16
      %p184 = scmp.lt.s32.totalorder %s16, 3
      %p185 = pnand %p183, %p184
      %p186 = pneg %p185
      // Predicated region
      $region9: #{tpu_custom_call.1} parent=5 // pred_check
        _
      $region10: #{tpu_custom_call.1} parent=5 // pred_check_branch
        %188 = sbr.rel (%p185) target = $region12
      $region11: #{tpu_custom_call.1} parent=5 // pred_region
        %s189 = ssub.s32 %s16, 1
      $region12: #{tpu_custom_call.1} parent=5 // pred_fallthru
        _
      %p190 = scmp.lt.s32.totalorder %s16, 2
      // Predicated region
      $region13: #{tpu_custom_call.1} parent=5 // pred_check
        %p191 = pneg %p190
      $region14: #{tpu_custom_call.1} parent=5 // pred_check_branch
        %193 = sbr.rel (%p191) target = $region16
      $region15: #{tpu_custom_call.1} parent=5 // pred_region
        // Predicated region
        $region17: #{tpu_custom_call.1} parent=15 // pred_check
          %p194 = pneg %p59
        $region18: #{tpu_custom_call.1} parent=15 // pred_check_branch
          %196 = sbr.rel (%p194) target = $region20
        $region19: #{tpu_custom_call.1} parent=15 // pred_region
          %s197 = sadd.s32 %s24, %s25
          %s198 = smul.u32 32, %s197
          %p199 = scmp.lt.s32.totalorder %s23, 1
          %s200 = scalar_select %p199, %s23, 1
          %p201 = scmp.lt.s32.totalorder %s198, 31
          %s202 = scalar_select %p201, %s198, 31
          %s203 = smul.addr %s202, 2
          %s204 = smul.addr %s200, 64
          %s205 = sadd.s32 %s203, %s204
          %s206 = smul.addr %s205, 8
          %s207 = scalar_lea.vmem %s0, %s206
          %s208 = sadd.s32 %s24, %s25
          %s209 = smul.u32 32, %s208
        $region20: #{tpu_custom_call.1} parent=15 // pred_fallthru
          _
        // Predicated region
        $region21: #{tpu_custom_call.1} parent=15 // pred_check
          %p210 = pneg %p89
        $region22: #{tpu_custom_call.1} parent=15 // pred_check_branch
          %212 = sbr.rel (%p210) target = $region24
        $region23: #{tpu_custom_call.1} parent=15 // pred_region
          %s213 = sand.u32 %s79, 1
          %s214 = scalar_lea.sflag [#allocation3], %s213
          %s215 = sand.u32 %s79, 1
          %s216 = smul.addr %s215, 512
          %s217 = scalar_lea.vmem [#allocation2], %s216
          %s218 = sadd.s32 %s24, %s25
          %s219 = smul.u32 32, %s218
          %s221 = ssub.s32 8192, 8192
          %222 = vsyncadd %s214, %s221
          %s223 = smul.addr %s219, 2
          %s224 = smul.addr %s23, 64
          %s225 = sadd.s32 %s223, %s224
          %s226 = smul.addr %s225, 128
          %s227 = scalar_lea.hbm %s1, %s226
          %s228 = sshll.u32 %s217, 4
          %s229 = int_to_ptr.vmem [resolvable:$true] %s228
          %234 = dma.hbm_to_vmem [thread:$0]  %s227, 8192, %s229, %s214, 256, 256, 16
        $region24: #{tpu_custom_call.1} parent=15 // pred_fallthru
          _
        // Predicated region
        $region25: #{tpu_custom_call.1} parent=15 // pred_check
          %p235 = pneg %p115
        $region26: #{tpu_custom_call.1} parent=15 // pred_check_branch
          %237 = sbr.rel (%p235) target = $region28
        $region27: #{tpu_custom_call.1} parent=15 // pred_region
          %p238 = scmp.lt.s32.totalorder %s23, 1
          %s239 = scalar_select %p238, %s23, 1
          %s240 = smul.addr %s239, 32
          %s241 = smul.addr %s240, 8
          %s242 = scalar_lea.vmem %s2, %s241
        $region28: #{tpu_custom_call.1} parent=15 // pred_fallthru
          _
        // Predicated region
        $region29: #{tpu_custom_call.1} parent=15 // pred_check
          %p243 = pneg %p141
        $region30: #{tpu_custom_call.1} parent=15 // pred_check_branch
          %245 = sbr.rel (%p243) target = $region32
        $region31: #{tpu_custom_call.1} parent=15 // pred_region
          %p246 = scmp.lt.s32.totalorder %s23, 1
          %s247 = scalar_select %p246, %s23, 1
          %s248 = smul.addr %s247, 32
          %s249 = smul.addr %s248, 8
          %s250 = scalar_lea.vmem %s3, %s249
        $region32: #{tpu_custom_call.1} parent=15 // pred_fallthru
          _
      $region16: #{tpu_custom_call.1} parent=5 // pred_fallthru
        _
      %p251 = scmp.le.s32.totalorder 1, %s16
      %p252 = scmp.lt.s32.totalorder %s16, 3
      %p253 = pnand %p251, %p252
      %p254 = pneg %p253
      // Predicated region
      $region33: #{tpu_custom_call.1} parent=5 // pred_check
        _
      $region34: #{tpu_custom_call.1} parent=5 // pred_check_branch
        %256 = sbr.rel (%p253) target = $region36
      $region35: #{tpu_custom_call.1} parent=5 // pred_region
        %s257 = ssub.s32 %s16, 1
        %s258 = sand.u32 %s82, 1
        %s259 = scalar_lea.sflag [#allocation3], %s258
        %s260 = sand.u32 %s82, 1
        %s261 = smul.addr %s260, 512
        %s262 = scalar_lea.vmem [#allocation2], %s261
        // Predicated region
        $region37: #{tpu_custom_call.1} parent=35 // pred_check
          %p263 = pneg %p95
        $region38: #{tpu_custom_call.1} parent=35 // pred_check_branch
          %265 = sbr.rel (%p263) target = $region40
        $region39: #{tpu_custom_call.1} parent=35 // pred_region
          %266 = dma.done %s259, 8192
        $region40: #{tpu_custom_call.1} parent=35 // pred_fallthru
          _
        %s267 = sadd.s32 %s27, %s28
        %s268 = smul.u32 32, %s267
        %p269 = scmp.lt.s32.totalorder %s26, 1
        %s270 = scalar_select %p269, %s26, 1
        %p271 = scmp.lt.s32.totalorder %s268, 31
        %s272 = scalar_select %p271, %s268, 31
        %s273 = smul.addr %s272, 2
        %s274 = smul.addr %s270, 64
        %s275 = sadd.s32 %s273, %s274
        %s276 = smul.addr %s275, 8
        %s277 = scalar_lea.vmem %s0, %s276
        %p278 = pneg %p65
        %p279 = pneg %p62
        %s280 = sand.u32 %s82, 1
        %s281 = scalar_lea.sflag [#allocation3], %s280
        %s282 = sand.u32 %s82, 1
        %s283 = smul.addr %s282, 512
        %s284 = scalar_lea.vmem [#allocation2], %s283
        %p285 = pneg %p95
        %p286 = pneg %p92
        %p287 = scmp.lt.s32.totalorder %s26, 1
        %s288 = scalar_select %p287, %s26, 1
        %s289 = smul.addr %s288, 32
        %s290 = smul.addr %s289, 8
        %s291 = scalar_lea.vmem %s2, %s290
        %p292 = pneg %p121
        %p293 = pneg %p118
        %p294 = scmp.lt.s32.totalorder %s26, 1
        %s295 = scalar_select %p294, %s26, 1
        %s296 = smul.addr %s295, 32
        %s297 = smul.addr %s296, 8
        %s298 = scalar_lea.vmem %s3, %s297
        %p299 = pneg %p147
        %p300 = pneg %p144
        %p301 = pneg %p175
        %p302 = pneg %p172
        %s303 = sand.u32 %s162, 1
        %s304 = scalar_lea.sflag [#allocation4], %s303
        %s305 = sand.u32 %s162, 1
        %s306 = smul.addr %s305, 8
        %s307 = scalar_lea.vmem [#allocation5], %s306
        %s308 = sadd.s32 %s27, %s28
        %s309 = smul.u32 32, %s308
        %p310 = scmp.lt.s32.totalorder %s26, 1
        %s311 = scalar_select %p310, %s26, 1
        %p312 = scmp.lt.s32.totalorder %s309, 31
        %s313 = scalar_select %p312, %s309, 31
        %s314 = smul.addr %s313, 2
        %s315 = smul.addr %s311, 64
        %s316 = sadd.s32 %s314, %s315
        %s317 = smul.addr %s316, 8
        %s318 = scalar_lea.vmem %s0, %s317
        %s319 = sadd.s32 %s27, %s28
        %s320 = smul.u32 32, %s319
        %s321 = sadd.s32 %s27, %s28
        %s322 = smul.u32 32, %s321
        %p323 = scmp.lt.s32.totalorder %s26, 1
        %s324 = scalar_select %p323, %s26, 1
        %s325 = smul.addr %s324, 32
        %s326 = smul.addr %s325, 8
        %s327 = scalar_lea.vmem %s2, %s326
        %p328 = scmp.lt.s32.totalorder %s26, 1
        %s329 = scalar_select %p328, %s26, 1
        %s330 = smul.addr %s329, 32
        %s331 = smul.addr %s330, 8
        %s332 = scalar_lea.vmem %s3, %s331
        %v333 = vld [vmem:[%s327] sm:$0xff]
        %v334 = vld [vmem:[%s327 + $0x8] sm:$0xff]
        %v335 = vld [vmem:[%s327 + $0x10] sm:$0xff]
        %v336 = vld [vmem:[%s327 + $0x18] sm:$0xff]
        %v337 = vld [vmem:[%s327 + $0x20] sm:$0xff]
        %v338 = vld [vmem:[%s327 + $0x28] sm:$0xff]
        %v339 = vld [vmem:[%s327 + $0x30] sm:$0xff]
        %v340 = vld [vmem:[%s327 + $0x38] sm:$0xff]
        %v341 = vld [vmem:[%s327 + $0x40] sm:$0xff]
        %v342 = vld [vmem:[%s327 + $0x48] sm:$0xff]
        %v343 = vld [vmem:[%s327 + $0x50] sm:$0xff]
        %v344 = vld [vmem:[%s327 + $0x58] sm:$0xff]
        %v345 = vld [vmem:[%s327 + $0x60] sm:$0xff]
        %v346 = vld [vmem:[%s327 + $0x68] sm:$0xff]
        %v347 = vld [vmem:[%s327 + $0x70] sm:$0xff]
        %v348 = vld [vmem:[%s327 + $0x78] sm:$0xff]
        %v349 = vld [vmem:[%s327 + $0x80] sm:$0xff]
        %v350 = vld [vmem:[%s327 + $0x88] sm:$0xff]
        %v351 = vld [vmem:[%s327 + $0x90] sm:$0xff]
        %v352 = vld [vmem:[%s327 + $0x98] sm:$0xff]
        %v353 = vld [vmem:[%s327 + $0xa0] sm:$0xff]
        %v354 = vld [vmem:[%s327 + $0xa8] sm:$0xff]
        %v355 = vld [vmem:[%s327 + $0xb0] sm:$0xff]
        %v356 = vld [vmem:[%s327 + $0xb8] sm:$0xff]
        %v357 = vld [vmem:[%s327 + $0xc0] sm:$0xff]
        %v358 = vld [vmem:[%s327 + $0xc8] sm:$0xff]
        %v359 = vld [vmem:[%s327 + $0xd0] sm:$0xff]
        %v360 = vld [vmem:[%s327 + $0xd8] sm:$0xff]
        %v361 = vld [vmem:[%s327 + $0xe0] sm:$0xff]
        %v362 = vld [vmem:[%s327 + $0xe8] sm:$0xff]
        %v363 = vld [vmem:[%s327 + $0xf0] sm:$0xff]
        %v364 = vld [vmem:[%s327 + $0xf8] sm:$0xff]
        %v365 = vld [vmem:[%s332] sm:$0xff]
        %v366 = vld [vmem:[%s332 + $0x8] sm:$0xff]
        %v367 = vld [vmem:[%s332 + $0x10] sm:$0xff]
        %v368 = vld [vmem:[%s332 + $0x18] sm:$0xff]
        %v369 = vld [vmem:[%s332 + $0x20] sm:$0xff]
        %v370 = vld [vmem:[%s332 + $0x28] sm:$0xff]
        %v371 = vld [vmem:[%s332 + $0x30] sm:$0xff]
        %v372 = vld [vmem:[%s332 + $0x38] sm:$0xff]
        %v373 = vld [vmem:[%s332 + $0x40] sm:$0xff]
        %v374 = vld [vmem:[%s332 + $0x48] sm:$0xff]
        %v375 = vld [vmem:[%s332 + $0x50] sm:$0xff]
        %v376 = vld [vmem:[%s332 + $0x58] sm:$0xff]
        %v377 = vld [vmem:[%s332 + $0x60] sm:$0xff]
        %v378 = vld [vmem:[%s332 + $0x68] sm:$0xff]
        %v379 = vld [vmem:[%s332 + $0x70] sm:$0xff]
        %v380 = vld [vmem:[%s332 + $0x78] sm:$0xff]
        %v381 = vld [vmem:[%s332 + $0x80] sm:$0xff]
        %v382 = vld [vmem:[%s332 + $0x88] sm:$0xff]
        %v383 = vld [vmem:[%s332 + $0x90] sm:$0xff]
        %v384 = vld [vmem:[%s332 + $0x98] sm:$0xff]
        %v385 = vld [vmem:[%s332 + $0xa0] sm:$0xff]
        %v386 = vld [vmem:[%s332 + $0xa8] sm:$0xff]
        %v387 = vld [vmem:[%s332 + $0xb0] sm:$0xff]
        %v388 = vld [vmem:[%s332 + $0xb8] sm:$0xff]
        %v389 = vld [vmem:[%s332 + $0xc0] sm:$0xff]
        %v390 = vld [vmem:[%s332 + $0xc8] sm:$0xff]
        %v391 = vld [vmem:[%s332 + $0xd0] sm:$0xff]
        %v392 = vld [vmem:[%s332 + $0xd8] sm:$0xff]
        %v393 = vld [vmem:[%s332 + $0xe0] sm:$0xff]
        %v394 = vld [vmem:[%s332 + $0xe8] sm:$0xff]
        %v395 = vld [vmem:[%s332 + $0xf0] sm:$0xff]
        %v396 = vld [vmem:[%s332 + $0xf8] sm:$0xff]
        %v397 = vld [vmem:[%s318] sm:$0xff]
        %v398 = vld [vmem:[%s318 + $0x8] sm:$0xff]
        %v399 = vld [vmem:[%s318 + $0x10] sm:$0xff]
        %v400 = vld [vmem:[%s318 + $0x18] sm:$0xff]
        %v401 = vld [vmem:[%s318 + $0x20] sm:$0xff]
        %v402 = vld [vmem:[%s318 + $0x28] sm:$0xff]
        %v403 = vld [vmem:[%s318 + $0x30] sm:$0xff]
        %v404 = vld [vmem:[%s318 + $0x38] sm:$0xff]
        %v405 = vld [vmem:[%s318 + $0x40] sm:$0xff]
        %v406 = vld [vmem:[%s318 + $0x48] sm:$0xff]
        %v407 = vld [vmem:[%s318 + $0x50] sm:$0xff]
        %v408 = vld [vmem:[%s318 + $0x58] sm:$0xff]
        %v409 = vld [vmem:[%s318 + $0x60] sm:$0xff]
        %v410 = vld [vmem:[%s318 + $0x68] sm:$0xff]
        %v411 = vld [vmem:[%s318 + $0x70] sm:$0xff]
        %v412 = vld [vmem:[%s318 + $0x78] sm:$0xff]
        %v413 = vld [vmem:[%s318 + $0x80] sm:$0xff]
        %v414 = vld [vmem:[%s318 + $0x88] sm:$0xff]
        %v415 = vld [vmem:[%s318 + $0x90] sm:$0xff]
        %v416 = vld [vmem:[%s318 + $0x98] sm:$0xff]
        %v417 = vld [vmem:[%s318 + $0xa0] sm:$0xff]
        %v418 = vld [vmem:[%s318 + $0xa8] sm:$0xff]
        %v419 = vld [vmem:[%s318 + $0xb0] sm:$0xff]
        %v420 = vld [vmem:[%s318 + $0xb8] sm:$0xff]
        %v421 = vld [vmem:[%s318 + $0xc0] sm:$0xff]
        %v422 = vld [vmem:[%s318 + $0xc8] sm:$0xff]
        %v423 = vld [vmem:[%s318 + $0xd0] sm:$0xff]
        %v424 = vld [vmem:[%s318 + $0xd8] sm:$0xff]
        %v425 = vld [vmem:[%s318 + $0xe0] sm:$0xff]
        %v426 = vld [vmem:[%s318 + $0xe8] sm:$0xff]
        %v427 = vld [vmem:[%s318 + $0xf0] sm:$0xff]
        %v428 = vld [vmem:[%s318 + $0xf8] sm:$0xff]
        %v429 = vld [vmem:[%s318 + $0x100] sm:$0xff]
        %v430 = vld [vmem:[%s318 + $0x108] sm:$0xff]
        %v431 = vld [vmem:[%s318 + $0x110] sm:$0xff]
        %v432 = vld [vmem:[%s318 + $0x118] sm:$0xff]
        %v433 = vld [vmem:[%s318 + $0x120] sm:$0xff]
        %v434 = vld [vmem:[%s318 + $0x128] sm:$0xff]
        %v435 = vld [vmem:[%s318 + $0x130] sm:$0xff]
        %v436 = vld [vmem:[%s318 + $0x138] sm:$0xff]
        %v437 = vld [vmem:[%s318 + $0x140] sm:$0xff]
        %v438 = vld [vmem:[%s318 + $0x148] sm:$0xff]
        %v439 = vld [vmem:[%s318 + $0x150] sm:$0xff]
        %v440 = vld [vmem:[%s318 + $0x158] sm:$0xff]
        %v441 = vld [vmem:[%s318 + $0x160] sm:$0xff]
        %v442 = vld [vmem:[%s318 + $0x168] sm:$0xff]
        %v443 = vld [vmem:[%s318 + $0x170] sm:$0xff]
        %v444 = vld [vmem:[%s318 + $0x178] sm:$0xff]
        %v445 = vld [vmem:[%s318 + $0x180] sm:$0xff]
        %v446 = vld [vmem:[%s318 + $0x188] sm:$0xff]
        %v447 = vld [vmem:[%s318 + $0x190] sm:$0xff]
        %v448 = vld [vmem:[%s318 + $0x198] sm:$0xff]
        %v449 = vld [vmem:[%s318 + $0x1a0] sm:$0xff]
        %v450 = vld [vmem:[%s318 + $0x1a8] sm:$0xff]
        %v451 = vld [vmem:[%s318 + $0x1b0] sm:$0xff]
        %v452 = vld [vmem:[%s318 + $0x1b8] sm:$0xff]
        %v453 = vld [vmem:[%s318 + $0x1c0] sm:$0xff]
        %v454 = vld [vmem:[%s318 + $0x1c8] sm:$0xff]
        %v455 = vld [vmem:[%s318 + $0x1d0] sm:$0xff]
        %v456 = vld [vmem:[%s318 + $0x1d8] sm:$0xff]
        %v457 = vld [vmem:[%s318 + $0x1e0] sm:$0xff]
        %v458 = vld [vmem:[%s318 + $0x1e8] sm:$0xff]
        %v459 = vld [vmem:[%s318 + $0x1f0] sm:$0xff]
        %v460 = vld [vmem:[%s318 + $0x1f8] sm:$0xff]
        %462 = vset.pattern.permute.xlu0 0
        %463 = vperm.xlu0 %462, %v333
        %v464 = vpop.permute.xlu0 %463
        %467 = vset.pattern.permute.xlu0 0
        %468 = vperm.xlu0 %467, %v334
        %v469 = vpop.permute.xlu0 %468
        %472 = vset.pattern.permute.xlu0 0
        %473 = vperm.xlu0 %472, %v335
        %v474 = vpop.permute.xlu0 %473
        %477 = vset.pattern.permute.xlu0 0
        %478 = vperm.xlu0 %477, %v336
        %v479 = vpop.permute.xlu0 %478
        %482 = vset.pattern.permute.xlu0 0
        %483 = vperm.xlu0 %482, %v337
        %v484 = vpop.permute.xlu0 %483
        %487 = vset.pattern.permute.xlu0 0
        %488 = vperm.xlu0 %487, %v338
        %v489 = vpop.permute.xlu0 %488
        %492 = vset.pattern.permute.xlu0 0
        %493 = vperm.xlu0 %492, %v339
        %v494 = vpop.permute.xlu0 %493
        %497 = vset.pattern.permute.xlu0 0
        %498 = vperm.xlu0 %497, %v340
        %v499 = vpop.permute.xlu0 %498
        %502 = vset.pattern.permute.xlu0 0
        %503 = vperm.xlu0 %502, %v341
        %v504 = vpop.permute.xlu0 %503
        %507 = vset.pattern.permute.xlu0 0
        %508 = vperm.xlu0 %507, %v342
        %v509 = vpop.permute.xlu0 %508
        %512 = vset.pattern.permute.xlu0 0
        %513 = vperm.xlu0 %512, %v343
        %v514 = vpop.permute.xlu0 %513
        %517 = vset.pattern.permute.xlu0 0
        %518 = vperm.xlu0 %517, %v344
        %v519 = vpop.permute.xlu0 %518
        %522 = vset.pattern.permute.xlu0 0
        %523 = vperm.xlu0 %522, %v345
        %v524 = vpop.permute.xlu0 %523
        %527 = vset.pattern.permute.xlu0 0
        %528 = vperm.xlu0 %527, %v346
        %v529 = vpop.permute.xlu0 %528
        %532 = vset.pattern.permute.xlu0 0
        %533 = vperm.xlu0 %532, %v347
        %v534 = vpop.permute.xlu0 %533
        %537 = vset.pattern.permute.xlu0 0
        %538 = vperm.xlu0 %537, %v348
        %v539 = vpop.permute.xlu0 %538
        %542 = vset.pattern.permute.xlu0 0
        %543 = vperm.xlu0 %542, %v349
        %v544 = vpop.permute.xlu0 %543
        %547 = vset.pattern.permute.xlu0 0
        %548 = vperm.xlu0 %547, %v350
        %v549 = vpop.permute.xlu0 %548
        %552 = vset.pattern.permute.xlu0 0
        %553 = vperm.xlu0 %552, %v351
        %v554 = vpop.permute.xlu0 %553
        %557 = vset.pattern.permute.xlu0 0
        %558 = vperm.xlu0 %557, %v352
        %v559 = vpop.permute.xlu0 %558
        %562 = vset.pattern.permute.xlu0 0
        %563 = vperm.xlu0 %562, %v353
        %v564 = vpop.permute.xlu0 %563
        %567 = vset.pattern.permute.xlu0 0
        %568 = vperm.xlu0 %567, %v354
        %v569 = vpop.permute.xlu0 %568
        %572 = vset.pattern.permute.xlu0 0
        %573 = vperm.xlu0 %572, %v355
        %v574 = vpop.permute.xlu0 %573
        %577 = vset.pattern.permute.xlu0 0
        %578 = vperm.xlu0 %577, %v356
        %v579 = vpop.permute.xlu0 %578
        %582 = vset.pattern.permute.xlu0 0
        %583 = vperm.xlu0 %582, %v357
        %v584 = vpop.permute.xlu0 %583
        %587 = vset.pattern.permute.xlu0 0
        %588 = vperm.xlu0 %587, %v358
        %v589 = vpop.permute.xlu0 %588
        %592 = vset.pattern.permute.xlu0 0
        %593 = vperm.xlu0 %592, %v359
        %v594 = vpop.permute.xlu0 %593
        %597 = vset.pattern.permute.xlu0 0
        %598 = vperm.xlu0 %597, %v360
        %v599 = vpop.permute.xlu0 %598
        %602 = vset.pattern.permute.xlu0 0
        %603 = vperm.xlu0 %602, %v361
        %v604 = vpop.permute.xlu0 %603
        %607 = vset.pattern.permute.xlu0 0
        %608 = vperm.xlu0 %607, %v362
        %v609 = vpop.permute.xlu0 %608
        %612 = vset.pattern.permute.xlu0 0
        %613 = vperm.xlu0 %612, %v363
        %v614 = vpop.permute.xlu0 %613
        %617 = vset.pattern.permute.xlu0 0
        %618 = vperm.xlu0 %617, %v364
        %v619 = vpop.permute.xlu0 %618
        %v621 = vmul.f32 %v397, %v464
        %v622 = vmul.f32 %v398, %v464
        %v623 = vmul.f32 %v399, %v469
        %v624 = vmul.f32 %v400, %v469
        %v625 = vmul.f32 %v401, %v474
        %v626 = vmul.f32 %v402, %v474
        %v627 = vmul.f32 %v403, %v479
        %v628 = vmul.f32 %v404, %v479
        %v629 = vmul.f32 %v405, %v484
        %v630 = vmul.f32 %v406, %v484
        %v631 = vmul.f32 %v407, %v489
        %v632 = vmul.f32 %v408, %v489
        %v633 = vmul.f32 %v409, %v494
        %v634 = vmul.f32 %v410, %v494
        %v635 = vmul.f32 %v411, %v499
        %v636 = vmul.f32 %v412, %v499
        %v637 = vmul.f32 %v413, %v504
        %v638 = vmul.f32 %v414, %v504
        %v639 = vmul.f32 %v415, %v509
        %v640 = vmul.f32 %v416, %v509
        %v641 = vmul.f32 %v417, %v514
        %v642 = vmul.f32 %v418, %v514
        %v643 = vmul.f32 %v419, %v519
        %v644 = vmul.f32 %v420, %v519
        %v645 = vmul.f32 %v421, %v524
        %v646 = vmul.f32 %v422, %v524
        %v647 = vmul.f32 %v423, %v529
        %v648 = vmul.f32 %v424, %v529
        %v649 = vmul.f32 %v425, %v534
        %v650 = vmul.f32 %v426, %v534
        %v651 = vmul.f32 %v427, %v539
        %v652 = vmul.f32 %v428, %v539
        %v653 = vmul.f32 %v429, %v544
        %v654 = vmul.f32 %v430, %v544
        %v655 = vmul.f32 %v431, %v549
        %v656 = vmul.f32 %v432, %v549
        %v657 = vmul.f32 %v433, %v554
        %v658 = vmul.f32 %v434, %v554
        %v659 = vmul.f32 %v435, %v559
        %v660 = vmul.f32 %v436, %v559
        %v661 = vmul.f32 %v437, %v564
        %v662 = vmul.f32 %v438, %v564
        %v663 = vmul.f32 %v439, %v569
        %v664 = vmul.f32 %v440, %v569
        %v665 = vmul.f32 %v441, %v574
        %v666 = vmul.f32 %v442, %v574
        %v667 = vmul.f32 %v443, %v579
        %v668 = vmul.f32 %v444, %v579
        %v669 = vmul.f32 %v445, %v584
        %v670 = vmul.f32 %v446, %v584
        %v671 = vmul.f32 %v447, %v589
        %v672 = vmul.f32 %v448, %v589
        %v673 = vmul.f32 %v449, %v594
        %v674 = vmul.f32 %v450, %v594
        %v675 = vmul.f32 %v451, %v599
        %v676 = vmul.f32 %v452, %v599
        %v677 = vmul.f32 %v453, %v604
        %v678 = vmul.f32 %v454, %v604
        %v679 = vmul.f32 %v455, %v609
        %v680 = vmul.f32 %v456, %v609
        %v681 = vmul.f32 %v457, %v614
        %v682 = vmul.f32 %v458, %v614
        %v683 = vmul.f32 %v459, %v619
        %v684 = vmul.f32 %v460, %v619
        %v685 = vmax.f32 %v621, %v625
        %v686 = vmax.f32 %v623, %v627
        %v687 = vmax.f32 %v685, %v629
        %v688 = vmax.f32 %v686, %v631
        %v689 = vmax.f32 %v687, %v633
        %v690 = vmax.f32 %v688, %v635
        %v691 = vmax.f32 %v689, %v637
        %v692 = vmax.f32 %v690, %v639
        %v693 = vmax.f32 %v691, %v641
        %v694 = vmax.f32 %v692, %v643
        %v695 = vmax.f32 %v693, %v645
        %v696 = vmax.f32 %v694, %v647
        %v697 = vmax.f32 %v695, %v649
        %v698 = vmax.f32 %v696, %v651
        %v699 = vmax.f32 %v697, %v653
        %v700 = vmax.f32 %v698, %v655
        %v701 = vmax.f32 %v699, %v657
        %v702 = vmax.f32 %v700, %v659
        %v703 = vmax.f32 %v701, %v661
        %v704 = vmax.f32 %v702, %v663
        %v705 = vmax.f32 %v703, %v665
        %v706 = vmax.f32 %v704, %v667
        %v707 = vmax.f32 %v705, %v669
        %v708 = vmax.f32 %v706, %v671
        %v709 = vmax.f32 %v707, %v673
        %v710 = vmax.f32 %v708, %v675
        %v711 = vmax.f32 %v709, %v677
        %v712 = vmax.f32 %v710, %v679
        %v713 = vmax.f32 %v711, %v681
        %v714 = vmax.f32 %v712, %v683
        %v715 = vmax.f32 %v713, %v714
        %v716 = vrot.slane %v715, 4
        %v717 = vmax.f32 %v715, %v716
        %v718 = vrot.slane %v717, 2
        %v719 = vmax.f32 %v717, %v718
        %v720 = vrot.slane %v719, 1
        %v721 = vmax.f32 %v719, %v720
        %v722 = vmax.f32 %v622, %v626
        %v723 = vmax.f32 %v624, %v628
        %v724 = vmax.f32 %v722, %v630
        %v725 = vmax.f32 %v723, %v632
        %v726 = vmax.f32 %v724, %v634
        %v727 = vmax.f32 %v725, %v636
        %v728 = vmax.f32 %v726, %v638
        %v729 = vmax.f32 %v727, %v640
        %v730 = vmax.f32 %v728, %v642
        %v731 = vmax.f32 %v729, %v644
        %v732 = vmax.f32 %v730, %v646
        %v733 = vmax.f32 %v731, %v648
        %v734 = vmax.f32 %v732, %v650
        %v735 = vmax.f32 %v733, %v652
        %v736 = vmax.f32 %v734, %v654
        %v737 = vmax.f32 %v735, %v656
        %v738 = vmax.f32 %v736, %v658
        %v739 = vmax.f32 %v737, %v660
        %v740 = vmax.f32 %v738, %v662
        %v741 = vmax.f32 %v739, %v664
        %v742 = vmax.f32 %v740, %v666
        %v743 = vmax.f32 %v741, %v668
        %v744 = vmax.f32 %v742, %v670
        %v745 = vmax.f32 %v743, %v672
        %v746 = vmax.f32 %v744, %v674
        %v747 = vmax.f32 %v745, %v676
        %v748 = vmax.f32 %v746, %v678
        %v749 = vmax.f32 %v747, %v680
        %v750 = vmax.f32 %v748, %v682
        %v751 = vmax.f32 %v749, %v684
        %v752 = vmax.f32 %v750, %v751
        %v753 = vrot.slane %v752, 4
        %v754 = vmax.f32 %v752, %v753
        %v755 = vrot.slane %v754, 2
        %v756 = vmax.f32 %v754, %v755
        %v757 = vrot.slane %v756, 1
        %v758 = vmax.f32 %v756, %v757
        %v761 = vcombine.low %v721, %v758
        %v763 = vunpack.c.l.s4 1966171168
        %v764 = vunpack.c.0.s8 %v763
        %v765 = vlaneseq
        %v766 = vshrl.u32 %v765, 7
        %v767 = vsub.s32 %v764, %v766
        %v768 = vrot.slane %v761, %v767
        %v770 = vunpack.c.l.s4 1966171168
        %v771 = vunpack.c.0.s8 %v770
        %v772 = vlaneseq
        %v773 = vshrl.u32 %v772, 7
        %v774 = vsub.s32 %v771, %v773
        %v775 = vrot.slane %v768, %v774
        %v777 = vlaneseq
        %vm778 = vcmp.ge.s32.totalorder %v777, 0
        %vm779 = vcmp.lt.s32.totalorder %v777, 256
        %vm780 = vmand %vm778, %vm779
        %781 = vst.msk [vmem:[%s307] ss:$4 sm:$0x3] %vm780, %v775
        %782 = vset.pattern.permute.xlu0 1
        %783 = vperm.xlu0 %782, %v333
        %v784 = vpop.permute.xlu0 %783
        %786 = vset.pattern.permute.xlu0 1
        %787 = vperm.xlu0 %786, %v334
        %v788 = vpop.permute.xlu0 %787
        %790 = vset.pattern.permute.xlu0 1
        %791 = vperm.xlu0 %790, %v335
        %v792 = vpop.permute.xlu0 %791
        %794 = vset.pattern.permute.xlu0 1
        %795 = vperm.xlu0 %794, %v336
        %v796 = vpop.permute.xlu0 %795
        %798 = vset.pattern.permute.xlu0 1
        %799 = vperm.xlu0 %798, %v337
        %v800 = vpop.permute.xlu0 %799
        %802 = vset.pattern.permute.xlu0 1
        %803 = vperm.xlu0 %802, %v338
        %v804 = vpop.permute.xlu0 %803
        %806 = vset.pattern.permute.xlu0 1
        %807 = vperm.xlu0 %806, %v339
        %v808 = vpop.permute.xlu0 %807
        %810 = vset.pattern.permute.xlu0 1
        %811 = vperm.xlu0 %810, %v340
        %v812 = vpop.permute.xlu0 %811
        %814 = vset.pattern.permute.xlu0 1
        %815 = vperm.xlu0 %814, %v341
        %v816 = vpop.permute.xlu0 %815
        %818 = vset.pattern.permute.xlu0 1
        %819 = vperm.xlu0 %818, %v342
        %v820 = vpop.permute.xlu0 %819
        %822 = vset.pattern.permute.xlu0 1
        %823 = vperm.xlu0 %822, %v343
        %v824 = vpop.permute.xlu0 %823
        %826 = vset.pattern.permute.xlu0 1
        %827 = vperm.xlu0 %826, %v344
        %v828 = vpop.permute.xlu0 %827
        %830 = vset.pattern.permute.xlu0 1
        %831 = vperm.xlu0 %830, %v345
        %v832 = vpop.permute.xlu0 %831
        %834 = vset.pattern.permute.xlu0 1
        %835 = vperm.xlu0 %834, %v346
        %v836 = vpop.permute.xlu0 %835
        %838 = vset.pattern.permute.xlu0 1
        %839 = vperm.xlu0 %838, %v347
        %v840 = vpop.permute.xlu0 %839
        %842 = vset.pattern.permute.xlu0 1
        %843 = vperm.xlu0 %842, %v348
        %v844 = vpop.permute.xlu0 %843
        %846 = vset.pattern.permute.xlu0 1
        %847 = vperm.xlu0 %846, %v349
        %v848 = vpop.permute.xlu0 %847
        %850 = vset.pattern.permute.xlu0 1
        %851 = vperm.xlu0 %850, %v350
        %v852 = vpop.permute.xlu0 %851
        %854 = vset.pattern.permute.xlu0 1
        %855 = vperm.xlu0 %854, %v351
        %v856 = vpop.permute.xlu0 %855
        %858 = vset.pattern.permute.xlu0 1
        %859 = vperm.xlu0 %858, %v352
        %v860 = vpop.permute.xlu0 %859
        %862 = vset.pattern.permute.xlu0 1
        %863 = vperm.xlu0 %862, %v353
        %v864 = vpop.permute.xlu0 %863
        %866 = vset.pattern.permute.xlu0 1
        %867 = vperm.xlu0 %866, %v354
        %v868 = vpop.permute.xlu0 %867
        %870 = vset.pattern.permute.xlu0 1
        %871 = vperm.xlu0 %870, %v355
        %v872 = vpop.permute.xlu0 %871
        %874 = vset.pattern.permute.xlu0 1
        %875 = vperm.xlu0 %874, %v356
        %v876 = vpop.permute.xlu0 %875
        %878 = vset.pattern.permute.xlu0 1
        %879 = vperm.xlu0 %878, %v357
        %v880 = vpop.permute.xlu0 %879
        %882 = vset.pattern.permute.xlu0 1
        %883 = vperm.xlu0 %882, %v358
        %v884 = vpop.permute.xlu0 %883
        %886 = vset.pattern.permute.xlu0 1
        %887 = vperm.xlu0 %886, %v359
        %v888 = vpop.permute.xlu0 %887
        %890 = vset.pattern.permute.xlu0 1
        %891 = vperm.xlu0 %890, %v360
        %v892 = vpop.permute.xlu0 %891
        %894 = vset.pattern.permute.xlu0 1
        %895 = vperm.xlu0 %894, %v361
        %v896 = vpop.permute.xlu0 %895
        %898 = vset.pattern.permute.xlu0 1
        %899 = vperm.xlu0 %898, %v362
        %v900 = vpop.permute.xlu0 %899
        %902 = vset.pattern.permute.xlu0 1
        %903 = vperm.xlu0 %902, %v363
        %v904 = vpop.permute.xlu0 %903
        %906 = vset.pattern.permute.xlu0 1
        %907 = vperm.xlu0 %906, %v364
        %v908 = vpop.permute.xlu0 %907
        %v910 = vmul.f32 %v397, %v784
        %v911 = vmul.f32 %v398, %v784
        %v912 = vmul.f32 %v399, %v788
        %v913 = vmul.f32 %v400, %v788
        %v914 = vmul.f32 %v401, %v792
        %v915 = vmul.f32 %v402, %v792
        %v916 = vmul.f32 %v403, %v796
        %v917 = vmul.f32 %v404, %v796
        %v918 = vmul.f32 %v405, %v800
        %v919 = vmul.f32 %v406, %v800
        %v920 = vmul.f32 %v407, %v804
        %v921 = vmul.f32 %v408, %v804
        %v922 = vmul.f32 %v409, %v808
        %v923 = vmul.f32 %v410, %v808
        %v924 = vmul.f32 %v411, %v812
        %v925 = vmul.f32 %v412, %v812
        %v926 = vmul.f32 %v413, %v816
        %v927 = vmul.f32 %v414, %v816
        %v928 = vmul.f32 %v415, %v820
        %v929 = vmul.f32 %v416, %v820
        %v930 = vmul.f32 %v417, %v824
        %v931 = vmul.f32 %v418, %v824
        %v932 = vmul.f32 %v419, %v828
        %v933 = vmul.f32 %v420, %v828
        %v934 = vmul.f32 %v421, %v832
        %v935 = vmul.f32 %v422, %v832
        %v936 = vmul.f32 %v423, %v836
        %v937 = vmul.f32 %v424, %v836
        %v938 = vmul.f32 %v425, %v840
        %v939 = vmul.f32 %v426, %v840
        %v940 = vmul.f32 %v427, %v844
        %v941 = vmul.f32 %v428, %v844
        %v942 = vmul.f32 %v429, %v848
        %v943 = vmul.f32 %v430, %v848
        %v944 = vmul.f32 %v431, %v852
        %v945 = vmul.f32 %v432, %v852
        %v946 = vmul.f32 %v433, %v856
        %v947 = vmul.f32 %v434, %v856
        %v948 = vmul.f32 %v435, %v860
        %v949 = vmul.f32 %v436, %v860
        %v950 = vmul.f32 %v437, %v864
        %v951 = vmul.f32 %v438, %v864
        %v952 = vmul.f32 %v439, %v868
        %v953 = vmul.f32 %v440, %v868
        %v954 = vmul.f32 %v441, %v872
        %v955 = vmul.f32 %v442, %v872
        %v956 = vmul.f32 %v443, %v876
        %v957 = vmul.f32 %v444, %v876
        %v958 = vmul.f32 %v445, %v880
        %v959 = vmul.f32 %v446, %v880
        %v960 = vmul.f32 %v447, %v884
        %v961 = vmul.f32 %v448, %v884
        %v962 = vmul.f32 %v449, %v888
        %v963 = vmul.f32 %v450, %v888
        %v964 = vmul.f32 %v451, %v892
        %v965 = vmul.f32 %v452, %v892
        %v966 = vmul.f32 %v453, %v896
        %v967 = vmul.f32 %v454, %v896
        %v968 = vmul.f32 %v455, %v900
        %v969 = vmul.f32 %v456, %v900
        %v970 = vmul.f32 %v457, %v904
        %v971 = vmul.f32 %v458, %v904
        %v972 = vmul.f32 %v459, %v908
        %v973 = vmul.f32 %v460, %v908
        %v974 = vmax.f32 %v910, %v914
        %v975 = vmax.f32 %v912, %v916
        %v976 = vmax.f32 %v974, %v918
        %v977 = vmax.f32 %v975, %v920
        %v978 = vmax.f32 %v976, %v922
        %v979 = vmax.f32 %v977, %v924
        %v980 = vmax.f32 %v978, %v926
        %v981 = vmax.f32 %v979, %v928
        %v982 = vmax.f32 %v980, %v930
        %v983 = vmax.f32 %v981, %v932
        %v984 = vmax.f32 %v982, %v934
        %v985 = vmax.f32 %v983, %v936
        %v986 = vmax.f32 %v984, %v938
        %v987 = vmax.f32 %v985, %v940
        %v988 = vmax.f32 %v986, %v942
        %v989 = vmax.f32 %v987, %v944
        %v990 = vmax.f32 %v988, %v946
        %v991 = vmax.f32 %v989, %v948
        %v992 = vmax.f32 %v990, %v950
        %v993 = vmax.f32 %v991, %v952
        %v994 = vmax.f32 %v992, %v954
        %v995 = vmax.f32 %v993, %v956
        %v996 = vmax.f32 %v994, %v958
        %v997 = vmax.f32 %v995, %v960
        %v998 = vmax.f32 %v996, %v962
        %v999 = vmax.f32 %v997, %v964
        %v1000 = vmax.f32 %v998, %v966
        %v1001 = vmax.f32 %v999, %v968
        %v1002 = vmax.f32 %v1000, %v970
        %v1003 = vmax.f32 %v1001, %v972
        %v1004 = vmax.f32 %v1002, %v1003
        %v1005 = vrot.slane %v1004, 4
        %v1006 = vmax.f32 %v1004, %v1005
        %v1007 = vrot.slane %v1006, 2
        %v1008 = vmax.f32 %v1006, %v1007
        %v1009 = vrot.slane %v1008, 1
        %v1010 = vmax.f32 %v1008, %v1009
        %v1011 = vmax.f32 %v911, %v915
        %v1012 = vmax.f32 %v913, %v917
        %v1013 = vmax.f32 %v1011, %v919
        %v1014 = vmax.f32 %v1012, %v921
        %v1015 = vmax.f32 %v1013, %v923
        %v1016 = vmax.f32 %v1014, %v925
        %v1017 = vmax.f32 %v1015, %v927
        %v1018 = vmax.f32 %v1016, %v929
        %v1019 = vmax.f32 %v1017, %v931
        %v1020 = vmax.f32 %v1018, %v933
        %v1021 = vmax.f32 %v1019, %v935
        %v1022 = vmax.f32 %v1020, %v937
        %v1023 = vmax.f32 %v1021, %v939
        %v1024 = vmax.f32 %v1022, %v941
        %v1025 = vmax.f32 %v1023, %v943
        %v1026 = vmax.f32 %v1024, %v945
        %v1027 = vmax.f32 %v1025, %v947
        %v1028 = vmax.f32 %v1026, %v949
        %v1029 = vmax.f32 %v1027, %v951
        %v1030 = vmax.f32 %v1028, %v953
        %v1031 = vmax.f32 %v1029, %v955
        %v1032 = vmax.f32 %v1030, %v957
        %v1033 = vmax.f32 %v1031, %v959
        %v1034 = vmax.f32 %v1032, %v961
        %v1035 = vmax.f32 %v1033, %v963
        %v1036 = vmax.f32 %v1034, %v965
        %v1037 = vmax.f32 %v1035, %v967
        %v1038 = vmax.f32 %v1036, %v969
        %v1039 = vmax.f32 %v1037, %v971
        %v1040 = vmax.f32 %v1038, %v973
        %v1041 = vmax.f32 %v1039, %v1040
        %v1042 = vrot.slane %v1041, 4
        %v1043 = vmax.f32 %v1041, %v1042
        %v1044 = vrot.slane %v1043, 2
        %v1045 = vmax.f32 %v1043, %v1044
        %v1046 = vrot.slane %v1045, 1
        %v1047 = vmax.f32 %v1045, %v1046
        %v1050 = vcombine.low %v1010, %v1047
        %v1052 = vunpack.c.l.s4 1966171168
        %v1053 = vunpack.c.0.s8 %v1052
        %v1054 = vlaneseq
        %v1055 = vshrl.u32 %v1054, 7
        %v1056 = vsub.s32 %v1053, %v1055
        %v1057 = vrot.slane %v1050, %v1056
        %v1059 = vunpack.c.l.s4 1966171168
        %v1060 = vunpack.c.0.s8 %v1059
        %v1061 = vlaneseq
        %v1062 = vshrl.u32 %v1061, 7
        %v1063 = vsub.s32 %v1060, %v1062
        %v1064 = vrot.slane %v1057, %v1063
        %s1066 = scalar_lea.vmem %s307, 1 [#allocation5]
        %1067 = vst.msk [vmem:[%s1066] ss:$4 sm:$0x3] %vm780, %v1064
        %v1068 = vld [vmem:[%s262] sm:$0xff]
        %v1069 = vld [vmem:[%s262 + $0x8] sm:$0xff]
        %v1070 = vld [vmem:[%s262 + $0x10] sm:$0xff]
        %v1071 = vld [vmem:[%s262 + $0x18] sm:$0xff]
        %v1072 = vld [vmem:[%s262 + $0x20] sm:$0xff]
        %v1073 = vld [vmem:[%s262 + $0x28] sm:$0xff]
        %v1074 = vld [vmem:[%s262 + $0x30] sm:$0xff]
        %v1075 = vld [vmem:[%s262 + $0x38] sm:$0xff]
        %v1076 = vld [vmem:[%s262 + $0x40] sm:$0xff]
        %v1077 = vld [vmem:[%s262 + $0x48] sm:$0xff]
        %v1078 = vld [vmem:[%s262 + $0x50] sm:$0xff]
        %v1079 = vld [vmem:[%s262 + $0x58] sm:$0xff]
        %v1080 = vld [vmem:[%s262 + $0x60] sm:$0xff]
        %v1081 = vld [vmem:[%s262 + $0x68] sm:$0xff]
        %v1082 = vld [vmem:[%s262 + $0x70] sm:$0xff]
        %v1083 = vld [vmem:[%s262 + $0x78] sm:$0xff]
        %v1084 = vld [vmem:[%s262 + $0x80] sm:$0xff]
        %v1085 = vld [vmem:[%s262 + $0x88] sm:$0xff]
        %v1086 = vld [vmem:[%s262 + $0x90] sm:$0xff]
        %v1087 = vld [vmem:[%s262 + $0x98] sm:$0xff]
        %v1088 = vld [vmem:[%s262 + $0xa0] sm:$0xff]
        %v1089 = vld [vmem:[%s262 + $0xa8] sm:$0xff]
        %v1090 = vld [vmem:[%s262 + $0xb0] sm:$0xff]
        %v1091 = vld [vmem:[%s262 + $0xb8] sm:$0xff]
        %v1092 = vld [vmem:[%s262 + $0xc0] sm:$0xff]
        %v1093 = vld [vmem:[%s262 + $0xc8] sm:$0xff]
        %v1094 = vld [vmem:[%s262 + $0xd0] sm:$0xff]
        %v1095 = vld [vmem:[%s262 + $0xd8] sm:$0xff]
        %v1096 = vld [vmem:[%s262 + $0xe0] sm:$0xff]
        %v1097 = vld [vmem:[%s262 + $0xe8] sm:$0xff]
        %v1098 = vld [vmem:[%s262 + $0xf0] sm:$0xff]
        %v1099 = vld [vmem:[%s262 + $0xf8] sm:$0xff]
        %v1100 = vld [vmem:[%s262 + $0x100] sm:$0xff]
        %v1101 = vld [vmem:[%s262 + $0x108] sm:$0xff]
        %v1102 = vld [vmem:[%s262 + $0x110] sm:$0xff]
        %v1103 = vld [vmem:[%s262 + $0x118] sm:$0xff]
        %v1104 = vld [vmem:[%s262 + $0x120] sm:$0xff]
        %v1105 = vld [vmem:[%s262 + $0x128] sm:$0xff]
        %v1106 = vld [vmem:[%s262 + $0x130] sm:$0xff]
        %v1107 = vld [vmem:[%s262 + $0x138] sm:$0xff]
        %v1108 = vld [vmem:[%s262 + $0x140] sm:$0xff]
        %v1109 = vld [vmem:[%s262 + $0x148] sm:$0xff]
        %v1110 = vld [vmem:[%s262 + $0x150] sm:$0xff]
        %v1111 = vld [vmem:[%s262 + $0x158] sm:$0xff]
        %v1112 = vld [vmem:[%s262 + $0x160] sm:$0xff]
        %v1113 = vld [vmem:[%s262 + $0x168] sm:$0xff]
        %v1114 = vld [vmem:[%s262 + $0x170] sm:$0xff]
        %v1115 = vld [vmem:[%s262 + $0x178] sm:$0xff]
        %v1116 = vld [vmem:[%s262 + $0x180] sm:$0xff]
        %v1117 = vld [vmem:[%s262 + $0x188] sm:$0xff]
        %v1118 = vld [vmem:[%s262 + $0x190] sm:$0xff]
        %v1119 = vld [vmem:[%s262 + $0x198] sm:$0xff]
        %v1120 = vld [vmem:[%s262 + $0x1a0] sm:$0xff]
        %v1121 = vld [vmem:[%s262 + $0x1a8] sm:$0xff]
        %v1122 = vld [vmem:[%s262 + $0x1b0] sm:$0xff]
        %v1123 = vld [vmem:[%s262 + $0x1b8] sm:$0xff]
        %v1124 = vld [vmem:[%s262 + $0x1c0] sm:$0xff]
        %v1125 = vld [vmem:[%s262 + $0x1c8] sm:$0xff]
        %v1126 = vld [vmem:[%s262 + $0x1d0] sm:$0xff]
        %v1127 = vld [vmem:[%s262 + $0x1d8] sm:$0xff]
        %v1128 = vld [vmem:[%s262 + $0x1e0] sm:$0xff]
        %v1129 = vld [vmem:[%s262 + $0x1e8] sm:$0xff]
        %v1130 = vld [vmem:[%s262 + $0x1f0] sm:$0xff]
        %v1131 = vld [vmem:[%s262 + $0x1f8] sm:$0xff]
        %v1132 = vmin.f32 %v1068, %v1069
        %1133 = vmin.xlane.f32.xlu0 %v1132
        %v1134 = vpop.xlane.xlu0 %1133
        %v1135 = vmin.f32 %v1070, %v1071
        %1136 = vmin.xlane.f32.xlu0 %v1135
        %v1137 = vpop.xlane.xlu0 %1136
        %v1138 = vmin.f32 %v1072, %v1073
        %1139 = vmin.xlane.f32.xlu0 %v1138
        %v1140 = vpop.xlane.xlu0 %1139
        %v1141 = vmin.f32 %v1074, %v1075
        %1142 = vmin.xlane.f32.xlu0 %v1141
        %v1143 = vpop.xlane.xlu0 %1142
        %v1144 = vmin.f32 %v1076, %v1077
        %1145 = vmin.xlane.f32.xlu0 %v1144
        %v1146 = vpop.xlane.xlu0 %1145
        %v1147 = vmin.f32 %v1078, %v1079
        %1148 = vmin.xlane.f32.xlu0 %v1147
        %v1149 = vpop.xlane.xlu0 %1148
        %v1150 = vmin.f32 %v1080, %v1081
        %1151 = vmin.xlane.f32.xlu0 %v1150
        %v1152 = vpop.xlane.xlu0 %1151
        %v1153 = vmin.f32 %v1082, %v1083
        %1154 = vmin.xlane.f32.xlu0 %v1153
        %v1155 = vpop.xlane.xlu0 %1154
        %v1156 = vmin.f32 %v1084, %v1085
        %1157 = vmin.xlane.f32.xlu0 %v1156
        %v1158 = vpop.xlane.xlu0 %1157
        %v1159 = vmin.f32 %v1086, %v1087
        %1160 = vmin.xlane.f32.xlu0 %v1159
        %v1161 = vpop.xlane.xlu0 %1160
        %v1162 = vmin.f32 %v1088, %v1089
        %1163 = vmin.xlane.f32.xlu0 %v1162
        %v1164 = vpop.xlane.xlu0 %1163
        %v1165 = vmin.f32 %v1090, %v1091
        %1166 = vmin.xlane.f32.xlu0 %v1165
        %v1167 = vpop.xlane.xlu0 %1166
        %v1168 = vmin.f32 %v1092, %v1093
        %1169 = vmin.xlane.f32.xlu0 %v1168
        %v1170 = vpop.xlane.xlu0 %1169
        %v1171 = vmin.f32 %v1094, %v1095
        %1172 = vmin.xlane.f32.xlu0 %v1171
        %v1173 = vpop.xlane.xlu0 %1172
        %v1174 = vmin.f32 %v1096, %v1097
        %1175 = vmin.xlane.f32.xlu0 %v1174
        %v1176 = vpop.xlane.xlu0 %1175
        %v1177 = vmin.f32 %v1098, %v1099
        %1178 = vmin.xlane.f32.xlu0 %v1177
        %v1179 = vpop.xlane.xlu0 %1178
        %v1180 = vmin.f32 %v1100, %v1101
        %1181 = vmin.xlane.f32.xlu0 %v1180
        %v1182 = vpop.xlane.xlu0 %1181
        %v1183 = vmin.f32 %v1102, %v1103
        %1184 = vmin.xlane.f32.xlu0 %v1183
        %v1185 = vpop.xlane.xlu0 %1184
        %v1186 = vmin.f32 %v1104, %v1105
        %1187 = vmin.xlane.f32.xlu0 %v1186
        %v1188 = vpop.xlane.xlu0 %1187
        %v1189 = vmin.f32 %v1106, %v1107
        %1190 = vmin.xlane.f32.xlu0 %v1189
        %v1191 = vpop.xlane.xlu0 %1190
        %v1192 = vmin.f32 %v1108, %v1109
        %1193 = vmin.xlane.f32.xlu0 %v1192
        %v1194 = vpop.xlane.xlu0 %1193
        %v1195 = vmin.f32 %v1110, %v1111
        %1196 = vmin.xlane.f32.xlu0 %v1195
        %v1197 = vpop.xlane.xlu0 %1196
        %v1198 = vmin.f32 %v1112, %v1113
        %1199 = vmin.xlane.f32.xlu0 %v1198
        %v1200 = vpop.xlane.xlu0 %1199
        %v1201 = vmin.f32 %v1114, %v1115
        %1202 = vmin.xlane.f32.xlu0 %v1201
        %v1203 = vpop.xlane.xlu0 %1202
        %v1204 = vmin.f32 %v1116, %v1117
        %1205 = vmin.xlane.f32.xlu0 %v1204
        %v1206 = vpop.xlane.xlu0 %1205
        %v1207 = vmin.f32 %v1118, %v1119
        %1208 = vmin.xlane.f32.xlu0 %v1207
        %v1209 = vpop.xlane.xlu0 %1208
        %v1210 = vmin.f32 %v1120, %v1121
        %1211 = vmin.xlane.f32.xlu0 %v1210
        %v1212 = vpop.xlane.xlu0 %1211
        %v1213 = vmin.f32 %v1122, %v1123
        %1214 = vmin.xlane.f32.xlu0 %v1213
        %v1215 = vpop.xlane.xlu0 %1214
        %v1216 = vmin.f32 %v1124, %v1125
        %1217 = vmin.xlane.f32.xlu0 %v1216
        %v1218 = vpop.xlane.xlu0 %1217
        %v1219 = vmin.f32 %v1126, %v1127
        %1220 = vmin.xlane.f32.xlu0 %v1219
        %v1221 = vpop.xlane.xlu0 %1220
        %v1222 = vmin.f32 %v1128, %v1129
        %1223 = vmin.xlane.f32.xlu0 %v1222
        %v1224 = vpop.xlane.xlu0 %1223
        %v1225 = vmin.f32 %v1130, %v1131
        %1226 = vmin.xlane.f32.xlu0 %v1225
        %v1227 = vpop.xlane.xlu0 %1226
        %v1228 = vmax.f32 %v1068, %v1069
        %1229 = vmax.xlane.f32.xlu0 %v1228
        %v1230 = vpop.xlane.xlu0 %1229
        %v1231 = vmax.f32 %v1070, %v1071
        %1232 = vmax.xlane.f32.xlu0 %v1231
        %v1233 = vpop.xlane.xlu0 %1232
        %v1234 = vmax.f32 %v1072, %v1073
        %1235 = vmax.xlane.f32.xlu0 %v1234
        %v1236 = vpop.xlane.xlu0 %1235
        %v1237 = vmax.f32 %v1074, %v1075
        %1238 = vmax.xlane.f32.xlu0 %v1237
        %v1239 = vpop.xlane.xlu0 %1238
        %v1240 = vmax.f32 %v1076, %v1077
        %1241 = vmax.xlane.f32.xlu0 %v1240
        %v1242 = vpop.xlane.xlu0 %1241
        %v1243 = vmax.f32 %v1078, %v1079
        %1244 = vmax.xlane.f32.xlu0 %v1243
        %v1245 = vpop.xlane.xlu0 %1244
        %v1246 = vmax.f32 %v1080, %v1081
        %1247 = vmax.xlane.f32.xlu0 %v1246
        %v1248 = vpop.xlane.xlu0 %1247
        %v1249 = vmax.f32 %v1082, %v1083
        %1250 = vmax.xlane.f32.xlu0 %v1249
        %v1251 = vpop.xlane.xlu0 %1250
        %v1252 = vmax.f32 %v1084, %v1085
        %1253 = vmax.xlane.f32.xlu0 %v1252
        %v1254 = vpop.xlane.xlu0 %1253
        %v1255 = vmax.f32 %v1086, %v1087
        %1256 = vmax.xlane.f32.xlu0 %v1255
        %v1257 = vpop.xlane.xlu0 %1256
        %v1258 = vmax.f32 %v1088, %v1089
        %1259 = vmax.xlane.f32.xlu0 %v1258
        %v1260 = vpop.xlane.xlu0 %1259
        %v1261 = vmax.f32 %v1090, %v1091
        %1262 = vmax.xlane.f32.xlu0 %v1261
        %v1263 = vpop.xlane.xlu0 %1262
        %v1264 = vmax.f32 %v1092, %v1093
        %1265 = vmax.xlane.f32.xlu0 %v1264
        %v1266 = vpop.xlane.xlu0 %1265
        %v1267 = vmax.f32 %v1094, %v1095
        %1268 = vmax.xlane.f32.xlu0 %v1267
        %v1269 = vpop.xlane.xlu0 %1268
        %v1270 = vmax.f32 %v1096, %v1097
        %1271 = vmax.xlane.f32.xlu0 %v1270
        %v1272 = vpop.xlane.xlu0 %1271
        %v1273 = vmax.f32 %v1098, %v1099
        %1274 = vmax.xlane.f32.xlu0 %v1273
        %v1275 = vpop.xlane.xlu0 %1274
        %v1276 = vmax.f32 %v1100, %v1101
        %1277 = vmax.xlane.f32.xlu0 %v1276
        %v1278 = vpop.xlane.xlu0 %1277
        %v1279 = vmax.f32 %v1102, %v1103
        %1280 = vmax.xlane.f32.xlu0 %v1279
        %v1281 = vpop.xlane.xlu0 %1280
        %v1282 = vmax.f32 %v1104, %v1105
        %1283 = vmax.xlane.f32.xlu0 %v1282
        %v1284 = vpop.xlane.xlu0 %1283
        %v1285 = vmax.f32 %v1106, %v1107
        %1286 = vmax.xlane.f32.xlu0 %v1285
        %v1287 = vpop.xlane.xlu0 %1286
        %v1288 = vmax.f32 %v1108, %v1109
        %1289 = vmax.xlane.f32.xlu0 %v1288
        %v1290 = vpop.xlane.xlu0 %1289
        %v1291 = vmax.f32 %v1110, %v1111
        %1292 = vmax.xlane.f32.xlu0 %v1291
        %v1293 = vpop.xlane.xlu0 %1292
        %v1294 = vmax.f32 %v1112, %v1113
        %1295 = vmax.xlane.f32.xlu0 %v1294
        %v1296 = vpop.xlane.xlu0 %1295
        %v1297 = vmax.f32 %v1114, %v1115
        %1298 = vmax.xlane.f32.xlu0 %v1297
        %v1299 = vpop.xlane.xlu0 %1298
        %v1300 = vmax.f32 %v1116, %v1117
        %1301 = vmax.xlane.f32.xlu0 %v1300
        %v1302 = vpop.xlane.xlu0 %1301
        %v1303 = vmax.f32 %v1118, %v1119
        %1304 = vmax.xlane.f32.xlu0 %v1303
        %v1305 = vpop.xlane.xlu0 %1304
        %v1306 = vmax.f32 %v1120, %v1121
        %1307 = vmax.xlane.f32.xlu0 %v1306
        %v1308 = vpop.xlane.xlu0 %1307
        %v1309 = vmax.f32 %v1122, %v1123
        %1310 = vmax.xlane.f32.xlu0 %v1309
        %v1311 = vpop.xlane.xlu0 %1310
        %v1312 = vmax.f32 %v1124, %v1125
        %1313 = vmax.xlane.f32.xlu0 %v1312
        %v1314 = vpop.xlane.xlu0 %1313
        %v1315 = vmax.f32 %v1126, %v1127
        %1316 = vmax.xlane.f32.xlu0 %v1315
        %v1317 = vpop.xlane.xlu0 %1316
        %v1318 = vmax.f32 %v1128, %v1129
        %1319 = vmax.xlane.f32.xlu0 %v1318
        %v1320 = vpop.xlane.xlu0 %1319
        %v1321 = vmax.f32 %v1130, %v1131
        %1322 = vmax.xlane.f32.xlu0 %v1321
        %v1323 = vpop.xlane.xlu0 %1322
        %vm1324 = vcmp.ge.f32.partialorder %v1068, %v1230
        %vm1325 = vcmp.ge.f32.partialorder %v1069, %v1230
        %vm1326 = vcmp.ge.f32.partialorder %v1070, %v1233
        %vm1327 = vcmp.ge.f32.partialorder %v1071, %v1233
        %vm1328 = vcmp.ge.f32.partialorder %v1072, %v1236
        %vm1329 = vcmp.ge.f32.partialorder %v1073, %v1236
        %vm1330 = vcmp.ge.f32.partialorder %v1074, %v1239
        %vm1331 = vcmp.ge.f32.partialorder %v1075, %v1239
        %vm1332 = vcmp.ge.f32.partialorder %v1076, %v1242
        %vm1333 = vcmp.ge.f32.partialorder %v1077, %v1242
        %vm1334 = vcmp.ge.f32.partialorder %v1078, %v1245
        %vm1335 = vcmp.ge.f32.partialorder %v1079, %v1245
        %vm1336 = vcmp.ge.f32.partialorder %v1080, %v1248
        %vm1337 = vcmp.ge.f32.partialorder %v1081, %v1248
        %vm1338 = vcmp.ge.f32.partialorder %v1082, %v1251
        %vm1339 = vcmp.ge.f32.partialorder %v1083, %v1251
        %vm1340 = vcmp.ge.f32.partialorder %v1084, %v1254
        %vm1341 = vcmp.ge.f32.partialorder %v1085, %v1254
        %vm1342 = vcmp.ge.f32.partialorder %v1086, %v1257
        %vm1343 = vcmp.ge.f32.partialorder %v1087, %v1257
        %vm1344 = vcmp.ge.f32.partialorder %v1088, %v1260
        %vm1345 = vcmp.ge.f32.partialorder %v1089, %v1260
        %vm1346 = vcmp.ge.f32.partialorder %v1090, %v1263
        %vm1347 = vcmp.ge.f32.partialorder %v1091, %v1263
        %vm1348 = vcmp.ge.f32.partialorder %v1092, %v1266
        %vm1349 = vcmp.ge.f32.partialorder %v1093, %v1266
        %vm1350 = vcmp.ge.f32.partialorder %v1094, %v1269
        %vm1351 = vcmp.ge.f32.partialorder %v1095, %v1269
        %vm1352 = vcmp.ge.f32.partialorder %v1096, %v1272
        %vm1353 = vcmp.ge.f32.partialorder %v1097, %v1272
        %vm1354 = vcmp.ge.f32.partialorder %v1098, %v1275
        %vm1355 = vcmp.ge.f32.partialorder %v1099, %v1275
        %vm1356 = vcmp.ge.f32.partialorder %v1100, %v1278
        %vm1357 = vcmp.ge.f32.partialorder %v1101, %v1278
        %vm1358 = vcmp.ge.f32.partialorder %v1102, %v1281
        %vm1359 = vcmp.ge.f32.partialorder %v1103, %v1281
        %vm1360 = vcmp.ge.f32.partialorder %v1104, %v1284
        %vm1361 = vcmp.ge.f32.partialorder %v1105, %v1284
        %vm1362 = vcmp.ge.f32.partialorder %v1106, %v1287
        %vm1363 = vcmp.ge.f32.partialorder %v1107, %v1287
        %vm1364 = vcmp.ge.f32.partialorder %v1108, %v1290
        %vm1365 = vcmp.ge.f32.partialorder %v1109, %v1290
        %vm1366 = vcmp.ge.f32.partialorder %v1110, %v1293
        %vm1367 = vcmp.ge.f32.partialorder %v1111, %v1293
        %vm1368 = vcmp.ge.f32.partialorder %v1112, %v1296
        %vm1369 = vcmp.ge.f32.partialorder %v1113, %v1296
        %vm1370 = vcmp.ge.f32.partialorder %v1114, %v1299
        %vm1371 = vcmp.ge.f32.partialorder %v1115, %v1299
        %vm1372 = vcmp.ge.f32.partialorder %v1116, %v1302
        %vm1373 = vcmp.ge.f32.partialorder %v1117, %v1302
        %vm1374 = vcmp.ge.f32.partialorder %v1118, %v1305
        %vm1375 = vcmp.ge.f32.partialorder %v1119, %v1305
        %vm1376 = vcmp.ge.f32.partialorder %v1120, %v1308
        %vm1377 = vcmp.ge.f32.partialorder %v1121, %v1308
        %vm1378 = vcmp.ge.f32.partialorder %v1122, %v1311
        %vm1379 = vcmp.ge.f32.partialorder %v1123, %v1311
        %vm1380 = vcmp.ge.f32.partialorder %v1124, %v1314
        %vm1381 = vcmp.ge.f32.partialorder %v1125, %v1314
        %vm1382 = vcmp.ge.f32.partialorder %v1126, %v1317
        %vm1383 = vcmp.ge.f32.partialorder %v1127, %v1317
        %vm1384 = vcmp.ge.f32.partialorder %v1128, %v1320
        %vm1385 = vcmp.ge.f32.partialorder %v1129, %v1320
        %vm1386 = vcmp.ge.f32.partialorder %v1130, %v1323
        %vm1387 = vcmp.ge.f32.partialorder %v1131, %v1323
        %v1388 = vsel %vm1324, 1.0, 0.0
        %v1389 = vsel %vm1325, 1.0, 0.0
        %v1390 = vsel %vm1326, 1.0, 0.0
        %v1391 = vsel %vm1327, 1.0, 0.0
        %v1392 = vsel %vm1328, 1.0, 0.0
        %v1393 = vsel %vm1329, 1.0, 0.0
        %v1394 = vsel %vm1330, 1.0, 0.0
        %v1395 = vsel %vm1331, 1.0, 0.0
        %v1396 = vsel %vm1332, 1.0, 0.0
        %v1397 = vsel %vm1333, 1.0, 0.0
        %v1398 = vsel %vm1334, 1.0, 0.0
        %v1399 = vsel %vm1335, 1.0, 0.0
        %v1400 = vsel %vm1336, 1.0, 0.0
        %v1401 = vsel %vm1337, 1.0, 0.0
        %v1402 = vsel %vm1338, 1.0, 0.0
        %v1403 = vsel %vm1339, 1.0, 0.0
        %v1404 = vsel %vm1340, 1.0, 0.0
        %v1405 = vsel %vm1341, 1.0, 0.0
        %v1406 = vsel %vm1342, 1.0, 0.0
        %v1407 = vsel %vm1343, 1.0, 0.0
        %v1408 = vsel %vm1344, 1.0, 0.0
        %v1409 = vsel %vm1345, 1.0, 0.0
        %v1410 = vsel %vm1346, 1.0, 0.0
        %v1411 = vsel %vm1347, 1.0, 0.0
        %v1412 = vsel %vm1348, 1.0, 0.0
        %v1413 = vsel %vm1349, 1.0, 0.0
        %v1414 = vsel %vm1350, 1.0, 0.0
        %v1415 = vsel %vm1351, 1.0, 0.0
        %v1416 = vsel %vm1352, 1.0, 0.0
        %v1417 = vsel %vm1353, 1.0, 0.0
        %v1418 = vsel %vm1354, 1.0, 0.0
        %v1419 = vsel %vm1355, 1.0, 0.0
        %v1420 = vsel %vm1356, 1.0, 0.0
        %v1421 = vsel %vm1357, 1.0, 0.0
        %v1422 = vsel %vm1358, 1.0, 0.0
        %v1423 = vsel %vm1359, 1.0, 0.0
        %v1424 = vsel %vm1360, 1.0, 0.0
        %v1425 = vsel %vm1361, 1.0, 0.0
        %v1426 = vsel %vm1362, 1.0, 0.0
        %v1427 = vsel %vm1363, 1.0, 0.0
        %v1428 = vsel %vm1364, 1.0, 0.0
        %v1429 = vsel %vm1365, 1.0, 0.0
        %v1430 = vsel %vm1366, 1.0, 0.0
        %v1431 = vsel %vm1367, 1.0, 0.0
        %v1432 = vsel %vm1368, 1.0, 0.0
        %v1433 = vsel %vm1369, 1.0, 0.0
        %v1434 = vsel %vm1370, 1.0, 0.0
        %v1435 = vsel %vm1371, 1.0, 0.0
        %v1436 = vsel %vm1372, 1.0, 0.0
        %v1437 = vsel %vm1373, 1.0, 0.0
        %v1438 = vsel %vm1374, 1.0, 0.0
        %v1439 = vsel %vm1375, 1.0, 0.0
        %v1440 = vsel %vm1376, 1.0, 0.0
        %v1441 = vsel %vm1377, 1.0, 0.0
        %v1442 = vsel %vm1378, 1.0, 0.0
        %v1443 = vsel %vm1379, 1.0, 0.0
        %v1444 = vsel %vm1380, 1.0, 0.0
        %v1445 = vsel %vm1381, 1.0, 0.0
        %v1446 = vsel %vm1382, 1.0, 0.0
        %v1447 = vsel %vm1383, 1.0, 0.0
        %v1448 = vsel %vm1384, 1.0, 0.0
        %v1449 = vsel %vm1385, 1.0, 0.0
        %v1450 = vsel %vm1386, 1.0, 0.0
        %v1451 = vsel %vm1387, 1.0, 0.0
        %v1452 = vadd.f32 %v1388, %v1389
        %1453 = vadd.xlane.f32.xlu0 %v1452
        %v1454 = vpop.xlane.xlu0 %1453
        %v1455 = vadd.f32 %v1390, %v1391
        %1456 = vadd.xlane.f32.xlu0 %v1455
        %v1457 = vpop.xlane.xlu0 %1456
        %v1458 = vadd.f32 %v1392, %v1393
        %1459 = vadd.xlane.f32.xlu0 %v1458
        %v1460 = vpop.xlane.xlu0 %1459
        %v1461 = vadd.f32 %v1394, %v1395
        %1462 = vadd.xlane.f32.xlu0 %v1461
        %v1463 = vpop.xlane.xlu0 %1462
        %v1464 = vadd.f32 %v1396, %v1397
        %1465 = vadd.xlane.f32.xlu0 %v1464
        %v1466 = vpop.xlane.xlu0 %1465
        %v1467 = vadd.f32 %v1398, %v1399
        %1468 = vadd.xlane.f32.xlu0 %v1467
        %v1469 = vpop.xlane.xlu0 %1468
        %v1470 = vadd.f32 %v1400, %v1401
        %1471 = vadd.xlane.f32.xlu0 %v1470
        %v1472 = vpop.xlane.xlu0 %1471
        %v1473 = vadd.f32 %v1402, %v1403
        %1474 = vadd.xlane.f32.xlu0 %v1473
        %v1475 = vpop.xlane.xlu0 %1474
        %v1476 = vadd.f32 %v1404, %v1405
        %1477 = vadd.xlane.f32.xlu0 %v1476
        %v1478 = vpop.xlane.xlu0 %1477
        %v1479 = vadd.f32 %v1406, %v1407
        %1480 = vadd.xlane.f32.xlu0 %v1479
        %v1481 = vpop.xlane.xlu0 %1480
        %v1482 = vadd.f32 %v1408, %v1409
        %1483 = vadd.xlane.f32.xlu0 %v1482
        %v1484 = vpop.xlane.xlu0 %1483
        %v1485 = vadd.f32 %v1410, %v1411
        %1486 = vadd.xlane.f32.xlu0 %v1485
        %v1487 = vpop.xlane.xlu0 %1486
        %v1488 = vadd.f32 %v1412, %v1413
        %1489 = vadd.xlane.f32.xlu0 %v1488
        %v1490 = vpop.xlane.xlu0 %1489
        %v1491 = vadd.f32 %v1414, %v1415
        %1492 = vadd.xlane.f32.xlu0 %v1491
        %v1493 = vpop.xlane.xlu0 %1492
        %v1494 = vadd.f32 %v1416, %v1417
        %1495 = vadd.xlane.f32.xlu0 %v1494
        %v1496 = vpop.xlane.xlu0 %1495
        %v1497 = vadd.f32 %v1418, %v1419
        %1498 = vadd.xlane.f32.xlu0 %v1497
        %v1499 = vpop.xlane.xlu0 %1498
        %v1500 = vadd.f32 %v1420, %v1421
        %1501 = vadd.xlane.f32.xlu0 %v1500
        %v1502 = vpop.xlane.xlu0 %1501
        %v1503 = vadd.f32 %v1422, %v1423
        %1504 = vadd.xlane.f32.xlu0 %v1503
        %v1505 = vpop.xlane.xlu0 %1504
        %v1506 = vadd.f32 %v1424, %v1425
        %1507 = vadd.xlane.f32.xlu0 %v1506
        %v1508 = vpop.xlane.xlu0 %1507
        %v1509 = vadd.f32 %v1426, %v1427
        %1510 = vadd.xlane.f32.xlu0 %v1509
        %v1511 = vpop.xlane.xlu0 %1510
        %v1512 = vadd.f32 %v1428, %v1429
        %1513 = vadd.xlane.f32.xlu0 %v1512
        %v1514 = vpop.xlane.xlu0 %1513
        %v1515 = vadd.f32 %v1430, %v1431
        %1516 = vadd.xlane.f32.xlu0 %v1515
        %v1517 = vpop.xlane.xlu0 %1516
        %v1518 = vadd.f32 %v1432, %v1433
        %1519 = vadd.xlane.f32.xlu0 %v1518
        %v1520 = vpop.xlane.xlu0 %1519
        %v1521 = vadd.f32 %v1434, %v1435
        %1522 = vadd.xlane.f32.xlu0 %v1521
        %v1523 = vpop.xlane.xlu0 %1522
        %v1524 = vadd.f32 %v1436, %v1437
        %1525 = vadd.xlane.f32.xlu0 %v1524
        %v1526 = vpop.xlane.xlu0 %1525
        %v1527 = vadd.f32 %v1438, %v1439
        %1528 = vadd.xlane.f32.xlu0 %v1527
        %v1529 = vpop.xlane.xlu0 %1528
        %v1530 = vadd.f32 %v1440, %v1441
        %1531 = vadd.xlane.f32.xlu0 %v1530
        %v1532 = vpop.xlane.xlu0 %1531
        %v1533 = vadd.f32 %v1442, %v1443
        %1534 = vadd.xlane.f32.xlu0 %v1533
        %v1535 = vpop.xlane.xlu0 %1534
        %v1536 = vadd.f32 %v1444, %v1445
        %1537 = vadd.xlane.f32.xlu0 %v1536
        %v1538 = vpop.xlane.xlu0 %1537
        %v1539 = vadd.f32 %v1446, %v1447
        %1540 = vadd.xlane.f32.xlu0 %v1539
        %v1541 = vpop.xlane.xlu0 %1540
        %v1542 = vadd.f32 %v1448, %v1449
        %1543 = vadd.xlane.f32.xlu0 %v1542
        %v1544 = vpop.xlane.xlu0 %1543
        %v1545 = vadd.f32 %v1450, %v1451
        %1546 = vadd.xlane.f32.xlu0 %v1545
        %v1547 = vpop.xlane.xlu0 %1546
        %vm1548 = vcmp.ge.f32.partialorder %v1454, 4.0
        %vm1549 = vcmp.ge.f32.partialorder %v1457, 4.0
        %vm1550 = vcmp.ge.f32.partialorder %v1460, 4.0
        %vm1551 = vcmp.ge.f32.partialorder %v1463, 4.0
        %vm1552 = vcmp.ge.f32.partialorder %v1466, 4.0
        %vm1553 = vcmp.ge.f32.partialorder %v1469, 4.0
        %vm1554 = vcmp.ge.f32.partialorder %v1472, 4.0
        %vm1555 = vcmp.ge.f32.partialorder %v1475, 4.0
        %vm1556 = vcmp.ge.f32.partialorder %v1478, 4.0
        %vm1557 = vcmp.ge.f32.partialorder %v1481, 4.0
        %vm1558 = vcmp.ge.f32.partialorder %v1484, 4.0
        %vm1559 = vcmp.ge.f32.partialorder %v1487, 4.0
        %vm1560 = vcmp.ge.f32.partialorder %v1490, 4.0
        %vm1561 = vcmp.ge.f32.partialorder %v1493, 4.0
        %vm1562 = vcmp.ge.f32.partialorder %v1496, 4.0
        %vm1563 = vcmp.ge.f32.partialorder %v1499, 4.0
        %vm1564 = vcmp.ge.f32.partialorder %v1502, 4.0
        %vm1565 = vcmp.ge.f32.partialorder %v1505, 4.0
        %vm1566 = vcmp.ge.f32.partialorder %v1508, 4.0
        %vm1567 = vcmp.ge.f32.partialorder %v1511, 4.0
        %vm1568 = vcmp.ge.f32.partialorder %v1514, 4.0
        %vm1569 = vcmp.ge.f32.partialorder %v1517, 4.0
        %vm1570 = vcmp.ge.f32.partialorder %v1520, 4.0
        %vm1571 = vcmp.ge.f32.partialorder %v1523, 4.0
        %vm1572 = vcmp.ge.f32.partialorder %v1526, 4.0
        %vm1573 = vcmp.ge.f32.partialorder %v1529, 4.0
        %vm1574 = vcmp.ge.f32.partialorder %v1532, 4.0
        %vm1575 = vcmp.ge.f32.partialorder %v1535, 4.0
        %vm1576 = vcmp.ge.f32.partialorder %v1538, 4.0
        %vm1577 = vcmp.ge.f32.partialorder %v1541, 4.0
        %vm1578 = vcmp.ge.f32.partialorder %v1544, 4.0
        %vm1579 = vcmp.ge.f32.partialorder %v1547, 4.0
        %v1580 = vsel %vm1548, %v1230, 0.0
        %v1581 = vsel %vm1549, %v1233, 0.0
        %v1582 = vsel %vm1550, %v1236, 0.0
        %v1583 = vsel %vm1551, %v1239, 0.0
        %v1584 = vsel %vm1552, %v1242, 0.0
        %v1585 = vsel %vm1553, %v1245, 0.0
        %v1586 = vsel %vm1554, %v1248, 0.0
        %v1587 = vsel %vm1555, %v1251, 0.0
        %v1588 = vsel %vm1556, %v1254, 0.0
        %v1589 = vsel %vm1557, %v1257, 0.0
        %v1590 = vsel %vm1558, %v1260, 0.0
        %v1591 = vsel %vm1559, %v1263, 0.0
        %v1592 = vsel %vm1560, %v1266, 0.0
        %v1593 = vsel %vm1561, %v1269, 0.0
        %v1594 = vsel %vm1562, %v1272, 0.0
        %v1595 = vsel %vm1563, %v1275, 0.0
        %v1596 = vsel %vm1564, %v1278, 0.0
        %v1597 = vsel %vm1565, %v1281, 0.0
        %v1598 = vsel %vm1566, %v1284, 0.0
        %v1599 = vsel %vm1567, %v1287, 0.0
        %v1600 = vsel %vm1568, %v1290, 0.0
        %v1601 = vsel %vm1569, %v1293, 0.0
        %v1602 = vsel %vm1570, %v1296, 0.0
        %v1603 = vsel %vm1571, %v1299, 0.0
        %v1604 = vsel %vm1572, %v1302, 0.0
        %v1605 = vsel %vm1573, %v1305, 0.0
        %v1606 = vsel %vm1574, %v1308, 0.0
        %v1607 = vsel %vm1575, %v1311, 0.0
        %v1608 = vsel %vm1576, %v1314, 0.0
        %v1609 = vsel %vm1577, %v1317, 0.0
        %v1610 = vsel %vm1578, %v1320, 0.0
        %v1611 = vsel %vm1579, %v1323, 0.0
        %vm1612 = vcmp.lt.f32.partialorder %v1068, %v1230
        %vm1613 = vcmp.lt.f32.partialorder %v1069, %v1230
        %vm1614 = vcmp.lt.f32.partialorder %v1070, %v1233
        %vm1615 = vcmp.lt.f32.partialorder %v1071, %v1233
        %vm1616 = vcmp.lt.f32.partialorder %v1072, %v1236
        %vm1617 = vcmp.lt.f32.partialorder %v1073, %v1236
        %vm1618 = vcmp.lt.f32.partialorder %v1074, %v1239
        %vm1619 = vcmp.lt.f32.partialorder %v1075, %v1239
        %vm1620 = vcmp.lt.f32.partialorder %v1076, %v1242
        %vm1621 = vcmp.lt.f32.partialorder %v1077, %v1242
        %vm1622 = vcmp.lt.f32.partialorder %v1078, %v1245
        %vm1623 = vcmp.lt.f32.partialorder %v1079, %v1245
        %vm1624 = vcmp.lt.f32.partialorder %v1080, %v1248
        %vm1625 = vcmp.lt.f32.partialorder %v1081, %v1248
        %vm1626 = vcmp.lt.f32.partialorder %v1082, %v1251
        %vm1627 = vcmp.lt.f32.partialorder %v1083, %v1251
        %vm1628 = vcmp.lt.f32.partialorder %v1084, %v1254
        %vm1629 = vcmp.lt.f32.partialorder %v1085, %v1254
        %vm1630 = vcmp.lt.f32.partialorder %v1086, %v1257
        %vm1631 = vcmp.lt.f32.partialorder %v1087, %v1257
        %vm1632 = vcmp.lt.f32.partialorder %v1088, %v1260
        %vm1633 = vcmp.lt.f32.partialorder %v1089, %v1260
        %vm1634 = vcmp.lt.f32.partialorder %v1090, %v1263
        %vm1635 = vcmp.lt.f32.partialorder %v1091, %v1263
        %vm1636 = vcmp.lt.f32.partialorder %v1092, %v1266
        %vm1637 = vcmp.lt.f32.partialorder %v1093, %v1266
        %vm1638 = vcmp.lt.f32.partialorder %v1094, %v1269
        %vm1639 = vcmp.lt.f32.partialorder %v1095, %v1269
        %vm1640 = vcmp.lt.f32.partialorder %v1096, %v1272
        %vm1641 = vcmp.lt.f32.partialorder %v1097, %v1272
        %vm1642 = vcmp.lt.f32.partialorder %v1098, %v1275
        %vm1643 = vcmp.lt.f32.partialorder %v1099, %v1275
        %vm1644 = vcmp.lt.f32.partialorder %v1100, %v1278
        %vm1645 = vcmp.lt.f32.partialorder %v1101, %v1278
        %vm1646 = vcmp.lt.f32.partialorder %v1102, %v1281
        %vm1647 = vcmp.lt.f32.partialorder %v1103, %v1281
        %vm1648 = vcmp.lt.f32.partialorder %v1104, %v1284
        %vm1649 = vcmp.lt.f32.partialorder %v1105, %v1284
        %vm1650 = vcmp.lt.f32.partialorder %v1106, %v1287
        %vm1651 = vcmp.lt.f32.partialorder %v1107, %v1287
        %vm1652 = vcmp.lt.f32.partialorder %v1108, %v1290
        %vm1653 = vcmp.lt.f32.partialorder %v1109, %v1290
        %vm1654 = vcmp.lt.f32.partialorder %v1110, %v1293
        %vm1655 = vcmp.lt.f32.partialorder %v1111, %v1293
        %vm1656 = vcmp.lt.f32.partialorder %v1112, %v1296
        %vm1657 = vcmp.lt.f32.partialorder %v1113, %v1296
        %vm1658 = vcmp.lt.f32.partialorder %v1114, %v1299
        %vm1659 = vcmp.lt.f32.partialorder %v1115, %v1299
        %vm1660 = vcmp.lt.f32.partialorder %v1116, %v1302
        %vm1661 = vcmp.lt.f32.partialorder %v1117, %v1302
        %vm1662 = vcmp.lt.f32.partialorder %v1118, %v1305
        %vm1663 = vcmp.lt.f32.partialorder %v1119, %v1305
        %vm1664 = vcmp.lt.f32.partialorder %v1120, %v1308
        %vm1665 = vcmp.lt.f32.partialorder %v1121, %v1308
        %vm1666 = vcmp.lt.f32.partialorder %v1122, %v1311
        %vm1667 = vcmp.lt.f32.partialorder %v1123, %v1311
        %vm1668 = vcmp.lt.f32.partialorder %v1124, %v1314
        %vm1669 = vcmp.lt.f32.partialorder %v1125, %v1314
        %vm1670 = vcmp.lt.f32.partialorder %v1126, %v1317
        %vm1671 = vcmp.lt.f32.partialorder %v1127, %v1317
        %vm1672 = vcmp.lt.f32.partialorder %v1128, %v1320
        %vm1673 = vcmp.lt.f32.partialorder %v1129, %v1320
        %vm1674 = vcmp.lt.f32.partialorder %v1130, %v1323
        %vm1675 = vcmp.lt.f32.partialorder %v1131, %v1323
        %v1676 = vsel %vm1612, %v1068, -inf
        %v1677 = vsel %vm1613, %v1069, -inf
        %v1678 = vsel %vm1614, %v1070, -inf
        %v1679 = vsel %vm1615, %v1071, -inf
        %v1680 = vsel %vm1616, %v1072, -inf
        %v1681 = vsel %vm1617, %v1073, -inf
        %v1682 = vsel %vm1618, %v1074, -inf
        %v1683 = vsel %vm1619, %v1075, -inf
        %v1684 = vsel %vm1620, %v1076, -inf
        %v1685 = vsel %vm1621, %v1077, -inf
        %v1686 = vsel %vm1622, %v1078, -inf
        %v1687 = vsel %vm1623, %v1079, -inf
        %v1688 = vsel %vm1624, %v1080, -inf
        %v1689 = vsel %vm1625, %v1081, -inf
        %v1690 = vsel %vm1626, %v1082, -inf
        %v1691 = vsel %vm1627, %v1083, -inf
        %v1692 = vsel %vm1628, %v1084, -inf
        %v1693 = vsel %vm1629, %v1085, -inf
        %v1694 = vsel %vm1630, %v1086, -inf
        %v1695 = vsel %vm1631, %v1087, -inf
        %v1696 = vsel %vm1632, %v1088, -inf
        %v1697 = vsel %vm1633, %v1089, -inf
        %v1698 = vsel %vm1634, %v1090, -inf
        %v1699 = vsel %vm1635, %v1091, -inf
        %v1700 = vsel %vm1636, %v1092, -inf
        %v1701 = vsel %vm1637, %v1093, -inf
        %v1702 = vsel %vm1638, %v1094, -inf
        %v1703 = vsel %vm1639, %v1095, -inf
        %v1704 = vsel %vm1640, %v1096, -inf
        %v1705 = vsel %vm1641, %v1097, -inf
        %v1706 = vsel %vm1642, %v1098, -inf
        %v1707 = vsel %vm1643, %v1099, -inf
        %v1708 = vsel %vm1644, %v1100, -inf
        %v1709 = vsel %vm1645, %v1101, -inf
        %v1710 = vsel %vm1646, %v1102, -inf
        %v1711 = vsel %vm1647, %v1103, -inf
        %v1712 = vsel %vm1648, %v1104, -inf
        %v1713 = vsel %vm1649, %v1105, -inf
        %v1714 = vsel %vm1650, %v1106, -inf
        %v1715 = vsel %vm1651, %v1107, -inf
        %v1716 = vsel %vm1652, %v1108, -inf
        %v1717 = vsel %vm1653, %v1109, -inf
        %v1718 = vsel %vm1654, %v1110, -inf
        %v1719 = vsel %vm1655, %v1111, -inf
        %v1720 = vsel %vm1656, %v1112, -inf
        %v1721 = vsel %vm1657, %v1113, -inf
        %v1722 = vsel %vm1658, %v1114, -inf
        %v1723 = vsel %vm1659, %v1115, -inf
        %v1724 = vsel %vm1660, %v1116, -inf
        %v1725 = vsel %vm1661, %v1117, -inf
        %v1726 = vsel %vm1662, %v1118, -inf
        %v1727 = vsel %vm1663, %v1119, -inf
        %v1728 = vsel %vm1664, %v1120, -inf
        %v1729 = vsel %vm1665, %v1121, -inf
        %v1730 = vsel %vm1666, %v1122, -inf
        %v1731 = vsel %vm1667, %v1123, -inf
        %v1732 = vsel %vm1668, %v1124, -inf
        %v1733 = vsel %vm1669, %v1125, -inf
        %v1734 = vsel %vm1670, %v1126, -inf
        %v1735 = vsel %vm1671, %v1127, -inf
        %v1736 = vsel %vm1672, %v1128, -inf
        %v1737 = vsel %vm1673, %v1129, -inf
        %v1738 = vsel %vm1674, %v1130, -inf
        %v1739 = vsel %vm1675, %v1131, -inf
        %v1740 = vmax.f32 %v1676, %v1677
        %1741 = vmax.xlane.f32.xlu0 %v1740
        %v1742 = vpop.xlane.xlu0 %1741
        %v1743 = vmax.f32 %v1678, %v1679
        %1744 = vmax.xlane.f32.xlu0 %v1743
        %v1745 = vpop.xlane.xlu0 %1744
        %v1746 = vmax.f32 %v1680, %v1681
        %1747 = vmax.xlane.f32.xlu0 %v1746
        %v1748 = vpop.xlane.xlu0 %1747
        %v1749 = vmax.f32 %v1682, %v1683
        %1750 = vmax.xlane.f32.xlu0 %v1749
        %v1751 = vpop.xlane.xlu0 %1750
        %v1752 = vmax.f32 %v1684, %v1685
        %1753 = vmax.xlane.f32.xlu0 %v1752
        %v1754 = vpop.xlane.xlu0 %1753
        %v1755 = vmax.f32 %v1686, %v1687
        %1756 = vmax.xlane.f32.xlu0 %v1755
        %v1757 = vpop.xlane.xlu0 %1756
        %v1758 = vmax.f32 %v1688, %v1689
        %1759 = vmax.xlane.f32.xlu0 %v1758
        %v1760 = vpop.xlane.xlu0 %1759
        %v1761 = vmax.f32 %v1690, %v1691
        %1762 = vmax.xlane.f32.xlu0 %v1761
        %v1763 = vpop.xlane.xlu0 %1762
        %v1764 = vmax.f32 %v1692, %v1693
        %1765 = vmax.xlane.f32.xlu0 %v1764
        %v1766 = vpop.xlane.xlu0 %1765
        %v1767 = vmax.f32 %v1694, %v1695
        %1768 = vmax.xlane.f32.xlu0 %v1767
        %v1769 = vpop.xlane.xlu0 %1768
        %v1770 = vmax.f32 %v1696, %v1697
        %1771 = vmax.xlane.f32.xlu0 %v1770
        %v1772 = vpop.xlane.xlu0 %1771
        %v1773 = vmax.f32 %v1698, %v1699
        %1774 = vmax.xlane.f32.xlu0 %v1773
        %v1775 = vpop.xlane.xlu0 %1774
        %v1776 = vmax.f32 %v1700, %v1701
        %1777 = vmax.xlane.f32.xlu0 %v1776
        %v1778 = vpop.xlane.xlu0 %1777
        %v1779 = vmax.f32 %v1702, %v1703
        %1780 = vmax.xlane.f32.xlu0 %v1779
        %v1781 = vpop.xlane.xlu0 %1780
        %v1782 = vmax.f32 %v1704, %v1705
        %1783 = vmax.xlane.f32.xlu0 %v1782
        %v1784 = vpop.xlane.xlu0 %1783
        %v1785 = vmax.f32 %v1706, %v1707
        %1786 = vmax.xlane.f32.xlu0 %v1785
        %v1787 = vpop.xlane.xlu0 %1786
        %v1788 = vmax.f32 %v1708, %v1709
        %1789 = vmax.xlane.f32.xlu0 %v1788
        %v1790 = vpop.xlane.xlu0 %1789
        %v1791 = vmax.f32 %v1710, %v1711
        %1792 = vmax.xlane.f32.xlu0 %v1791
        %v1793 = vpop.xlane.xlu0 %1792
        %v1794 = vmax.f32 %v1712, %v1713
        %1795 = vmax.xlane.f32.xlu0 %v1794
        %v1796 = vpop.xlane.xlu0 %1795
        %v1797 = vmax.f32 %v1714, %v1715
        %1798 = vmax.xlane.f32.xlu0 %v1797
        %v1799 = vpop.xlane.xlu0 %1798
        %v1800 = vmax.f32 %v1716, %v1717
        %1801 = vmax.xlane.f32.xlu0 %v1800
        %v1802 = vpop.xlane.xlu0 %1801
        %v1803 = vmax.f32 %v1718, %v1719
        %1804 = vmax.xlane.f32.xlu0 %v1803
        %v1805 = vpop.xlane.xlu0 %1804
        %v1806 = vmax.f32 %v1720, %v1721
        %1807 = vmax.xlane.f32.xlu0 %v1806
        %v1808 = vpop.xlane.xlu0 %1807
        %v1809 = vmax.f32 %v1722, %v1723
        %1810 = vmax.xlane.f32.xlu0 %v1809
        %v1811 = vpop.xlane.xlu0 %1810
        %v1812 = vmax.f32 %v1724, %v1725
        %1813 = vmax.xlane.f32.xlu0 %v1812
        %v1814 = vpop.xlane.xlu0 %1813
        %v1815 = vmax.f32 %v1726, %v1727
        %1816 = vmax.xlane.f32.xlu0 %v1815
        %v1817 = vpop.xlane.xlu0 %1816
        %v1818 = vmax.f32 %v1728, %v1729
        %1819 = vmax.xlane.f32.xlu0 %v1818
        %v1820 = vpop.xlane.xlu0 %1819
        %v1821 = vmax.f32 %v1730, %v1731
        %1822 = vmax.xlane.f32.xlu0 %v1821
        %v1823 = vpop.xlane.xlu0 %1822
        %v1824 = vmax.f32 %v1732, %v1733
        %1825 = vmax.xlane.f32.xlu0 %v1824
        %v1826 = vpop.xlane.xlu0 %1825
        %v1827 = vmax.f32 %v1734, %v1735
        %1828 = vmax.xlane.f32.xlu0 %v1827
        %v1829 = vpop.xlane.xlu0 %1828
        %v1830 = vmax.f32 %v1736, %v1737
        %1831 = vmax.xlane.f32.xlu0 %v1830
        %v1832 = vpop.xlane.xlu0 %1831
        %v1833 = vmax.f32 %v1738, %v1739
        %1834 = vmax.xlane.f32.xlu0 %v1833
        %v1835 = vpop.xlane.xlu0 %1834
        %vm1836 = vcmp.ge.f32.partialorder %v1068, %v1742
        %vm1837 = vcmp.ge.f32.partialorder %v1069, %v1742
        %vm1838 = vcmp.ge.f32.partialorder %v1070, %v1745
        %vm1839 = vcmp.ge.f32.partialorder %v1071, %v1745
        %vm1840 = vcmp.ge.f32.partialorder %v1072, %v1748
        %vm1841 = vcmp.ge.f32.partialorder %v1073, %v1748
        %vm1842 = vcmp.ge.f32.partialorder %v1074, %v1751
        %vm1843 = vcmp.ge.f32.partialorder %v1075, %v1751
        %vm1844 = vcmp.ge.f32.partialorder %v1076, %v1754
        %vm1845 = vcmp.ge.f32.partialorder %v1077, %v1754
        %vm1846 = vcmp.ge.f32.partialorder %v1078, %v1757
        %vm1847 = vcmp.ge.f32.partialorder %v1079, %v1757
        %vm1848 = vcmp.ge.f32.partialorder %v1080, %v1760
        %vm1849 = vcmp.ge.f32.partialorder %v1081, %v1760
        %vm1850 = vcmp.ge.f32.partialorder %v1082, %v1763
        %vm1851 = vcmp.ge.f32.partialorder %v1083, %v1763
        %vm1852 = vcmp.ge.f32.partialorder %v1084, %v1766
        %vm1853 = vcmp.ge.f32.partialorder %v1085, %v1766
        %vm1854 = vcmp.ge.f32.partialorder %v1086, %v1769
        %vm1855 = vcmp.ge.f32.partialorder %v1087, %v1769
        %vm1856 = vcmp.ge.f32.partialorder %v1088, %v1772
        %vm1857 = vcmp.ge.f32.partialorder %v1089, %v1772
        %vm1858 = vcmp.ge.f32.partialorder %v1090, %v1775
        %vm1859 = vcmp.ge.f32.partialorder %v1091, %v1775
        %vm1860 = vcmp.ge.f32.partialorder %v1092, %v1778
        %vm1861 = vcmp.ge.f32.partialorder %v1093, %v1778
        %vm1862 = vcmp.ge.f32.partialorder %v1094, %v1781
        %vm1863 = vcmp.ge.f32.partialorder %v1095, %v1781
        %vm1864 = vcmp.ge.f32.partialorder %v1096, %v1784
        %vm1865 = vcmp.ge.f32.partialorder %v1097, %v1784
        %vm1866 = vcmp.ge.f32.partialorder %v1098, %v1787
        %vm1867 = vcmp.ge.f32.partialorder %v1099, %v1787
        %vm1868 = vcmp.ge.f32.partialorder %v1100, %v1790
        %vm1869 = vcmp.ge.f32.partialorder %v1101, %v1790
        %vm1870 = vcmp.ge.f32.partialorder %v1102, %v1793
        %vm1871 = vcmp.ge.f32.partialorder %v1103, %v1793
        %vm1872 = vcmp.ge.f32.partialorder %v1104, %v1796
        %vm1873 = vcmp.ge.f32.partialorder %v1105, %v1796
        %vm1874 = vcmp.ge.f32.partialorder %v1106, %v1799
        %vm1875 = vcmp.ge.f32.partialorder %v1107, %v1799
        %vm1876 = vcmp.ge.f32.partialorder %v1108, %v1802
        %vm1877 = vcmp.ge.f32.partialorder %v1109, %v1802
        %vm1878 = vcmp.ge.f32.partialorder %v1110, %v1805
        %vm1879 = vcmp.ge.f32.partialorder %v1111, %v1805
        %vm1880 = vcmp.ge.f32.partialorder %v1112, %v1808
        %vm1881 = vcmp.ge.f32.partialorder %v1113, %v1808
        %vm1882 = vcmp.ge.f32.partialorder %v1114, %v1811
        %vm1883 = vcmp.ge.f32.partialorder %v1115, %v1811
        %vm1884 = vcmp.ge.f32.partialorder %v1116, %v1814
        %vm1885 = vcmp.ge.f32.partialorder %v1117, %v1814
        %vm1886 = vcmp.ge.f32.partialorder %v1118, %v1817
        %vm1887 = vcmp.ge.f32.partialorder %v1119, %v1817
        %vm1888 = vcmp.ge.f32.partialorder %v1120, %v1820
        %vm1889 = vcmp.ge.f32.partialorder %v1121, %v1820
        %vm1890 = vcmp.ge.f32.partialorder %v1122, %v1823
        %vm1891 = vcmp.ge.f32.partialorder %v1123, %v1823
        %vm1892 = vcmp.ge.f32.partialorder %v1124, %v1826
        %vm1893 = vcmp.ge.f32.partialorder %v1125, %v1826
        %vm1894 = vcmp.ge.f32.partialorder %v1126, %v1829
        %vm1895 = vcmp.ge.f32.partialorder %v1127, %v1829
        %vm1896 = vcmp.ge.f32.partialorder %v1128, %v1832
        %vm1897 = vcmp.ge.f32.partialorder %v1129, %v1832
        %vm1898 = vcmp.ge.f32.partialorder %v1130, %v1835
        %vm1899 = vcmp.ge.f32.partialorder %v1131, %v1835
        %v1900 = vsel %vm1836, 1.0, 0.0
        %v1901 = vsel %vm1837, 1.0, 0.0
        %v1902 = vsel %vm1838, 1.0, 0.0
        %v1903 = vsel %vm1839, 1.0, 0.0
        %v1904 = vsel %vm1840, 1.0, 0.0
        %v1905 = vsel %vm1841, 1.0, 0.0
        %v1906 = vsel %vm1842, 1.0, 0.0
        %v1907 = vsel %vm1843, 1.0, 0.0
        %v1908 = vsel %vm1844, 1.0, 0.0
        %v1909 = vsel %vm1845, 1.0, 0.0
        %v1910 = vsel %vm1846, 1.0, 0.0
        %v1911 = vsel %vm1847, 1.0, 0.0
        %v1912 = vsel %vm1848, 1.0, 0.0
        %v1913 = vsel %vm1849, 1.0, 0.0
        %v1914 = vsel %vm1850, 1.0, 0.0
        %v1915 = vsel %vm1851, 1.0, 0.0
        %v1916 = vsel %vm1852, 1.0, 0.0
        %v1917 = vsel %vm1853, 1.0, 0.0
        %v1918 = vsel %vm1854, 1.0, 0.0
        %v1919 = vsel %vm1855, 1.0, 0.0
        %v1920 = vsel %vm1856, 1.0, 0.0
        %v1921 = vsel %vm1857, 1.0, 0.0
        %v1922 = vsel %vm1858, 1.0, 0.0
        %v1923 = vsel %vm1859, 1.0, 0.0
        %v1924 = vsel %vm1860, 1.0, 0.0
        %v1925 = vsel %vm1861, 1.0, 0.0
        %v1926 = vsel %vm1862, 1.0, 0.0
        %v1927 = vsel %vm1863, 1.0, 0.0
        %v1928 = vsel %vm1864, 1.0, 0.0
        %v1929 = vsel %vm1865, 1.0, 0.0
        %v1930 = vsel %vm1866, 1.0, 0.0
        %v1931 = vsel %vm1867, 1.0, 0.0
        %v1932 = vsel %vm1868, 1.0, 0.0
        %v1933 = vsel %vm1869, 1.0, 0.0
        %v1934 = vsel %vm1870, 1.0, 0.0
        %v1935 = vsel %vm1871, 1.0, 0.0
        %v1936 = vsel %vm1872, 1.0, 0.0
        %v1937 = vsel %vm1873, 1.0, 0.0
        %v1938 = vsel %vm1874, 1.0, 0.0
        %v1939 = vsel %vm1875, 1.0, 0.0
        %v1940 = vsel %vm1876, 1.0, 0.0
        %v1941 = vsel %vm1877, 1.0, 0.0
        %v1942 = vsel %vm1878, 1.0, 0.0
        %v1943 = vsel %vm1879, 1.0, 0.0
        %v1944 = vsel %vm1880, 1.0, 0.0
        %v1945 = vsel %vm1881, 1.0, 0.0
        %v1946 = vsel %vm1882, 1.0, 0.0
        %v1947 = vsel %vm1883, 1.0, 0.0
        %v1948 = vsel %vm1884, 1.0, 0.0
        %v1949 = vsel %vm1885, 1.0, 0.0
        %v1950 = vsel %vm1886, 1.0, 0.0
        %v1951 = vsel %vm1887, 1.0, 0.0
        %v1952 = vsel %vm1888, 1.0, 0.0
        %v1953 = vsel %vm1889, 1.0, 0.0
        %v1954 = vsel %vm1890, 1.0, 0.0
        %v1955 = vsel %vm1891, 1.0, 0.0
        %v1956 = vsel %vm1892, 1.0, 0.0
        %v1957 = vsel %vm1893, 1.0, 0.0
        %v1958 = vsel %vm1894, 1.0, 0.0
        %v1959 = vsel %vm1895, 1.0, 0.0
        %v1960 = vsel %vm1896, 1.0, 0.0
        %v1961 = vsel %vm1897, 1.0, 0.0
        %v1962 = vsel %vm1898, 1.0, 0.0
        %v1963 = vsel %vm1899, 1.0, 0.0
        %v1964 = vadd.f32 %v1900, %v1901
        %1965 = vadd.xlane.f32.xlu0 %v1964
        %v1966 = vpop.xlane.xlu0 %1965
        %v1967 = vadd.f32 %v1902, %v1903
        %1968 = vadd.xlane.f32.xlu0 %v1967
        %v1969 = vpop.xlane.xlu0 %1968
        %v1970 = vadd.f32 %v1904, %v1905
        %1971 = vadd.xlane.f32.xlu0 %v1970
        %v1972 = vpop.xlane.xlu0 %1971
        %v1973 = vadd.f32 %v1906, %v1907
        %1974 = vadd.xlane.f32.xlu0 %v1973
        %v1975 = vpop.xlane.xlu0 %1974
        %v1976 = vadd.f32 %v1908, %v1909
        %1977 = vadd.xlane.f32.xlu0 %v1976
        %v1978 = vpop.xlane.xlu0 %1977
        %v1979 = vadd.f32 %v1910, %v1911
        %1980 = vadd.xlane.f32.xlu0 %v1979
        %v1981 = vpop.xlane.xlu0 %1980
        %v1982 = vadd.f32 %v1912, %v1913
        %1983 = vadd.xlane.f32.xlu0 %v1982
        %v1984 = vpop.xlane.xlu0 %1983
        %v1985 = vadd.f32 %v1914, %v1915
        %1986 = vadd.xlane.f32.xlu0 %v1985
        %v1987 = vpop.xlane.xlu0 %1986
        %v1988 = vadd.f32 %v1916, %v1917
        %1989 = vadd.xlane.f32.xlu0 %v1988
        %v1990 = vpop.xlane.xlu0 %1989
        %v1991 = vadd.f32 %v1918, %v1919
        %1992 = vadd.xlane.f32.xlu0 %v1991
        %v1993 = vpop.xlane.xlu0 %1992
        %v1994 = vadd.f32 %v1920, %v1921
        %1995 = vadd.xlane.f32.xlu0 %v1994
        %v1996 = vpop.xlane.xlu0 %1995
        %v1997 = vadd.f32 %v1922, %v1923
        %1998 = vadd.xlane.f32.xlu0 %v1997
        %v1999 = vpop.xlane.xlu0 %1998
        %v2000 = vadd.f32 %v1924, %v1925
        %2001 = vadd.xlane.f32.xlu0 %v2000
        %v2002 = vpop.xlane.xlu0 %2001
        %v2003 = vadd.f32 %v1926, %v1927
        %2004 = vadd.xlane.f32.xlu0 %v2003
        %v2005 = vpop.xlane.xlu0 %2004
        %v2006 = vadd.f32 %v1928, %v1929
        %2007 = vadd.xlane.f32.xlu0 %v2006
        %v2008 = vpop.xlane.xlu0 %2007
        %v2009 = vadd.f32 %v1930, %v1931
        %2010 = vadd.xlane.f32.xlu0 %v2009
        %v2011 = vpop.xlane.xlu0 %2010
        %v2012 = vadd.f32 %v1932, %v1933
        %2013 = vadd.xlane.f32.xlu0 %v2012
        %v2014 = vpop.xlane.xlu0 %2013
        %v2015 = vadd.f32 %v1934, %v1935
        %2016 = vadd.xlane.f32.xlu0 %v2015
        %v2017 = vpop.xlane.xlu0 %2016
        %v2018 = vadd.f32 %v1936, %v1937
        %2019 = vadd.xlane.f32.xlu0 %v2018
        %v2020 = vpop.xlane.xlu0 %2019
        %v2021 = vadd.f32 %v1938, %v1939
        %2022 = vadd.xlane.f32.xlu0 %v2021
        %v2023 = vpop.xlane.xlu0 %2022
        %v2024 = vadd.f32 %v1940, %v1941
        %2025 = vadd.xlane.f32.xlu0 %v2024
        %v2026 = vpop.xlane.xlu0 %2025
        %v2027 = vadd.f32 %v1942, %v1943
        %2028 = vadd.xlane.f32.xlu0 %v2027
        %v2029 = vpop.xlane.xlu0 %2028
        %v2030 = vadd.f32 %v1944, %v1945
        %2031 = vadd.xlane.f32.xlu0 %v2030
        %v2032 = vpop.xlane.xlu0 %2031
        %v2033 = vadd.f32 %v1946, %v1947
        %2034 = vadd.xlane.f32.xlu0 %v2033
        %v2035 = vpop.xlane.xlu0 %2034
        %v2036 = vadd.f32 %v1948, %v1949
        %2037 = vadd.xlane.f32.xlu0 %v2036
        %v2038 = vpop.xlane.xlu0 %2037
        %v2039 = vadd.f32 %v1950, %v1951
        %2040 = vadd.xlane.f32.xlu0 %v2039
        %v2041 = vpop.xlane.xlu0 %2040
        %v2042 = vadd.f32 %v1952, %v1953
        %2043 = vadd.xlane.f32.xlu0 %v2042
        %v2044 = vpop.xlane.xlu0 %2043
        %v2045 = vadd.f32 %v1954, %v1955
        %2046 = vadd.xlane.f32.xlu0 %v2045
        %v2047 = vpop.xlane.xlu0 %2046
        %v2048 = vadd.f32 %v1956, %v1957
        %2049 = vadd.xlane.f32.xlu0 %v2048
        %v2050 = vpop.xlane.xlu0 %2049
        %v2051 = vadd.f32 %v1958, %v1959
        %2052 = vadd.xlane.f32.xlu0 %v2051
        %v2053 = vpop.xlane.xlu0 %2052
        %v2054 = vadd.f32 %v1960, %v1961
        %2055 = vadd.xlane.f32.xlu0 %v2054
        %v2056 = vpop.xlane.xlu0 %2055
        %v2057 = vadd.f32 %v1962, %v1963
        %2058 = vadd.xlane.f32.xlu0 %v2057
        %v2059 = vpop.xlane.xlu0 %2058
        %vm2060 = vcmp.ge.f32.partialorder %v1966, 4.0
        %vm2061 = vcmp.ge.f32.partialorder %v1969, 4.0
        %vm2062 = vcmp.ge.f32.partialorder %v1972, 4.0
        %vm2063 = vcmp.ge.f32.partialorder %v1975, 4.0
        %vm2064 = vcmp.ge.f32.partialorder %v1978, 4.0
        %vm2065 = vcmp.ge.f32.partialorder %v1981, 4.0
        %vm2066 = vcmp.ge.f32.partialorder %v1984, 4.0
        %vm2067 = vcmp.ge.f32.partialorder %v1987, 4.0
        %vm2068 = vcmp.ge.f32.partialorder %v1990, 4.0
        %vm2069 = vcmp.ge.f32.partialorder %v1993, 4.0
        %vm2070 = vcmp.ge.f32.partialorder %v1996, 4.0
        %vm2071 = vcmp.ge.f32.partialorder %v1999, 4.0
        %vm2072 = vcmp.ge.f32.partialorder %v2002, 4.0
        %vm2073 = vcmp.ge.f32.partialorder %v2005, 4.0
        %vm2074 = vcmp.ge.f32.partialorder %v2008, 4.0
        %vm2075 = vcmp.ge.f32.partialorder %v2011, 4.0
        %vm2076 = vcmp.ge.f32.partialorder %v2014, 4.0
        %vm2077 = vcmp.ge.f32.partialorder %v2017, 4.0
        %vm2078 = vcmp.ge.f32.partialorder %v2020, 4.0
        %vm2079 = vcmp.ge.f32.partialorder %v2023, 4.0
        %vm2080 = vcmp.ge.f32.partialorder %v2026, 4.0
        %vm2081 = vcmp.ge.f32.partialorder %v2029, 4.0
        %vm2082 = vcmp.ge.f32.partialorder %v2032, 4.0
        %vm2083 = vcmp.ge.f32.partialorder %v2035, 4.0
        %vm2084 = vcmp.ge.f32.partialorder %v2038, 4.0
        %vm2085 = vcmp.ge.f32.partialorder %v2041, 4.0
        %vm2086 = vcmp.ge.f32.partialorder %v2044, 4.0
        %vm2087 = vcmp.ge.f32.partialorder %v2047, 4.0
        %vm2088 = vcmp.ge.f32.partialorder %v2050, 4.0
        %vm2089 = vcmp.ge.f32.partialorder %v2053, 4.0
        %vm2090 = vcmp.ge.f32.partialorder %v2056, 4.0
        %vm2091 = vcmp.ge.f32.partialorder %v2059, 4.0
        %vm2092 = vmxor %vm1548, 1
        %vm2093 = vmxor %vm1549, 1
        %vm2094 = vmxor %vm1550, 1
        %vm2095 = vmxor %vm1551, 1
        %vm2096 = vmxor %vm1552, 1
        %vm2097 = vmxor %vm1553, 1
        %vm2098 = vmxor %vm1554, 1
        %vm2099 = vmxor %vm1555, 1
        %vm2100 = vmxor %vm1556, 1
        %vm2101 = vmxor %vm1557, 1
        %vm2102 = vmxor %vm1558, 1
        %vm2103 = vmxor %vm1559, 1
        %vm2104 = vmxor %vm1560, 1
        %vm2105 = vmxor %vm1561, 1
        %vm2106 = vmxor %vm1562, 1
        %vm2107 = vmxor %vm1563, 1
        %vm2108 = vmxor %vm1564, 1
        %vm2109 = vmxor %vm1565, 1
        %vm2110 = vmxor %vm1566, 1
        %vm2111 = vmxor %vm1567, 1
        %vm2112 = vmxor %vm1568, 1
        %vm2113 = vmxor %vm1569, 1
        %vm2114 = vmxor %vm1570, 1
        %vm2115 = vmxor %vm1571, 1
        %vm2116 = vmxor %vm1572, 1
        %vm2117 = vmxor %vm1573, 1
        %vm2118 = vmxor %vm1574, 1
        %vm2119 = vmxor %vm1575, 1
        %vm2120 = vmxor %vm1576, 1
        %vm2121 = vmxor %vm1577, 1
        %vm2122 = vmxor %vm1578, 1
        %vm2123 = vmxor %vm1579, 1
        %vm2124 = vmand %vm2092, %vm2060
        %vm2125 = vmand %vm2093, %vm2061
        %vm2126 = vmand %vm2094, %vm2062
        %vm2127 = vmand %vm2095, %vm2063
        %vm2128 = vmand %vm2096, %vm2064
        %vm2129 = vmand %vm2097, %vm2065
        %vm2130 = vmand %vm2098, %vm2066
        %vm2131 = vmand %vm2099, %vm2067
        %vm2132 = vmand %vm2100, %vm2068
        %vm2133 = vmand %vm2101, %vm2069
        %vm2134 = vmand %vm2102, %vm2070
        %vm2135 = vmand %vm2103, %vm2071
        %vm2136 = vmand %vm2104, %vm2072
        %vm2137 = vmand %vm2105, %vm2073
        %vm2138 = vmand %vm2106, %vm2074
        %vm2139 = vmand %vm2107, %vm2075
        %vm2140 = vmand %vm2108, %vm2076
        %vm2141 = vmand %vm2109, %vm2077
        %vm2142 = vmand %vm2110, %vm2078
        %vm2143 = vmand %vm2111, %vm2079
        %vm2144 = vmand %vm2112, %vm2080
        %vm2145 = vmand %vm2113, %vm2081
        %vm2146 = vmand %vm2114, %vm2082
        %vm2147 = vmand %vm2115, %vm2083
        %vm2148 = vmand %vm2116, %vm2084
        %vm2149 = vmand %vm2117, %vm2085
        %vm2150 = vmand %vm2118, %vm2086
        %vm2151 = vmand %vm2119, %vm2087
        %vm2152 = vmand %vm2120, %vm2088
        %vm2153 = vmand %vm2121, %vm2089
        %vm2154 = vmand %vm2122, %vm2090
        %vm2155 = vmand %vm2123, %vm2091
        %v2156 = vsel %vm2124, %v1742, %v1580
        %v2157 = vsel %vm2125, %v1745, %v1581
        %v2158 = vsel %vm2126, %v1748, %v1582
        %v2159 = vsel %vm2127, %v1751, %v1583
        %v2160 = vsel %vm2128, %v1754, %v1584
        %v2161 = vsel %vm2129, %v1757, %v1585
        %v2162 = vsel %vm2130, %v1760, %v1586
        %v2163 = vsel %vm2131, %v1763, %v1587
        %v2164 = vsel %vm2132, %v1766, %v1588
        %v2165 = vsel %vm2133, %v1769, %v1589
        %v2166 = vsel %vm2134, %v1772, %v1590
        %v2167 = vsel %vm2135, %v1775, %v1591
        %v2168 = vsel %vm2136, %v1778, %v1592
        %v2169 = vsel %vm2137, %v1781, %v1593
        %v2170 = vsel %vm2138, %v1784, %v1594
        %v2171 = vsel %vm2139, %v1787, %v1595
        %v2172 = vsel %vm2140, %v1790, %v1596
        %v2173 = vsel %vm2141, %v1793, %v1597
        %v2174 = vsel %vm2142, %v1796, %v1598
        %v2175 = vsel %vm2143, %v1799, %v1599
        %v2176 = vsel %vm2144, %v1802, %v1600
        %v2177 = vsel %vm2145, %v1805, %v1601
        %v2178 = vsel %vm2146, %v1808, %v1602
        %v2179 = vsel %vm2147, %v1811, %v1603
        %v2180 = vsel %vm2148, %v1814, %v1604
        %v2181 = vsel %vm2149, %v1817, %v1605
        %v2182 = vsel %vm2150, %v1820, %v1606
        %v2183 = vsel %vm2151, %v1823, %v1607
        %v2184 = vsel %vm2152, %v1826, %v1608
        %v2185 = vsel %vm2153, %v1829, %v1609
        %v2186 = vsel %vm2154, %v1832, %v1610
        %v2187 = vsel %vm2155, %v1835, %v1611
        %vm2188 = vmor %vm1548, %vm2060
        %vm2189 = vmor %vm1549, %vm2061
        %vm2190 = vmor %vm1550, %vm2062
        %vm2191 = vmor %vm1551, %vm2063
        %vm2192 = vmor %vm1552, %vm2064
        %vm2193 = vmor %vm1553, %vm2065
        %vm2194 = vmor %vm1554, %vm2066
        %vm2195 = vmor %vm1555, %vm2067
        %vm2196 = vmor %vm1556, %vm2068
        %vm2197 = vmor %vm1557, %vm2069
        %vm2198 = vmor %vm1558, %vm2070
        %vm2199 = vmor %vm1559, %vm2071
        %vm2200 = vmor %vm1560, %vm2072
        %vm2201 = vmor %vm1561, %vm2073
        %vm2202 = vmor %vm1562, %vm2074
        %vm2203 = vmor %vm1563, %vm2075
        %vm2204 = vmor %vm1564, %vm2076
        %vm2205 = vmor %vm1565, %vm2077
        %vm2206 = vmor %vm1566, %vm2078
        %vm2207 = vmor %vm1567, %vm2079
        %vm2208 = vmor %vm1568, %vm2080
        %vm2209 = vmor %vm1569, %vm2081
        %vm2210 = vmor %vm1570, %vm2082
        %vm2211 = vmor %vm1571, %vm2083
        %vm2212 = vmor %vm1572, %vm2084
        %vm2213 = vmor %vm1573, %vm2085
        %vm2214 = vmor %vm1574, %vm2086
        %vm2215 = vmor %vm1575, %vm2087
        %vm2216 = vmor %vm1576, %vm2088
        %vm2217 = vmor %vm1577, %vm2089
        %vm2218 = vmor %vm1578, %vm2090
        %vm2219 = vmor %vm1579, %vm2091
        %vm2220 = vcmp.lt.f32.partialorder %v1068, %v1742
        %vm2221 = vcmp.lt.f32.partialorder %v1069, %v1742
        %vm2222 = vcmp.lt.f32.partialorder %v1070, %v1745
        %vm2223 = vcmp.lt.f32.partialorder %v1071, %v1745
        %vm2224 = vcmp.lt.f32.partialorder %v1072, %v1748
        %vm2225 = vcmp.lt.f32.partialorder %v1073, %v1748
        %vm2226 = vcmp.lt.f32.partialorder %v1074, %v1751
        %vm2227 = vcmp.lt.f32.partialorder %v1075, %v1751
        %vm2228 = vcmp.lt.f32.partialorder %v1076, %v1754
        %vm2229 = vcmp.lt.f32.partialorder %v1077, %v1754
        %vm2230 = vcmp.lt.f32.partialorder %v1078, %v1757
        %vm2231 = vcmp.lt.f32.partialorder %v1079, %v1757
        %vm2232 = vcmp.lt.f32.partialorder %v1080, %v1760
        %vm2233 = vcmp.lt.f32.partialorder %v1081, %v1760
        %vm2234 = vcmp.lt.f32.partialorder %v1082, %v1763
        %vm2235 = vcmp.lt.f32.partialorder %v1083, %v1763
        %vm2236 = vcmp.lt.f32.partialorder %v1084, %v1766
        %vm2237 = vcmp.lt.f32.partialorder %v1085, %v1766
        %vm2238 = vcmp.lt.f32.partialorder %v1086, %v1769
        %vm2239 = vcmp.lt.f32.partialorder %v1087, %v1769
        %vm2240 = vcmp.lt.f32.partialorder %v1088, %v1772
        %vm2241 = vcmp.lt.f32.partialorder %v1089, %v1772
        %vm2242 = vcmp.lt.f32.partialorder %v1090, %v1775
        %vm2243 = vcmp.lt.f32.partialorder %v1091, %v1775
        %vm2244 = vcmp.lt.f32.partialorder %v1092, %v1778
        %vm2245 = vcmp.lt.f32.partialorder %v1093, %v1778
        %vm2246 = vcmp.lt.f32.partialorder %v1094, %v1781
        %vm2247 = vcmp.lt.f32.partialorder %v1095, %v1781
        %vm2248 = vcmp.lt.f32.partialorder %v1096, %v1784
        %vm2249 = vcmp.lt.f32.partialorder %v1097, %v1784
        %vm2250 = vcmp.lt.f32.partialorder %v1098, %v1787
        %vm2251 = vcmp.lt.f32.partialorder %v1099, %v1787
        %vm2252 = vcmp.lt.f32.partialorder %v1100, %v1790
        %vm2253 = vcmp.lt.f32.partialorder %v1101, %v1790
        %vm2254 = vcmp.lt.f32.partialorder %v1102, %v1793
        %vm2255 = vcmp.lt.f32.partialorder %v1103, %v1793
        %vm2256 = vcmp.lt.f32.partialorder %v1104, %v1796
        %vm2257 = vcmp.lt.f32.partialorder %v1105, %v1796
        %vm2258 = vcmp.lt.f32.partialorder %v1106, %v1799
        %vm2259 = vcmp.lt.f32.partialorder %v1107, %v1799
        %vm2260 = vcmp.lt.f32.partialorder %v1108, %v1802
        %vm2261 = vcmp.lt.f32.partialorder %v1109, %v1802
        %vm2262 = vcmp.lt.f32.partialorder %v1110, %v1805
        %vm2263 = vcmp.lt.f32.partialorder %v1111, %v1805
        %vm2264 = vcmp.lt.f32.partialorder %v1112, %v1808
        %vm2265 = vcmp.lt.f32.partialorder %v1113, %v1808
        %vm2266 = vcmp.lt.f32.partialorder %v1114, %v1811
        %vm2267 = vcmp.lt.f32.partialorder %v1115, %v1811
        %vm2268 = vcmp.lt.f32.partialorder %v1116, %v1814
        %vm2269 = vcmp.lt.f32.partialorder %v1117, %v1814
        %vm2270 = vcmp.lt.f32.partialorder %v1118, %v1817
        %vm2271 = vcmp.lt.f32.partialorder %v1119, %v1817
        %vm2272 = vcmp.lt.f32.partialorder %v1120, %v1820
        %vm2273 = vcmp.lt.f32.partialorder %v1121, %v1820
        %vm2274 = vcmp.lt.f32.partialorder %v1122, %v1823
        %vm2275 = vcmp.lt.f32.partialorder %v1123, %v1823
        %vm2276 = vcmp.lt.f32.partialorder %v1124, %v1826
        %vm2277 = vcmp.lt.f32.partialorder %v1125, %v1826
        %vm2278 = vcmp.lt.f32.partialorder %v1126, %v1829
        %vm2279 = vcmp.lt.f32.partialorder %v1127, %v1829
        %vm2280 = vcmp.lt.f32.partialorder %v1128, %v1832
        %vm2281 = vcmp.lt.f32.partialorder %v1129, %v1832
        %vm2282 = vcmp.lt.f32.partialorder %v1130, %v1835
        %vm2283 = vcmp.lt.f32.partialorder %v1131, %v1835
        %v2284 = vsel %vm2220, %v1068, -inf
        %v2285 = vsel %vm2221, %v1069, -inf
        %v2286 = vsel %vm2222, %v1070, -inf
        %v2287 = vsel %vm2223, %v1071, -inf
        %v2288 = vsel %vm2224, %v1072, -inf
        %v2289 = vsel %vm2225, %v1073, -inf
        %v2290 = vsel %vm2226, %v1074, -inf
        %v2291 = vsel %vm2227, %v1075, -inf
        %v2292 = vsel %vm2228, %v1076, -inf
        %v2293 = vsel %vm2229, %v1077, -inf
        %v2294 = vsel %vm2230, %v1078, -inf
        %v2295 = vsel %vm2231, %v1079, -inf
        %v2296 = vsel %vm2232, %v1080, -inf
        %v2297 = vsel %vm2233, %v1081, -inf
        %v2298 = vsel %vm2234, %v1082, -inf
        %v2299 = vsel %vm2235, %v1083, -inf
        %v2300 = vsel %vm2236, %v1084, -inf
        %v2301 = vsel %vm2237, %v1085, -inf
        %v2302 = vsel %vm2238, %v1086, -inf
        %v2303 = vsel %vm2239, %v1087, -inf
        %v2304 = vsel %vm2240, %v1088, -inf
        %v2305 = vsel %vm2241, %v1089, -inf
        %v2306 = vsel %vm2242, %v1090, -inf
        %v2307 = vsel %vm2243, %v1091, -inf
        %v2308 = vsel %vm2244, %v1092, -inf
        %v2309 = vsel %vm2245, %v1093, -inf
        %v2310 = vsel %vm2246, %v1094, -inf
        %v2311 = vsel %vm2247, %v1095, -inf
        %v2312 = vsel %vm2248, %v1096, -inf
        %v2313 = vsel %vm2249, %v1097, -inf
        %v2314 = vsel %vm2250, %v1098, -inf
        %v2315 = vsel %vm2251, %v1099, -inf
        %v2316 = vsel %vm2252, %v1100, -inf
        %v2317 = vsel %vm2253, %v1101, -inf
        %v2318 = vsel %vm2254, %v1102, -inf
        %v2319 = vsel %vm2255, %v1103, -inf
        %v2320 = vsel %vm2256, %v1104, -inf
        %v2321 = vsel %vm2257, %v1105, -inf
        %v2322 = vsel %vm2258, %v1106, -inf
        %v2323 = vsel %vm2259, %v1107, -inf
        %v2324 = vsel %vm2260, %v1108, -inf
        %v2325 = vsel %vm2261, %v1109, -inf
        %v2326 = vsel %vm2262, %v1110, -inf
        %v2327 = vsel %vm2263, %v1111, -inf
        %v2328 = vsel %vm2264, %v1112, -inf
        %v2329 = vsel %vm2265, %v1113, -inf
        %v2330 = vsel %vm2266, %v1114, -inf
        %v2331 = vsel %vm2267, %v1115, -inf
        %v2332 = vsel %vm2268, %v1116, -inf
        %v2333 = vsel %vm2269, %v1117, -inf
        %v2334 = vsel %vm2270, %v1118, -inf
        %v2335 = vsel %vm2271, %v1119, -inf
        %v2336 = vsel %vm2272, %v1120, -inf
        %v2337 = vsel %vm2273, %v1121, -inf
        %v2338 = vsel %vm2274, %v1122, -inf
        %v2339 = vsel %vm2275, %v1123, -inf
        %v2340 = vsel %vm2276, %v1124, -inf
        %v2341 = vsel %vm2277, %v1125, -inf
        %v2342 = vsel %vm2278, %v1126, -inf
        %v2343 = vsel %vm2279, %v1127, -inf
        %v2344 = vsel %vm2280, %v1128, -inf
        %v2345 = vsel %vm2281, %v1129, -inf
        %v2346 = vsel %vm2282, %v1130, -inf
        %v2347 = vsel %vm2283, %v1131, -inf
        %v2348 = vmax.f32 %v2284, %v2285
        %2349 = vmax.xlane.f32.xlu0 %v2348
        %v2350 = vpop.xlane.xlu0 %2349
        %v2351 = vmax.f32 %v2286, %v2287
        %2352 = vmax.xlane.f32.xlu0 %v2351
        %v2353 = vpop.xlane.xlu0 %2352
        %v2354 = vmax.f32 %v2288, %v2289
        %2355 = vmax.xlane.f32.xlu0 %v2354
        %v2356 = vpop.xlane.xlu0 %2355
        %v2357 = vmax.f32 %v2290, %v2291
        %2358 = vmax.xlane.f32.xlu0 %v2357
        %v2359 = vpop.xlane.xlu0 %2358
        %v2360 = vmax.f32 %v2292, %v2293
        %2361 = vmax.xlane.f32.xlu0 %v2360
        %v2362 = vpop.xlane.xlu0 %2361
        %v2363 = vmax.f32 %v2294, %v2295
        %2364 = vmax.xlane.f32.xlu0 %v2363
        %v2365 = vpop.xlane.xlu0 %2364
        %v2366 = vmax.f32 %v2296, %v2297
        %2367 = vmax.xlane.f32.xlu0 %v2366
        %v2368 = vpop.xlane.xlu0 %2367
        %v2369 = vmax.f32 %v2298, %v2299
        %2370 = vmax.xlane.f32.xlu0 %v2369
        %v2371 = vpop.xlane.xlu0 %2370
        %v2372 = vmax.f32 %v2300, %v2301
        %2373 = vmax.xlane.f32.xlu0 %v2372
        %v2374 = vpop.xlane.xlu0 %2373
        %v2375 = vmax.f32 %v2302, %v2303
        %2376 = vmax.xlane.f32.xlu0 %v2375
        %v2377 = vpop.xlane.xlu0 %2376
        %v2378 = vmax.f32 %v2304, %v2305
        %2379 = vmax.xlane.f32.xlu0 %v2378
        %v2380 = vpop.xlane.xlu0 %2379
        %v2381 = vmax.f32 %v2306, %v2307
        %2382 = vmax.xlane.f32.xlu0 %v2381
        %v2383 = vpop.xlane.xlu0 %2382
        %v2384 = vmax.f32 %v2308, %v2309
        %2385 = vmax.xlane.f32.xlu0 %v2384
        %v2386 = vpop.xlane.xlu0 %2385
        %v2387 = vmax.f32 %v2310, %v2311
        %2388 = vmax.xlane.f32.xlu0 %v2387
        %v2389 = vpop.xlane.xlu0 %2388
        %v2390 = vmax.f32 %v2312, %v2313
        %2391 = vmax.xlane.f32.xlu0 %v2390
        %v2392 = vpop.xlane.xlu0 %2391
        %v2393 = vmax.f32 %v2314, %v2315
        %2394 = vmax.xlane.f32.xlu0 %v2393
        %v2395 = vpop.xlane.xlu0 %2394
        %v2396 = vmax.f32 %v2316, %v2317
        %2397 = vmax.xlane.f32.xlu0 %v2396
        %v2398 = vpop.xlane.xlu0 %2397
        %v2399 = vmax.f32 %v2318, %v2319
        %2400 = vmax.xlane.f32.xlu0 %v2399
        %v2401 = vpop.xlane.xlu0 %2400
        %v2402 = vmax.f32 %v2320, %v2321
        %2403 = vmax.xlane.f32.xlu0 %v2402
        %v2404 = vpop.xlane.xlu0 %2403
        %v2405 = vmax.f32 %v2322, %v2323
        %2406 = vmax.xlane.f32.xlu0 %v2405
        %v2407 = vpop.xlane.xlu0 %2406
        %v2408 = vmax.f32 %v2324, %v2325
        %2409 = vmax.xlane.f32.xlu0 %v2408
        %v2410 = vpop.xlane.xlu0 %2409
        %v2411 = vmax.f32 %v2326, %v2327
        %2412 = vmax.xlane.f32.xlu0 %v2411
        %v2413 = vpop.xlane.xlu0 %2412
        %v2414 = vmax.f32 %v2328, %v2329
        %2415 = vmax.xlane.f32.xlu0 %v2414
        %v2416 = vpop.xlane.xlu0 %2415
        %v2417 = vmax.f32 %v2330, %v2331
        %2418 = vmax.xlane.f32.xlu0 %v2417
        %v2419 = vpop.xlane.xlu0 %2418
        %v2420 = vmax.f32 %v2332, %v2333
        %2421 = vmax.xlane.f32.xlu0 %v2420
        %v2422 = vpop.xlane.xlu0 %2421
        %v2423 = vmax.f32 %v2334, %v2335
        %2424 = vmax.xlane.f32.xlu0 %v2423
        %v2425 = vpop.xlane.xlu0 %2424
        %v2426 = vmax.f32 %v2336, %v2337
        %2427 = vmax.xlane.f32.xlu0 %v2426
        %v2428 = vpop.xlane.xlu0 %2427
        %v2429 = vmax.f32 %v2338, %v2339
        %2430 = vmax.xlane.f32.xlu0 %v2429
        %v2431 = vpop.xlane.xlu0 %2430
        %v2432 = vmax.f32 %v2340, %v2341
        %2433 = vmax.xlane.f32.xlu0 %v2432
        %v2434 = vpop.xlane.xlu0 %2433
        %v2435 = vmax.f32 %v2342, %v2343
        %2436 = vmax.xlane.f32.xlu0 %v2435
        %v2437 = vpop.xlane.xlu0 %2436
        %v2438 = vmax.f32 %v2344, %v2345
        %2439 = vmax.xlane.f32.xlu0 %v2438
        %v2440 = vpop.xlane.xlu0 %2439
        %v2441 = vmax.f32 %v2346, %v2347
        %2442 = vmax.xlane.f32.xlu0 %v2441
        %v2443 = vpop.xlane.xlu0 %2442
        %vm2444 = vcmp.ge.f32.partialorder %v1068, %v2350
        %vm2445 = vcmp.ge.f32.partialorder %v1069, %v2350
        %vm2446 = vcmp.ge.f32.partialorder %v1070, %v2353
        %vm2447 = vcmp.ge.f32.partialorder %v1071, %v2353
        %vm2448 = vcmp.ge.f32.partialorder %v1072, %v2356
        %vm2449 = vcmp.ge.f32.partialorder %v1073, %v2356
        %vm2450 = vcmp.ge.f32.partialorder %v1074, %v2359
        %vm2451 = vcmp.ge.f32.partialorder %v1075, %v2359
        %vm2452 = vcmp.ge.f32.partialorder %v1076, %v2362
        %vm2453 = vcmp.ge.f32.partialorder %v1077, %v2362
        %vm2454 = vcmp.ge.f32.partialorder %v1078, %v2365
        %vm2455 = vcmp.ge.f32.partialorder %v1079, %v2365
        %vm2456 = vcmp.ge.f32.partialorder %v1080, %v2368
        %vm2457 = vcmp.ge.f32.partialorder %v1081, %v2368
        %vm2458 = vcmp.ge.f32.partialorder %v1082, %v2371
        %vm2459 = vcmp.ge.f32.partialorder %v1083, %v2371
        %vm2460 = vcmp.ge.f32.partialorder %v1084, %v2374
        %vm2461 = vcmp.ge.f32.partialorder %v1085, %v2374
        %vm2462 = vcmp.ge.f32.partialorder %v1086, %v2377
        %vm2463 = vcmp.ge.f32.partialorder %v1087, %v2377
        %vm2464 = vcmp.ge.f32.partialorder %v1088, %v2380
        %vm2465 = vcmp.ge.f32.partialorder %v1089, %v2380
        %vm2466 = vcmp.ge.f32.partialorder %v1090, %v2383
        %vm2467 = vcmp.ge.f32.partialorder %v1091, %v2383
        %vm2468 = vcmp.ge.f32.partialorder %v1092, %v2386
        %vm2469 = vcmp.ge.f32.partialorder %v1093, %v2386
        %vm2470 = vcmp.ge.f32.partialorder %v1094, %v2389
        %vm2471 = vcmp.ge.f32.partialorder %v1095, %v2389
        %vm2472 = vcmp.ge.f32.partialorder %v1096, %v2392
        %vm2473 = vcmp.ge.f32.partialorder %v1097, %v2392
        %vm2474 = vcmp.ge.f32.partialorder %v1098, %v2395
        %vm2475 = vcmp.ge.f32.partialorder %v1099, %v2395
        %vm2476 = vcmp.ge.f32.partialorder %v1100, %v2398
        %vm2477 = vcmp.ge.f32.partialorder %v1101, %v2398
        %vm2478 = vcmp.ge.f32.partialorder %v1102, %v2401
        %vm2479 = vcmp.ge.f32.partialorder %v1103, %v2401
        %vm2480 = vcmp.ge.f32.partialorder %v1104, %v2404
        %vm2481 = vcmp.ge.f32.partialorder %v1105, %v2404
        %vm2482 = vcmp.ge.f32.partialorder %v1106, %v2407
        %vm2483 = vcmp.ge.f32.partialorder %v1107, %v2407
        %vm2484 = vcmp.ge.f32.partialorder %v1108, %v2410
        %vm2485 = vcmp.ge.f32.partialorder %v1109, %v2410
        %vm2486 = vcmp.ge.f32.partialorder %v1110, %v2413
        %vm2487 = vcmp.ge.f32.partialorder %v1111, %v2413
        %vm2488 = vcmp.ge.f32.partialorder %v1112, %v2416
        %vm2489 = vcmp.ge.f32.partialorder %v1113, %v2416
        %vm2490 = vcmp.ge.f32.partialorder %v1114, %v2419
        %vm2491 = vcmp.ge.f32.partialorder %v1115, %v2419
        %vm2492 = vcmp.ge.f32.partialorder %v1116, %v2422
        %vm2493 = vcmp.ge.f32.partialorder %v1117, %v2422
        %vm2494 = vcmp.ge.f32.partialorder %v1118, %v2425
        %vm2495 = vcmp.ge.f32.partialorder %v1119, %v2425
        %vm2496 = vcmp.ge.f32.partialorder %v1120, %v2428
        %vm2497 = vcmp.ge.f32.partialorder %v1121, %v2428
        %vm2498 = vcmp.ge.f32.partialorder %v1122, %v2431
        %vm2499 = vcmp.ge.f32.partialorder %v1123, %v2431
        %vm2500 = vcmp.ge.f32.partialorder %v1124, %v2434
        %vm2501 = vcmp.ge.f32.partialorder %v1125, %v2434
        %vm2502 = vcmp.ge.f32.partialorder %v1126, %v2437
        %vm2503 = vcmp.ge.f32.partialorder %v1127, %v2437
        %vm2504 = vcmp.ge.f32.partialorder %v1128, %v2440
        %vm2505 = vcmp.ge.f32.partialorder %v1129, %v2440
        %vm2506 = vcmp.ge.f32.partialorder %v1130, %v2443
        %vm2507 = vcmp.ge.f32.partialorder %v1131, %v2443
        %v2508 = vsel %vm2444, 1.0, 0.0
        %v2509 = vsel %vm2445, 1.0, 0.0
        %v2510 = vsel %vm2446, 1.0, 0.0
        %v2511 = vsel %vm2447, 1.0, 0.0
        %v2512 = vsel %vm2448, 1.0, 0.0
        %v2513 = vsel %vm2449, 1.0, 0.0
        %v2514 = vsel %vm2450, 1.0, 0.0
        %v2515 = vsel %vm2451, 1.0, 0.0
        %v2516 = vsel %vm2452, 1.0, 0.0
        %v2517 = vsel %vm2453, 1.0, 0.0
        %v2518 = vsel %vm2454, 1.0, 0.0
        %v2519 = vsel %vm2455, 1.0, 0.0
        %v2520 = vsel %vm2456, 1.0, 0.0
        %v2521 = vsel %vm2457, 1.0, 0.0
        %v2522 = vsel %vm2458, 1.0, 0.0
        %v2523 = vsel %vm2459, 1.0, 0.0
        %v2524 = vsel %vm2460, 1.0, 0.0
        %v2525 = vsel %vm2461, 1.0, 0.0
        %v2526 = vsel %vm2462, 1.0, 0.0
        %v2527 = vsel %vm2463, 1.0, 0.0
        %v2528 = vsel %vm2464, 1.0, 0.0
        %v2529 = vsel %vm2465, 1.0, 0.0
        %v2530 = vsel %vm2466, 1.0, 0.0
        %v2531 = vsel %vm2467, 1.0, 0.0
        %v2532 = vsel %vm2468, 1.0, 0.0
        %v2533 = vsel %vm2469, 1.0, 0.0
        %v2534 = vsel %vm2470, 1.0, 0.0
        %v2535 = vsel %vm2471, 1.0, 0.0
        %v2536 = vsel %vm2472, 1.0, 0.0
        %v2537 = vsel %vm2473, 1.0, 0.0
        %v2538 = vsel %vm2474, 1.0, 0.0
        %v2539 = vsel %vm2475, 1.0, 0.0
        %v2540 = vsel %vm2476, 1.0, 0.0
        %v2541 = vsel %vm2477, 1.0, 0.0
        %v2542 = vsel %vm2478, 1.0, 0.0
        %v2543 = vsel %vm2479, 1.0, 0.0
        %v2544 = vsel %vm2480, 1.0, 0.0
        %v2545 = vsel %vm2481, 1.0, 0.0
        %v2546 = vsel %vm2482, 1.0, 0.0
        %v2547 = vsel %vm2483, 1.0, 0.0
        %v2548 = vsel %vm2484, 1.0, 0.0
        %v2549 = vsel %vm2485, 1.0, 0.0
        %v2550 = vsel %vm2486, 1.0, 0.0
        %v2551 = vsel %vm2487, 1.0, 0.0
        %v2552 = vsel %vm2488, 1.0, 0.0
        %v2553 = vsel %vm2489, 1.0, 0.0
        %v2554 = vsel %vm2490, 1.0, 0.0
        %v2555 = vsel %vm2491, 1.0, 0.0
        %v2556 = vsel %vm2492, 1.0, 0.0
        %v2557 = vsel %vm2493, 1.0, 0.0
        %v2558 = vsel %vm2494, 1.0, 0.0
        %v2559 = vsel %vm2495, 1.0, 0.0
        %v2560 = vsel %vm2496, 1.0, 0.0
        %v2561 = vsel %vm2497, 1.0, 0.0
        %v2562 = vsel %vm2498, 1.0, 0.0
        %v2563 = vsel %vm2499, 1.0, 0.0
        %v2564 = vsel %vm2500, 1.0, 0.0
        %v2565 = vsel %vm2501, 1.0, 0.0
        %v2566 = vsel %vm2502, 1.0, 0.0
        %v2567 = vsel %vm2503, 1.0, 0.0
        %v2568 = vsel %vm2504, 1.0, 0.0
        %v2569 = vsel %vm2505, 1.0, 0.0
        %v2570 = vsel %vm2506, 1.0, 0.0
        %v2571 = vsel %vm2507, 1.0, 0.0
        %v2572 = vadd.f32 %v2508, %v2509
        %2573 = vadd.xlane.f32.xlu0 %v2572
        %v2574 = vpop.xlane.xlu0 %2573
        %v2575 = vadd.f32 %v2510, %v2511
        %2576 = vadd.xlane.f32.xlu0 %v2575
        %v2577 = vpop.xlane.xlu0 %2576
        %v2578 = vadd.f32 %v2512, %v2513
        %2579 = vadd.xlane.f32.xlu0 %v2578
        %v2580 = vpop.xlane.xlu0 %2579
        %v2581 = vadd.f32 %v2514, %v2515
        %2582 = vadd.xlane.f32.xlu0 %v2581
        %v2583 = vpop.xlane.xlu0 %2582
        %v2584 = vadd.f32 %v2516, %v2517
        %2585 = vadd.xlane.f32.xlu0 %v2584
        %v2586 = vpop.xlane.xlu0 %2585
        %v2587 = vadd.f32 %v2518, %v2519
        %2588 = vadd.xlane.f32.xlu0 %v2587
        %v2589 = vpop.xlane.xlu0 %2588
        %v2590 = vadd.f32 %v2520, %v2521
        %2591 = vadd.xlane.f32.xlu0 %v2590
        %v2592 = vpop.xlane.xlu0 %2591
        %v2593 = vadd.f32 %v2522, %v2523
        %2594 = vadd.xlane.f32.xlu0 %v2593
        %v2595 = vpop.xlane.xlu0 %2594
        %v2596 = vadd.f32 %v2524, %v2525
        %2597 = vadd.xlane.f32.xlu0 %v2596
        %v2598 = vpop.xlane.xlu0 %2597
        %v2599 = vadd.f32 %v2526, %v2527
        %2600 = vadd.xlane.f32.xlu0 %v2599
        %v2601 = vpop.xlane.xlu0 %2600
        %v2602 = vadd.f32 %v2528, %v2529
        %2603 = vadd.xlane.f32.xlu0 %v2602
        %v2604 = vpop.xlane.xlu0 %2603
        %v2605 = vadd.f32 %v2530, %v2531
        %2606 = vadd.xlane.f32.xlu0 %v2605
        %v2607 = vpop.xlane.xlu0 %2606
        %v2608 = vadd.f32 %v2532, %v2533
        %2609 = vadd.xlane.f32.xlu0 %v2608
        %v2610 = vpop.xlane.xlu0 %2609
        %v2611 = vadd.f32 %v2534, %v2535
        %2612 = vadd.xlane.f32.xlu0 %v2611
        %v2613 = vpop.xlane.xlu0 %2612
        %v2614 = vadd.f32 %v2536, %v2537
        %2615 = vadd.xlane.f32.xlu0 %v2614
        %v2616 = vpop.xlane.xlu0 %2615
        %v2617 = vadd.f32 %v2538, %v2539
        %2618 = vadd.xlane.f32.xlu0 %v2617
        %v2619 = vpop.xlane.xlu0 %2618
        %v2620 = vadd.f32 %v2540, %v2541
        %2621 = vadd.xlane.f32.xlu0 %v2620
        %v2622 = vpop.xlane.xlu0 %2621
        %v2623 = vadd.f32 %v2542, %v2543
        %2624 = vadd.xlane.f32.xlu0 %v2623
        %v2625 = vpop.xlane.xlu0 %2624
        %v2626 = vadd.f32 %v2544, %v2545
        %2627 = vadd.xlane.f32.xlu0 %v2626
        %v2628 = vpop.xlane.xlu0 %2627
        %v2629 = vadd.f32 %v2546, %v2547
        %2630 = vadd.xlane.f32.xlu0 %v2629
        %v2631 = vpop.xlane.xlu0 %2630
        %v2632 = vadd.f32 %v2548, %v2549
        %2633 = vadd.xlane.f32.xlu0 %v2632
        %v2634 = vpop.xlane.xlu0 %2633
        %v2635 = vadd.f32 %v2550, %v2551
        %2636 = vadd.xlane.f32.xlu0 %v2635
        %v2637 = vpop.xlane.xlu0 %2636
        %v2638 = vadd.f32 %v2552, %v2553
        %2639 = vadd.xlane.f32.xlu0 %v2638
        %v2640 = vpop.xlane.xlu0 %2639
        %v2641 = vadd.f32 %v2554, %v2555
        %2642 = vadd.xlane.f32.xlu0 %v2641
        %v2643 = vpop.xlane.xlu0 %2642
        %v2644 = vadd.f32 %v2556, %v2557
        %2645 = vadd.xlane.f32.xlu0 %v2644
        %v2646 = vpop.xlane.xlu0 %2645
        %v2647 = vadd.f32 %v2558, %v2559
        %2648 = vadd.xlane.f32.xlu0 %v2647
        %v2649 = vpop.xlane.xlu0 %2648
        %v2650 = vadd.f32 %v2560, %v2561
        %2651 = vadd.xlane.f32.xlu0 %v2650
        %v2652 = vpop.xlane.xlu0 %2651
        %v2653 = vadd.f32 %v2562, %v2563
        %2654 = vadd.xlane.f32.xlu0 %v2653
        %v2655 = vpop.xlane.xlu0 %2654
        %v2656 = vadd.f32 %v2564, %v2565
        %2657 = vadd.xlane.f32.xlu0 %v2656
        %v2658 = vpop.xlane.xlu0 %2657
        %v2659 = vadd.f32 %v2566, %v2567
        %2660 = vadd.xlane.f32.xlu0 %v2659
        %v2661 = vpop.xlane.xlu0 %2660
        %v2662 = vadd.f32 %v2568, %v2569
        %2663 = vadd.xlane.f32.xlu0 %v2662
        %v2664 = vpop.xlane.xlu0 %2663
        %v2665 = vadd.f32 %v2570, %v2571
        %2666 = vadd.xlane.f32.xlu0 %v2665
        %v2667 = vpop.xlane.xlu0 %2666
        %vm2668 = vcmp.ge.f32.partialorder %v2574, 4.0
        %vm2669 = vcmp.ge.f32.partialorder %v2577, 4.0
        %vm2670 = vcmp.ge.f32.partialorder %v2580, 4.0
        %vm2671 = vcmp.ge.f32.partialorder %v2583, 4.0
        %vm2672 = vcmp.ge.f32.partialorder %v2586, 4.0
        %vm2673 = vcmp.ge.f32.partialorder %v2589, 4.0
        %vm2674 = vcmp.ge.f32.partialorder %v2592, 4.0
        %vm2675 = vcmp.ge.f32.partialorder %v2595, 4.0
        %vm2676 = vcmp.ge.f32.partialorder %v2598, 4.0
        %vm2677 = vcmp.ge.f32.partialorder %v2601, 4.0
        %vm2678 = vcmp.ge.f32.partialorder %v2604, 4.0
        %vm2679 = vcmp.ge.f32.partialorder %v2607, 4.0
        %vm2680 = vcmp.ge.f32.partialorder %v2610, 4.0
        %vm2681 = vcmp.ge.f32.partialorder %v2613, 4.0
        %vm2682 = vcmp.ge.f32.partialorder %v2616, 4.0
        %vm2683 = vcmp.ge.f32.partialorder %v2619, 4.0
        %vm2684 = vcmp.ge.f32.partialorder %v2622, 4.0
        %vm2685 = vcmp.ge.f32.partialorder %v2625, 4.0
        %vm2686 = vcmp.ge.f32.partialorder %v2628, 4.0
        %vm2687 = vcmp.ge.f32.partialorder %v2631, 4.0
        %vm2688 = vcmp.ge.f32.partialorder %v2634, 4.0
        %vm2689 = vcmp.ge.f32.partialorder %v2637, 4.0
        %vm2690 = vcmp.ge.f32.partialorder %v2640, 4.0
        %vm2691 = vcmp.ge.f32.partialorder %v2643, 4.0
        %vm2692 = vcmp.ge.f32.partialorder %v2646, 4.0
        %vm2693 = vcmp.ge.f32.partialorder %v2649, 4.0
        %vm2694 = vcmp.ge.f32.partialorder %v2652, 4.0
        %vm2695 = vcmp.ge.f32.partialorder %v2655, 4.0
        %vm2696 = vcmp.ge.f32.partialorder %v2658, 4.0
        %vm2697 = vcmp.ge.f32.partialorder %v2661, 4.0
        %vm2698 = vcmp.ge.f32.partialorder %v2664, 4.0
        %vm2699 = vcmp.ge.f32.partialorder %v2667, 4.0
        %vm2700 = vmxor %vm2188, 1
        %vm2701 = vmxor %vm2189, 1
        %vm2702 = vmxor %vm2190, 1
        %vm2703 = vmxor %vm2191, 1
        %vm2704 = vmxor %vm2192, 1
        %vm2705 = vmxor %vm2193, 1
        %vm2706 = vmxor %vm2194, 1
        %vm2707 = vmxor %vm2195, 1
        %vm2708 = vmxor %vm2196, 1
        %vm2709 = vmxor %vm2197, 1
        %vm2710 = vmxor %vm2198, 1
        %vm2711 = vmxor %vm2199, 1
        %vm2712 = vmxor %vm2200, 1
        %vm2713 = vmxor %vm2201, 1
        %vm2714 = vmxor %vm2202, 1
        %vm2715 = vmxor %vm2203, 1
        %vm2716 = vmxor %vm2204, 1
        %vm2717 = vmxor %vm2205, 1
        %vm2718 = vmxor %vm2206, 1
        %vm2719 = vmxor %vm2207, 1
        %vm2720 = vmxor %vm2208, 1
        %vm2721 = vmxor %vm2209, 1
        %vm2722 = vmxor %vm2210, 1
        %vm2723 = vmxor %vm2211, 1
        %vm2724 = vmxor %vm2212, 1
        %vm2725 = vmxor %vm2213, 1
        %vm2726 = vmxor %vm2214, 1
        %vm2727 = vmxor %vm2215, 1
        %vm2728 = vmxor %vm2216, 1
        %vm2729 = vmxor %vm2217, 1
        %vm2730 = vmxor %vm2218, 1
        %vm2731 = vmxor %vm2219, 1
        %vm2732 = vmand %vm2700, %vm2668
        %vm2733 = vmand %vm2701, %vm2669
        %vm2734 = vmand %vm2702, %vm2670
        %vm2735 = vmand %vm2703, %vm2671
        %vm2736 = vmand %vm2704, %vm2672
        %vm2737 = vmand %vm2705, %vm2673
        %vm2738 = vmand %vm2706, %vm2674
        %vm2739 = vmand %vm2707, %vm2675
        %vm2740 = vmand %vm2708, %vm2676
        %vm2741 = vmand %vm2709, %vm2677
        %vm2742 = vmand %vm2710, %vm2678
        %vm2743 = vmand %vm2711, %vm2679
        %vm2744 = vmand %vm2712, %vm2680
        %vm2745 = vmand %vm2713, %vm2681
        %vm2746 = vmand %vm2714, %vm2682
        %vm2747 = vmand %vm2715, %vm2683
        %vm2748 = vmand %vm2716, %vm2684
        %vm2749 = vmand %vm2717, %vm2685
        %vm2750 = vmand %vm2718, %vm2686
        %vm2751 = vmand %vm2719, %vm2687
        %vm2752 = vmand %vm2720, %vm2688
        %vm2753 = vmand %vm2721, %vm2689
        %vm2754 = vmand %vm2722, %vm2690
        %vm2755 = vmand %vm2723, %vm2691
        %vm2756 = vmand %vm2724, %vm2692
        %vm2757 = vmand %vm2725, %vm2693
        %vm2758 = vmand %vm2726, %vm2694
        %vm2759 = vmand %vm2727, %vm2695
        %vm2760 = vmand %vm2728, %vm2696
        %vm2761 = vmand %vm2729, %vm2697
        %vm2762 = vmand %vm2730, %vm2698
        %vm2763 = vmand %vm2731, %vm2699
        %v2764 = vsel %vm2732, %v2350, %v2156
        %v2765 = vsel %vm2733, %v2353, %v2157
        %v2766 = vsel %vm2734, %v2356, %v2158
        %v2767 = vsel %vm2735, %v2359, %v2159
        %v2768 = vsel %vm2736, %v2362, %v2160
        %v2769 = vsel %vm2737, %v2365, %v2161
        %v2770 = vsel %vm2738, %v2368, %v2162
        %v2771 = vsel %vm2739, %v2371, %v2163
        %v2772 = vsel %vm2740, %v2374, %v2164
        %v2773 = vsel %vm2741, %v2377, %v2165
        %v2774 = vsel %vm2742, %v2380, %v2166
        %v2775 = vsel %vm2743, %v2383, %v2167
        %v2776 = vsel %vm2744, %v2386, %v2168
        %v2777 = vsel %vm2745, %v2389, %v2169
        %v2778 = vsel %vm2746, %v2392, %v2170
        %v2779 = vsel %vm2747, %v2395, %v2171
        %v2780 = vsel %vm2748, %v2398, %v2172
        %v2781 = vsel %vm2749, %v2401, %v2173
        %v2782 = vsel %vm2750, %v2404, %v2174
        %v2783 = vsel %vm2751, %v2407, %v2175
        %v2784 = vsel %vm2752, %v2410, %v2176
        %v2785 = vsel %vm2753, %v2413, %v2177
        %v2786 = vsel %vm2754, %v2416, %v2178
        %v2787 = vsel %vm2755, %v2419, %v2179
        %v2788 = vsel %vm2756, %v2422, %v2180
        %v2789 = vsel %vm2757, %v2425, %v2181
        %v2790 = vsel %vm2758, %v2428, %v2182
        %v2791 = vsel %vm2759, %v2431, %v2183
        %v2792 = vsel %vm2760, %v2434, %v2184
        %v2793 = vsel %vm2761, %v2437, %v2185
        %v2794 = vsel %vm2762, %v2440, %v2186
        %v2795 = vsel %vm2763, %v2443, %v2187
        %vm2796 = vmor %vm2188, %vm2668
        %vm2797 = vmor %vm2189, %vm2669
        %vm2798 = vmor %vm2190, %vm2670
        %vm2799 = vmor %vm2191, %vm2671
        %vm2800 = vmor %vm2192, %vm2672
        %vm2801 = vmor %vm2193, %vm2673
        %vm2802 = vmor %vm2194, %vm2674
        %vm2803 = vmor %vm2195, %vm2675
        %vm2804 = vmor %vm2196, %vm2676
        %vm2805 = vmor %vm2197, %vm2677
        %vm2806 = vmor %vm2198, %vm2678
        %vm2807 = vmor %vm2199, %vm2679
        %vm2808 = vmor %vm2200, %vm2680
        %vm2809 = vmor %vm2201, %vm2681
        %vm2810 = vmor %vm2202, %vm2682
        %vm2811 = vmor %vm2203, %vm2683
        %vm2812 = vmor %vm2204, %vm2684
        %vm2813 = vmor %vm2205, %vm2685
        %vm2814 = vmor %vm2206, %vm2686
        %vm2815 = vmor %vm2207, %vm2687
        %vm2816 = vmor %vm2208, %vm2688
        %vm2817 = vmor %vm2209, %vm2689
        %vm2818 = vmor %vm2210, %vm2690
        %vm2819 = vmor %vm2211, %vm2691
        %vm2820 = vmor %vm2212, %vm2692
        %vm2821 = vmor %vm2213, %vm2693
        %vm2822 = vmor %vm2214, %vm2694
        %vm2823 = vmor %vm2215, %vm2695
        %vm2824 = vmor %vm2216, %vm2696
        %vm2825 = vmor %vm2217, %vm2697
        %vm2826 = vmor %vm2218, %vm2698
        %vm2827 = vmor %vm2219, %vm2699
        %vm2828 = vcmp.lt.f32.partialorder %v1068, %v2350
        %vm2829 = vcmp.lt.f32.partialorder %v1069, %v2350
        %vm2830 = vcmp.lt.f32.partialorder %v1070, %v2353
        %vm2831 = vcmp.lt.f32.partialorder %v1071, %v2353
        %vm2832 = vcmp.lt.f32.partialorder %v1072, %v2356
        %vm2833 = vcmp.lt.f32.partialorder %v1073, %v2356
        %vm2834 = vcmp.lt.f32.partialorder %v1074, %v2359
        %vm2835 = vcmp.lt.f32.partialorder %v1075, %v2359
        %vm2836 = vcmp.lt.f32.partialorder %v1076, %v2362
        %vm2837 = vcmp.lt.f32.partialorder %v1077, %v2362
        %vm2838 = vcmp.lt.f32.partialorder %v1078, %v2365
        %vm2839 = vcmp.lt.f32.partialorder %v1079, %v2365
        %vm2840 = vcmp.lt.f32.partialorder %v1080, %v2368
        %vm2841 = vcmp.lt.f32.partialorder %v1081, %v2368
        %vm2842 = vcmp.lt.f32.partialorder %v1082, %v2371
        %vm2843 = vcmp.lt.f32.partialorder %v1083, %v2371
        %vm2844 = vcmp.lt.f32.partialorder %v1084, %v2374
        %vm2845 = vcmp.lt.f32.partialorder %v1085, %v2374
        %vm2846 = vcmp.lt.f32.partialorder %v1086, %v2377
        %vm2847 = vcmp.lt.f32.partialorder %v1087, %v2377
        %vm2848 = vcmp.lt.f32.partialorder %v1088, %v2380
        %vm2849 = vcmp.lt.f32.partialorder %v1089, %v2380
        %vm2850 = vcmp.lt.f32.partialorder %v1090, %v2383
        %vm2851 = vcmp.lt.f32.partialorder %v1091, %v2383
        %vm2852 = vcmp.lt.f32.partialorder %v1092, %v2386
        %vm2853 = vcmp.lt.f32.partialorder %v1093, %v2386
        %vm2854 = vcmp.lt.f32.partialorder %v1094, %v2389
        %vm2855 = vcmp.lt.f32.partialorder %v1095, %v2389
        %vm2856 = vcmp.lt.f32.partialorder %v1096, %v2392
        %vm2857 = vcmp.lt.f32.partialorder %v1097, %v2392
        %vm2858 = vcmp.lt.f32.partialorder %v1098, %v2395
        %vm2859 = vcmp.lt.f32.partialorder %v1099, %v2395
        %vm2860 = vcmp.lt.f32.partialorder %v1100, %v2398
        %vm2861 = vcmp.lt.f32.partialorder %v1101, %v2398
        %vm2862 = vcmp.lt.f32.partialorder %v1102, %v2401
        %vm2863 = vcmp.lt.f32.partialorder %v1103, %v2401
        %vm2864 = vcmp.lt.f32.partialorder %v1104, %v2404
        %vm2865 = vcmp.lt.f32.partialorder %v1105, %v2404
        %vm2866 = vcmp.lt.f32.partialorder %v1106, %v2407
        %vm2867 = vcmp.lt.f32.partialorder %v1107, %v2407
        %vm2868 = vcmp.lt.f32.partialorder %v1108, %v2410
        %vm2869 = vcmp.lt.f32.partialorder %v1109, %v2410
        %vm2870 = vcmp.lt.f32.partialorder %v1110, %v2413
        %vm2871 = vcmp.lt.f32.partialorder %v1111, %v2413
        %vm2872 = vcmp.lt.f32.partialorder %v1112, %v2416
        %vm2873 = vcmp.lt.f32.partialorder %v1113, %v2416
        %vm2874 = vcmp.lt.f32.partialorder %v1114, %v2419
        %vm2875 = vcmp.lt.f32.partialorder %v1115, %v2419
        %vm2876 = vcmp.lt.f32.partialorder %v1116, %v2422
        %vm2877 = vcmp.lt.f32.partialorder %v1117, %v2422
        %vm2878 = vcmp.lt.f32.partialorder %v1118, %v2425
        %vm2879 = vcmp.lt.f32.partialorder %v1119, %v2425
        %vm2880 = vcmp.lt.f32.partialorder %v1120, %v2428
        %vm2881 = vcmp.lt.f32.partialorder %v1121, %v2428
        %vm2882 = vcmp.lt.f32.partialorder %v1122, %v2431
        %vm2883 = vcmp.lt.f32.partialorder %v1123, %v2431
        %vm2884 = vcmp.lt.f32.partialorder %v1124, %v2434
        %vm2885 = vcmp.lt.f32.partialorder %v1125, %v2434
        %vm2886 = vcmp.lt.f32.partialorder %v1126, %v2437
        %vm2887 = vcmp.lt.f32.partialorder %v1127, %v2437
        %vm2888 = vcmp.lt.f32.partialorder %v1128, %v2440
        %vm2889 = vcmp.lt.f32.partialorder %v1129, %v2440
        %vm2890 = vcmp.lt.f32.partialorder %v1130, %v2443
        %vm2891 = vcmp.lt.f32.partialorder %v1131, %v2443
        %v2892 = vsel %vm2828, %v1068, -inf
        %v2893 = vsel %vm2829, %v1069, -inf
        %v2894 = vsel %vm2830, %v1070, -inf
        %v2895 = vsel %vm2831, %v1071, -inf
        %v2896 = vsel %vm2832, %v1072, -inf
        %v2897 = vsel %vm2833, %v1073, -inf
        %v2898 = vsel %vm2834, %v1074, -inf
        %v2899 = vsel %vm2835, %v1075, -inf
        %v2900 = vsel %vm2836, %v1076, -inf
        %v2901 = vsel %vm2837, %v1077, -inf
        %v2902 = vsel %vm2838, %v1078, -inf
        %v2903 = vsel %vm2839, %v1079, -inf
        %v2904 = vsel %vm2840, %v1080, -inf
        %v2905 = vsel %vm2841, %v1081, -inf
        %v2906 = vsel %vm2842, %v1082, -inf
        %v2907 = vsel %vm2843, %v1083, -inf
        %v2908 = vsel %vm2844, %v1084, -inf
        %v2909 = vsel %vm2845, %v1085, -inf
        %v2910 = vsel %vm2846, %v1086, -inf
        %v2911 = vsel %vm2847, %v1087, -inf
        %v2912 = vsel %vm2848, %v1088, -inf
        %v2913 = vsel %vm2849, %v1089, -inf
        %v2914 = vsel %vm2850, %v1090, -inf
        %v2915 = vsel %vm2851, %v1091, -inf
        %v2916 = vsel %vm2852, %v1092, -inf
        %v2917 = vsel %vm2853, %v1093, -inf
        %v2918 = vsel %vm2854, %v1094, -inf
        %v2919 = vsel %vm2855, %v1095, -inf
        %v2920 = vsel %vm2856, %v1096, -inf
        %v2921 = vsel %vm2857, %v1097, -inf
        %v2922 = vsel %vm2858, %v1098, -inf
        %v2923 = vsel %vm2859, %v1099, -inf
        %v2924 = vsel %vm2860, %v1100, -inf
        %v2925 = vsel %vm2861, %v1101, -inf
        %v2926 = vsel %vm2862, %v1102, -inf
        %v2927 = vsel %vm2863, %v1103, -inf
        %v2928 = vsel %vm2864, %v1104, -inf
        %v2929 = vsel %vm2865, %v1105, -inf
        %v2930 = vsel %vm2866, %v1106, -inf
        %v2931 = vsel %vm2867, %v1107, -inf
        %v2932 = vsel %vm2868, %v1108, -inf
        %v2933 = vsel %vm2869, %v1109, -inf
        %v2934 = vsel %vm2870, %v1110, -inf
        %v2935 = vsel %vm2871, %v1111, -inf
        %v2936 = vsel %vm2872, %v1112, -inf
        %v2937 = vsel %vm2873, %v1113, -inf
        %v2938 = vsel %vm2874, %v1114, -inf
        %v2939 = vsel %vm2875, %v1115, -inf
        %v2940 = vsel %vm2876, %v1116, -inf
        %v2941 = vsel %vm2877, %v1117, -inf
        %v2942 = vsel %vm2878, %v1118, -inf
        %v2943 = vsel %vm2879, %v1119, -inf
        %v2944 = vsel %vm2880, %v1120, -inf
        %v2945 = vsel %vm2881, %v1121, -inf
        %v2946 = vsel %vm2882, %v1122, -inf
        %v2947 = vsel %vm2883, %v1123, -inf
        %v2948 = vsel %vm2884, %v1124, -inf
        %v2949 = vsel %vm2885, %v1125, -inf
        %v2950 = vsel %vm2886, %v1126, -inf
        %v2951 = vsel %vm2887, %v1127, -inf
        %v2952 = vsel %vm2888, %v1128, -inf
        %v2953 = vsel %vm2889, %v1129, -inf
        %v2954 = vsel %vm2890, %v1130, -inf
        %v2955 = vsel %vm2891, %v1131, -inf
        %v2956 = vmax.f32 %v2892, %v2893
        %2957 = vmax.xlane.f32.xlu0 %v2956
        %v2958 = vpop.xlane.xlu0 %2957
        %v2959 = vmax.f32 %v2894, %v2895
        %2960 = vmax.xlane.f32.xlu0 %v2959
        %v2961 = vpop.xlane.xlu0 %2960
        %v2962 = vmax.f32 %v2896, %v2897
        %2963 = vmax.xlane.f32.xlu0 %v2962
        %v2964 = vpop.xlane.xlu0 %2963
        %v2965 = vmax.f32 %v2898, %v2899
        %2966 = vmax.xlane.f32.xlu0 %v2965
        %v2967 = vpop.xlane.xlu0 %2966
        %v2968 = vmax.f32 %v2900, %v2901
        %2969 = vmax.xlane.f32.xlu0 %v2968
        %v2970 = vpop.xlane.xlu0 %2969
        %v2971 = vmax.f32 %v2902, %v2903
        %2972 = vmax.xlane.f32.xlu0 %v2971
        %v2973 = vpop.xlane.xlu0 %2972
        %v2974 = vmax.f32 %v2904, %v2905
        %2975 = vmax.xlane.f32.xlu0 %v2974
        %v2976 = vpop.xlane.xlu0 %2975
        %v2977 = vmax.f32 %v2906, %v2907
        %2978 = vmax.xlane.f32.xlu0 %v2977
        %v2979 = vpop.xlane.xlu0 %2978
        %v2980 = vmax.f32 %v2908, %v2909
        %2981 = vmax.xlane.f32.xlu0 %v2980
        %v2982 = vpop.xlane.xlu0 %2981
        %v2983 = vmax.f32 %v2910, %v2911
        %2984 = vmax.xlane.f32.xlu0 %v2983
        %v2985 = vpop.xlane.xlu0 %2984
        %v2986 = vmax.f32 %v2912, %v2913
        %2987 = vmax.xlane.f32.xlu0 %v2986
        %v2988 = vpop.xlane.xlu0 %2987
        %v2989 = vmax.f32 %v2914, %v2915
        %2990 = vmax.xlane.f32.xlu0 %v2989
        %v2991 = vpop.xlane.xlu0 %2990
        %v2992 = vmax.f32 %v2916, %v2917
        %2993 = vmax.xlane.f32.xlu0 %v2992
        %v2994 = vpop.xlane.xlu0 %2993
        %v2995 = vmax.f32 %v2918, %v2919
        %2996 = vmax.xlane.f32.xlu0 %v2995
        %v2997 = vpop.xlane.xlu0 %2996
        %v2998 = vmax.f32 %v2920, %v2921
        %2999 = vmax.xlane.f32.xlu0 %v2998
        %v3000 = vpop.xlane.xlu0 %2999
        %v3001 = vmax.f32 %v2922, %v2923
        %3002 = vmax.xlane.f32.xlu0 %v3001
        %v3003 = vpop.xlane.xlu0 %3002
        %v3004 = vmax.f32 %v2924, %v2925
        %3005 = vmax.xlane.f32.xlu0 %v3004
        %v3006 = vpop.xlane.xlu0 %3005
        %v3007 = vmax.f32 %v2926, %v2927
        %3008 = vmax.xlane.f32.xlu0 %v3007
        %v3009 = vpop.xlane.xlu0 %3008
        %v3010 = vmax.f32 %v2928, %v2929
        %3011 = vmax.xlane.f32.xlu0 %v3010
        %v3012 = vpop.xlane.xlu0 %3011
        %v3013 = vmax.f32 %v2930, %v2931
        %3014 = vmax.xlane.f32.xlu0 %v3013
        %v3015 = vpop.xlane.xlu0 %3014
        %v3016 = vmax.f32 %v2932, %v2933
        %3017 = vmax.xlane.f32.xlu0 %v3016
        %v3018 = vpop.xlane.xlu0 %3017
        %v3019 = vmax.f32 %v2934, %v2935
        %3020 = vmax.xlane.f32.xlu0 %v3019
        %v3021 = vpop.xlane.xlu0 %3020
        %v3022 = vmax.f32 %v2936, %v2937
        %3023 = vmax.xlane.f32.xlu0 %v3022
        %v3024 = vpop.xlane.xlu0 %3023
        %v3025 = vmax.f32 %v2938, %v2939
        %3026 = vmax.xlane.f32.xlu0 %v3025
        %v3027 = vpop.xlane.xlu0 %3026
        %v3028 = vmax.f32 %v2940, %v2941
        %3029 = vmax.xlane.f32.xlu0 %v3028
        %v3030 = vpop.xlane.xlu0 %3029
        %v3031 = vmax.f32 %v2942, %v2943
        %3032 = vmax.xlane.f32.xlu0 %v3031
        %v3033 = vpop.xlane.xlu0 %3032
        %v3034 = vmax.f32 %v2944, %v2945
        %3035 = vmax.xlane.f32.xlu0 %v3034
        %v3036 = vpop.xlane.xlu0 %3035
        %v3037 = vmax.f32 %v2946, %v2947
        %3038 = vmax.xlane.f32.xlu0 %v3037
        %v3039 = vpop.xlane.xlu0 %3038
        %v3040 = vmax.f32 %v2948, %v2949
        %3041 = vmax.xlane.f32.xlu0 %v3040
        %v3042 = vpop.xlane.xlu0 %3041
        %v3043 = vmax.f32 %v2950, %v2951
        %3044 = vmax.xlane.f32.xlu0 %v3043
        %v3045 = vpop.xlane.xlu0 %3044
        %v3046 = vmax.f32 %v2952, %v2953
        %3047 = vmax.xlane.f32.xlu0 %v3046
        %v3048 = vpop.xlane.xlu0 %3047
        %v3049 = vmax.f32 %v2954, %v2955
        %3050 = vmax.xlane.f32.xlu0 %v3049
        %v3051 = vpop.xlane.xlu0 %3050
        %v3052 = vsel %vm2796, %v2764, %v2958
        %v3053 = vsel %vm2797, %v2765, %v2961
        %v3054 = vsel %vm2798, %v2766, %v2964
        %v3055 = vsel %vm2799, %v2767, %v2967
        %v3056 = vsel %vm2800, %v2768, %v2970
        %v3057 = vsel %vm2801, %v2769, %v2973
        %v3058 = vsel %vm2802, %v2770, %v2976
        %v3059 = vsel %vm2803, %v2771, %v2979
        %v3060 = vsel %vm2804, %v2772, %v2982
        %v3061 = vsel %vm2805, %v2773, %v2985
        %v3062 = vsel %vm2806, %v2774, %v2988
        %v3063 = vsel %vm2807, %v2775, %v2991
        %v3064 = vsel %vm2808, %v2776, %v2994
        %v3065 = vsel %vm2809, %v2777, %v2997
        %v3066 = vsel %vm2810, %v2778, %v3000
        %v3067 = vsel %vm2811, %v2779, %v3003
        %v3068 = vsel %vm2812, %v2780, %v3006
        %v3069 = vsel %vm2813, %v2781, %v3009
        %v3070 = vsel %vm2814, %v2782, %v3012
        %v3071 = vsel %vm2815, %v2783, %v3015
        %v3072 = vsel %vm2816, %v2784, %v3018
        %v3073 = vsel %vm2817, %v2785, %v3021
        %v3074 = vsel %vm2818, %v2786, %v3024
        %v3075 = vsel %vm2819, %v2787, %v3027
        %v3076 = vsel %vm2820, %v2788, %v3030
        %v3077 = vsel %vm2821, %v2789, %v3033
        %v3078 = vsel %vm2822, %v2790, %v3036
        %v3079 = vsel %vm2823, %v2791, %v3039
        %v3080 = vsel %vm2824, %v2792, %v3042
        %v3081 = vsel %vm2825, %v2793, %v3045
        %v3082 = vsel %vm2826, %v2794, %v3048
        %v3083 = vsel %vm2827, %v2795, %v3051
        %vm3084 = vcmp.lt.f32.partialorder %v1068, %v3052
        %vm3085 = vcmp.lt.f32.partialorder %v1069, %v3052
        %vm3086 = vcmp.lt.f32.partialorder %v1070, %v3053
        %vm3087 = vcmp.lt.f32.partialorder %v1071, %v3053
        %vm3088 = vcmp.lt.f32.partialorder %v1072, %v3054
        %vm3089 = vcmp.lt.f32.partialorder %v1073, %v3054
        %vm3090 = vcmp.lt.f32.partialorder %v1074, %v3055
        %vm3091 = vcmp.lt.f32.partialorder %v1075, %v3055
        %vm3092 = vcmp.lt.f32.partialorder %v1076, %v3056
        %vm3093 = vcmp.lt.f32.partialorder %v1077, %v3056
        %vm3094 = vcmp.lt.f32.partialorder %v1078, %v3057
        %vm3095 = vcmp.lt.f32.partialorder %v1079, %v3057
        %vm3096 = vcmp.lt.f32.partialorder %v1080, %v3058
        %vm3097 = vcmp.lt.f32.partialorder %v1081, %v3058
        %vm3098 = vcmp.lt.f32.partialorder %v1082, %v3059
        %vm3099 = vcmp.lt.f32.partialorder %v1083, %v3059
        %vm3100 = vcmp.lt.f32.partialorder %v1084, %v3060
        %vm3101 = vcmp.lt.f32.partialorder %v1085, %v3060
        %vm3102 = vcmp.lt.f32.partialorder %v1086, %v3061
        %vm3103 = vcmp.lt.f32.partialorder %v1087, %v3061
        %vm3104 = vcmp.lt.f32.partialorder %v1088, %v3062
        %vm3105 = vcmp.lt.f32.partialorder %v1089, %v3062
        %vm3106 = vcmp.lt.f32.partialorder %v1090, %v3063
        %vm3107 = vcmp.lt.f32.partialorder %v1091, %v3063
        %vm3108 = vcmp.lt.f32.partialorder %v1092, %v3064
        %vm3109 = vcmp.lt.f32.partialorder %v1093, %v3064
        %vm3110 = vcmp.lt.f32.partialorder %v1094, %v3065
        %vm3111 = vcmp.lt.f32.partialorder %v1095, %v3065
        %vm3112 = vcmp.lt.f32.partialorder %v1096, %v3066
        %vm3113 = vcmp.lt.f32.partialorder %v1097, %v3066
        %vm3114 = vcmp.lt.f32.partialorder %v1098, %v3067
        %vm3115 = vcmp.lt.f32.partialorder %v1099, %v3067
        %vm3116 = vcmp.lt.f32.partialorder %v1100, %v3068
        %vm3117 = vcmp.lt.f32.partialorder %v1101, %v3068
        %vm3118 = vcmp.lt.f32.partialorder %v1102, %v3069
        %vm3119 = vcmp.lt.f32.partialorder %v1103, %v3069
        %vm3120 = vcmp.lt.f32.partialorder %v1104, %v3070
        %vm3121 = vcmp.lt.f32.partialorder %v1105, %v3070
        %vm3122 = vcmp.lt.f32.partialorder %v1106, %v3071
        %vm3123 = vcmp.lt.f32.partialorder %v1107, %v3071
        %vm3124 = vcmp.lt.f32.partialorder %v1108, %v3072
        %vm3125 = vcmp.lt.f32.partialorder %v1109, %v3072
        %vm3126 = vcmp.lt.f32.partialorder %v1110, %v3073
        %vm3127 = vcmp.lt.f32.partialorder %v1111, %v3073
        %vm3128 = vcmp.lt.f32.partialorder %v1112, %v3074
        %vm3129 = vcmp.lt.f32.partialorder %v1113, %v3074
        %vm3130 = vcmp.lt.f32.partialorder %v1114, %v3075
        %vm3131 = vcmp.lt.f32.partialorder %v1115, %v3075
        %vm3132 = vcmp.lt.f32.partialorder %v1116, %v3076
        %vm3133 = vcmp.lt.f32.partialorder %v1117, %v3076
        %vm3134 = vcmp.lt.f32.partialorder %v1118, %v3077
        %vm3135 = vcmp.lt.f32.partialorder %v1119, %v3077
        %vm3136 = vcmp.lt.f32.partialorder %v1120, %v3078
        %vm3137 = vcmp.lt.f32.partialorder %v1121, %v3078
        %vm3138 = vcmp.lt.f32.partialorder %v1122, %v3079
        %vm3139 = vcmp.lt.f32.partialorder %v1123, %v3079
        %vm3140 = vcmp.lt.f32.partialorder %v1124, %v3080
        %vm3141 = vcmp.lt.f32.partialorder %v1125, %v3080
        %vm3142 = vcmp.lt.f32.partialorder %v1126, %v3081
        %vm3143 = vcmp.lt.f32.partialorder %v1127, %v3081
        %vm3144 = vcmp.lt.f32.partialorder %v1128, %v3082
        %vm3145 = vcmp.lt.f32.partialorder %v1129, %v3082
        %vm3146 = vcmp.lt.f32.partialorder %v1130, %v3083
        %vm3147 = vcmp.lt.f32.partialorder %v1131, %v3083
        %v3148 = vsel %vm3084, %v1134, %v1068
        %v3149 = vsel %vm3085, %v1134, %v1069
        %v3150 = vsel %vm3086, %v1137, %v1070
        %v3151 = vsel %vm3087, %v1137, %v1071
        %v3152 = vsel %vm3088, %v1140, %v1072
        %v3153 = vsel %vm3089, %v1140, %v1073
        %v3154 = vsel %vm3090, %v1143, %v1074
        %v3155 = vsel %vm3091, %v1143, %v1075
        %v3156 = vsel %vm3092, %v1146, %v1076
        %v3157 = vsel %vm3093, %v1146, %v1077
        %v3158 = vsel %vm3094, %v1149, %v1078
        %v3159 = vsel %vm3095, %v1149, %v1079
        %v3160 = vsel %vm3096, %v1152, %v1080
        %v3161 = vsel %vm3097, %v1152, %v1081
        %v3162 = vsel %vm3098, %v1155, %v1082
        %v3163 = vsel %vm3099, %v1155, %v1083
        %v3164 = vsel %vm3100, %v1158, %v1084
        %v3165 = vsel %vm3101, %v1158, %v1085
        %v3166 = vsel %vm3102, %v1161, %v1086
        %v3167 = vsel %vm3103, %v1161, %v1087
        %v3168 = vsel %vm3104, %v1164, %v1088
        %v3169 = vsel %vm3105, %v1164, %v1089
        %v3170 = vsel %vm3106, %v1167, %v1090
        %v3171 = vsel %vm3107, %v1167, %v1091
        %v3172 = vsel %vm3108, %v1170, %v1092
        %v3173 = vsel %vm3109, %v1170, %v1093
        %v3174 = vsel %vm3110, %v1173, %v1094
        %v3175 = vsel %vm3111, %v1173, %v1095
        %v3176 = vsel %vm3112, %v1176, %v1096
        %v3177 = vsel %vm3113, %v1176, %v1097
        %v3178 = vsel %vm3114, %v1179, %v1098
        %v3179 = vsel %vm3115, %v1179, %v1099
        %v3180 = vsel %vm3116, %v1182, %v1100
        %v3181 = vsel %vm3117, %v1182, %v1101
        %v3182 = vsel %vm3118, %v1185, %v1102
        %v3183 = vsel %vm3119, %v1185, %v1103
        %v3184 = vsel %vm3120, %v1188, %v1104
        %v3185 = vsel %vm3121, %v1188, %v1105
        %v3186 = vsel %vm3122, %v1191, %v1106
        %v3187 = vsel %vm3123, %v1191, %v1107
        %v3188 = vsel %vm3124, %v1194, %v1108
        %v3189 = vsel %vm3125, %v1194, %v1109
        %v3190 = vsel %vm3126, %v1197, %v1110
        %v3191 = vsel %vm3127, %v1197, %v1111
        %v3192 = vsel %vm3128, %v1200, %v1112
        %v3193 = vsel %vm3129, %v1200, %v1113
        %v3194 = vsel %vm3130, %v1203, %v1114
        %v3195 = vsel %vm3131, %v1203, %v1115
        %v3196 = vsel %vm3132, %v1206, %v1116
        %v3197 = vsel %vm3133, %v1206, %v1117
        %v3198 = vsel %vm3134, %v1209, %v1118
        %v3199 = vsel %vm3135, %v1209, %v1119
        %v3200 = vsel %vm3136, %v1212, %v1120
        %v3201 = vsel %vm3137, %v1212, %v1121
        %v3202 = vsel %vm3138, %v1215, %v1122
        %v3203 = vsel %vm3139, %v1215, %v1123
        %v3204 = vsel %vm3140, %v1218, %v1124
        %v3205 = vsel %vm3141, %v1218, %v1125
        %v3206 = vsel %vm3142, %v1221, %v1126
        %v3207 = vsel %vm3143, %v1221, %v1127
        %v3208 = vsel %vm3144, %v1224, %v1128
        %v3209 = vsel %vm3145, %v1224, %v1129
        %v3210 = vsel %vm3146, %v1227, %v1130
        %v3211 = vsel %vm3147, %v1227, %v1131
        %3213 = vset.pattern.permute.xlu0 0
        %3214 = vperm.xlu0 %3213, %v365
        %v3215 = vpop.permute.xlu0 %3214
        %3218 = vset.pattern.permute.xlu0 0
        %3219 = vperm.xlu0 %3218, %v366
        %v3220 = vpop.permute.xlu0 %3219
        %3223 = vset.pattern.permute.xlu0 0
        %3224 = vperm.xlu0 %3223, %v367
        %v3225 = vpop.permute.xlu0 %3224
        %3228 = vset.pattern.permute.xlu0 0
        %3229 = vperm.xlu0 %3228, %v368
        %v3230 = vpop.permute.xlu0 %3229
        %3233 = vset.pattern.permute.xlu0 0
        %3234 = vperm.xlu0 %3233, %v369
        %v3235 = vpop.permute.xlu0 %3234
        %3238 = vset.pattern.permute.xlu0 0
        %3239 = vperm.xlu0 %3238, %v370
        %v3240 = vpop.permute.xlu0 %3239
        %3243 = vset.pattern.permute.xlu0 0
        %3244 = vperm.xlu0 %3243, %v371
        %v3245 = vpop.permute.xlu0 %3244
        %3248 = vset.pattern.permute.xlu0 0
        %3249 = vperm.xlu0 %3248, %v372
        %v3250 = vpop.permute.xlu0 %3249
        %3253 = vset.pattern.permute.xlu0 0
        %3254 = vperm.xlu0 %3253, %v373
        %v3255 = vpop.permute.xlu0 %3254
        %3258 = vset.pattern.permute.xlu0 0
        %3259 = vperm.xlu0 %3258, %v374
        %v3260 = vpop.permute.xlu0 %3259
        %3263 = vset.pattern.permute.xlu0 0
        %3264 = vperm.xlu0 %3263, %v375
        %v3265 = vpop.permute.xlu0 %3264
        %3268 = vset.pattern.permute.xlu0 0
        %3269 = vperm.xlu0 %3268, %v376
        %v3270 = vpop.permute.xlu0 %3269
        %3273 = vset.pattern.permute.xlu0 0
        %3274 = vperm.xlu0 %3273, %v377
        %v3275 = vpop.permute.xlu0 %3274
        %3278 = vset.pattern.permute.xlu0 0
        %3279 = vperm.xlu0 %3278, %v378
        %v3280 = vpop.permute.xlu0 %3279
        %3283 = vset.pattern.permute.xlu0 0
        %3284 = vperm.xlu0 %3283, %v379
        %v3285 = vpop.permute.xlu0 %3284
        %3288 = vset.pattern.permute.xlu0 0
        %3289 = vperm.xlu0 %3288, %v380
        %v3290 = vpop.permute.xlu0 %3289
        %3293 = vset.pattern.permute.xlu0 0
        %3294 = vperm.xlu0 %3293, %v381
        %v3295 = vpop.permute.xlu0 %3294
        %3298 = vset.pattern.permute.xlu0 0
        %3299 = vperm.xlu0 %3298, %v382
        %v3300 = vpop.permute.xlu0 %3299
        %3303 = vset.pattern.permute.xlu0 0
        %3304 = vperm.xlu0 %3303, %v383
        %v3305 = vpop.permute.xlu0 %3304
        %3308 = vset.pattern.permute.xlu0 0
        %3309 = vperm.xlu0 %3308, %v384
        %v3310 = vpop.permute.xlu0 %3309
        %3313 = vset.pattern.permute.xlu0 0
        %3314 = vperm.xlu0 %3313, %v385
        %v3315 = vpop.permute.xlu0 %3314
        %3318 = vset.pattern.permute.xlu0 0
        %3319 = vperm.xlu0 %3318, %v386
        %v3320 = vpop.permute.xlu0 %3319
        %3323 = vset.pattern.permute.xlu0 0
        %3324 = vperm.xlu0 %3323, %v387
        %v3325 = vpop.permute.xlu0 %3324
        %3328 = vset.pattern.permute.xlu0 0
        %3329 = vperm.xlu0 %3328, %v388
        %v3330 = vpop.permute.xlu0 %3329
        %3333 = vset.pattern.permute.xlu0 0
        %3334 = vperm.xlu0 %3333, %v389
        %v3335 = vpop.permute.xlu0 %3334
        %3338 = vset.pattern.permute.xlu0 0
        %3339 = vperm.xlu0 %3338, %v390
        %v3340 = vpop.permute.xlu0 %3339
        %3343 = vset.pattern.permute.xlu0 0
        %3344 = vperm.xlu0 %3343, %v391
        %v3345 = vpop.permute.xlu0 %3344
        %3348 = vset.pattern.permute.xlu0 0
        %3349 = vperm.xlu0 %3348, %v392
        %v3350 = vpop.permute.xlu0 %3349
        %3353 = vset.pattern.permute.xlu0 0
        %3354 = vperm.xlu0 %3353, %v393
        %v3355 = vpop.permute.xlu0 %3354
        %3358 = vset.pattern.permute.xlu0 0
        %3359 = vperm.xlu0 %3358, %v394
        %v3360 = vpop.permute.xlu0 %3359
        %3363 = vset.pattern.permute.xlu0 0
        %3364 = vperm.xlu0 %3363, %v395
        %v3365 = vpop.permute.xlu0 %3364
        %3368 = vset.pattern.permute.xlu0 0
        %3369 = vperm.xlu0 %3368, %v396
        %v3370 = vpop.permute.xlu0 %3369
        %v3372 = vmul.f32 %v3148, %v3215
        %v3373 = vmul.f32 %v3149, %v3215
        %v3374 = vmul.f32 %v3150, %v3220
        %v3375 = vmul.f32 %v3151, %v3220
        %v3376 = vmul.f32 %v3152, %v3225
        %v3377 = vmul.f32 %v3153, %v3225
        %v3378 = vmul.f32 %v3154, %v3230
        %v3379 = vmul.f32 %v3155, %v3230
        %v3380 = vmul.f32 %v3156, %v3235
        %v3381 = vmul.f32 %v3157, %v3235
        %v3382 = vmul.f32 %v3158, %v3240
        %v3383 = vmul.f32 %v3159, %v3240
        %v3384 = vmul.f32 %v3160, %v3245
        %v3385 = vmul.f32 %v3161, %v3245
        %v3386 = vmul.f32 %v3162, %v3250
        %v3387 = vmul.f32 %v3163, %v3250
        %v3388 = vmul.f32 %v3164, %v3255
        %v3389 = vmul.f32 %v3165, %v3255
        %v3390 = vmul.f32 %v3166, %v3260
        %v3391 = vmul.f32 %v3167, %v3260
        %v3392 = vmul.f32 %v3168, %v3265
        %v3393 = vmul.f32 %v3169, %v3265
        %v3394 = vmul.f32 %v3170, %v3270
        %v3395 = vmul.f32 %v3171, %v3270
        %v3396 = vmul.f32 %v3172, %v3275
        %v3397 = vmul.f32 %v3173, %v3275
        %v3398 = vmul.f32 %v3174, %v3280
        %v3399 = vmul.f32 %v3175, %v3280
        %v3400 = vmul.f32 %v3176, %v3285
        %v3401 = vmul.f32 %v3177, %v3285
        %v3402 = vmul.f32 %v3178, %v3290
        %v3403 = vmul.f32 %v3179, %v3290
        %v3404 = vmul.f32 %v3180, %v3295
        %v3405 = vmul.f32 %v3181, %v3295
        %v3406 = vmul.f32 %v3182, %v3300
        %v3407 = vmul.f32 %v3183, %v3300
        %v3408 = vmul.f32 %v3184, %v3305
        %v3409 = vmul.f32 %v3185, %v3305
        %v3410 = vmul.f32 %v3186, %v3310
        %v3411 = vmul.f32 %v3187, %v3310
        %v3412 = vmul.f32 %v3188, %v3315
        %v3413 = vmul.f32 %v3189, %v3315
        %v3414 = vmul.f32 %v3190, %v3320
        %v3415 = vmul.f32 %v3191, %v3320
        %v3416 = vmul.f32 %v3192, %v3325
        %v3417 = vmul.f32 %v3193, %v3325
        %v3418 = vmul.f32 %v3194, %v3330
        %v3419 = vmul.f32 %v3195, %v3330
        %v3420 = vmul.f32 %v3196, %v3335
        %v3421 = vmul.f32 %v3197, %v3335
        %v3422 = vmul.f32 %v3198, %v3340
        %v3423 = vmul.f32 %v3199, %v3340
        %v3424 = vmul.f32 %v3200, %v3345
        %v3425 = vmul.f32 %v3201, %v3345
        %v3426 = vmul.f32 %v3202, %v3350
        %v3427 = vmul.f32 %v3203, %v3350
        %v3428 = vmul.f32 %v3204, %v3355
        %v3429 = vmul.f32 %v3205, %v3355
        %v3430 = vmul.f32 %v3206, %v3360
        %v3431 = vmul.f32 %v3207, %v3360
        %v3432 = vmul.f32 %v3208, %v3365
        %v3433 = vmul.f32 %v3209, %v3365
        %v3434 = vmul.f32 %v3210, %v3370
        %v3435 = vmul.f32 %v3211, %v3370
        %v3436 = vmax.f32 %v3372, %v3376
        %v3437 = vmax.f32 %v3374, %v3378
        %v3438 = vmax.f32 %v3436, %v3380
        %v3439 = vmax.f32 %v3437, %v3382
        %v3440 = vmax.f32 %v3438, %v3384
        %v3441 = vmax.f32 %v3439, %v3386
        %v3442 = vmax.f32 %v3440, %v3388
        %v3443 = vmax.f32 %v3441, %v3390
        %v3444 = vmax.f32 %v3442, %v3392
        %v3445 = vmax.f32 %v3443, %v3394
        %v3446 = vmax.f32 %v3444, %v3396
        %v3447 = vmax.f32 %v3445, %v3398
        %v3448 = vmax.f32 %v3446, %v3400
        %v3449 = vmax.f32 %v3447, %v3402
        %v3450 = vmax.f32 %v3448, %v3404
        %v3451 = vmax.f32 %v3449, %v3406
        %v3452 = vmax.f32 %v3450, %v3408
        %v3453 = vmax.f32 %v3451, %v3410
        %v3454 = vmax.f32 %v3452, %v3412
        %v3455 = vmax.f32 %v3453, %v3414
        %v3456 = vmax.f32 %v3454, %v3416
        %v3457 = vmax.f32 %v3455, %v3418
        %v3458 = vmax.f32 %v3456, %v3420
        %v3459 = vmax.f32 %v3457, %v3422
        %v3460 = vmax.f32 %v3458, %v3424
        %v3461 = vmax.f32 %v3459, %v3426
        %v3462 = vmax.f32 %v3460, %v3428
        %v3463 = vmax.f32 %v3461, %v3430
        %v3464 = vmax.f32 %v3462, %v3432
        %v3465 = vmax.f32 %v3463, %v3434
        %v3466 = vmax.f32 %v3464, %v3465
        %v3467 = vrot.slane %v3466, 4
        %v3468 = vmax.f32 %v3466, %v3467
        %v3469 = vrot.slane %v3468, 2
        %v3470 = vmax.f32 %v3468, %v3469
        %v3471 = vrot.slane %v3470, 1
        %v3472 = vmax.f32 %v3470, %v3471
        %v3473 = vmax.f32 %v3373, %v3377
        %v3474 = vmax.f32 %v3375, %v3379
        %v3475 = vmax.f32 %v3473, %v3381
        %v3476 = vmax.f32 %v3474, %v3383
        %v3477 = vmax.f32 %v3475, %v3385
        %v3478 = vmax.f32 %v3476, %v3387
        %v3479 = vmax.f32 %v3477, %v3389
        %v3480 = vmax.f32 %v3478, %v3391
        %v3481 = vmax.f32 %v3479, %v3393
        %v3482 = vmax.f32 %v3480, %v3395
        %v3483 = vmax.f32 %v3481, %v3397
        %v3484 = vmax.f32 %v3482, %v3399
        %v3485 = vmax.f32 %v3483, %v3401
        %v3486 = vmax.f32 %v3484, %v3403
        %v3487 = vmax.f32 %v3485, %v3405
        %v3488 = vmax.f32 %v3486, %v3407
        %v3489 = vmax.f32 %v3487, %v3409
        %v3490 = vmax.f32 %v3488, %v3411
        %v3491 = vmax.f32 %v3489, %v3413
        %v3492 = vmax.f32 %v3490, %v3415
        %v3493 = vmax.f32 %v3491, %v3417
        %v3494 = vmax.f32 %v3492, %v3419
        %v3495 = vmax.f32 %v3493, %v3421
        %v3496 = vmax.f32 %v3494, %v3423
        %v3497 = vmax.f32 %v3495, %v3425
        %v3498 = vmax.f32 %v3496, %v3427
        %v3499 = vmax.f32 %v3497, %v3429
        %v3500 = vmax.f32 %v3498, %v3431
        %v3501 = vmax.f32 %v3499, %v3433
        %v3502 = vmax.f32 %v3500, %v3435
        %v3503 = vmax.f32 %v3501, %v3502
        %v3504 = vrot.slane %v3503, 4
        %v3505 = vmax.f32 %v3503, %v3504
        %v3506 = vrot.slane %v3505, 2
        %v3507 = vmax.f32 %v3505, %v3506
        %v3508 = vrot.slane %v3507, 1
        %v3509 = vmax.f32 %v3507, %v3508
        %v3512 = vcombine.low %v3472, %v3509
        %v3514 = vunpack.c.l.s4 1966171168
        %v3515 = vunpack.c.0.s8 %v3514
        %v3516 = vlaneseq
        %v3517 = vshrl.u32 %v3516, 7
        %v3518 = vsub.s32 %v3515, %v3517
        %v3519 = vrot.slane %v3512, %v3518
        %v3521 = vunpack.c.l.s4 1966171168
        %v3522 = vunpack.c.0.s8 %v3521
        %v3523 = vlaneseq
        %v3524 = vshrl.u32 %v3523, 7
        %v3525 = vsub.s32 %v3522, %v3524
        %v3526 = vrot.slane %v3519, %v3525
        %s3528 = scalar_lea.vmem %s307, 2 [#allocation5]
        %3529 = vst.msk [vmem:[%s3528] ss:$4 sm:$0x3] %vm780, %v3526
        %3530 = vset.pattern.permute.xlu0 1
        %3531 = vperm.xlu0 %3530, %v365
        %v3532 = vpop.permute.xlu0 %3531
        %3534 = vset.pattern.permute.xlu0 1
        %3535 = vperm.xlu0 %3534, %v366
        %v3536 = vpop.permute.xlu0 %3535
        %3538 = vset.pattern.permute.xlu0 1
        %3539 = vperm.xlu0 %3538, %v367
        %v3540 = vpop.permute.xlu0 %3539
        %3542 = vset.pattern.permute.xlu0 1
        %3543 = vperm.xlu0 %3542, %v368
        %v3544 = vpop.permute.xlu0 %3543
        %3546 = vset.pattern.permute.xlu0 1
        %3547 = vperm.xlu0 %3546, %v369
        %v3548 = vpop.permute.xlu0 %3547
        %3550 = vset.pattern.permute.xlu0 1
        %3551 = vperm.xlu0 %3550, %v370
        %v3552 = vpop.permute.xlu0 %3551
        %3554 = vset.pattern.permute.xlu0 1
        %3555 = vperm.xlu0 %3554, %v371
        %v3556 = vpop.permute.xlu0 %3555
        %3558 = vset.pattern.permute.xlu0 1
        %3559 = vperm.xlu0 %3558, %v372
        %v3560 = vpop.permute.xlu0 %3559
        %3562 = vset.pattern.permute.xlu0 1
        %3563 = vperm.xlu0 %3562, %v373
        %v3564 = vpop.permute.xlu0 %3563
        %3566 = vset.pattern.permute.xlu0 1
        %3567 = vperm.xlu0 %3566, %v374
        %v3568 = vpop.permute.xlu0 %3567
        %3570 = vset.pattern.permute.xlu0 1
        %3571 = vperm.xlu0 %3570, %v375
        %v3572 = vpop.permute.xlu0 %3571
        %3574 = vset.pattern.permute.xlu0 1
        %3575 = vperm.xlu0 %3574, %v376
        %v3576 = vpop.permute.xlu0 %3575
        %3578 = vset.pattern.permute.xlu0 1
        %3579 = vperm.xlu0 %3578, %v377
        %v3580 = vpop.permute.xlu0 %3579
        %3582 = vset.pattern.permute.xlu0 1
        %3583 = vperm.xlu0 %3582, %v378
        %v3584 = vpop.permute.xlu0 %3583
        %3586 = vset.pattern.permute.xlu0 1
        %3587 = vperm.xlu0 %3586, %v379
        %v3588 = vpop.permute.xlu0 %3587
        %3590 = vset.pattern.permute.xlu0 1
        %3591 = vperm.xlu0 %3590, %v380
        %v3592 = vpop.permute.xlu0 %3591
        %3594 = vset.pattern.permute.xlu0 1
        %3595 = vperm.xlu0 %3594, %v381
        %v3596 = vpop.permute.xlu0 %3595
        %3598 = vset.pattern.permute.xlu0 1
        %3599 = vperm.xlu0 %3598, %v382
        %v3600 = vpop.permute.xlu0 %3599
        %3602 = vset.pattern.permute.xlu0 1
        %3603 = vperm.xlu0 %3602, %v383
        %v3604 = vpop.permute.xlu0 %3603
        %3606 = vset.pattern.permute.xlu0 1
        %3607 = vperm.xlu0 %3606, %v384
        %v3608 = vpop.permute.xlu0 %3607
        %3610 = vset.pattern.permute.xlu0 1
        %3611 = vperm.xlu0 %3610, %v385
        %v3612 = vpop.permute.xlu0 %3611
        %3614 = vset.pattern.permute.xlu0 1
        %3615 = vperm.xlu0 %3614, %v386
        %v3616 = vpop.permute.xlu0 %3615
        %3618 = vset.pattern.permute.xlu0 1
        %3619 = vperm.xlu0 %3618, %v387
        %v3620 = vpop.permute.xlu0 %3619
        %3622 = vset.pattern.permute.xlu0 1
        %3623 = vperm.xlu0 %3622, %v388
        %v3624 = vpop.permute.xlu0 %3623
        %3626 = vset.pattern.permute.xlu0 1
        %3627 = vperm.xlu0 %3626, %v389
        %v3628 = vpop.permute.xlu0 %3627
        %3630 = vset.pattern.permute.xlu0 1
        %3631 = vperm.xlu0 %3630, %v390
        %v3632 = vpop.permute.xlu0 %3631
        %3634 = vset.pattern.permute.xlu0 1
        %3635 = vperm.xlu0 %3634, %v391
        %v3636 = vpop.permute.xlu0 %3635
        %3638 = vset.pattern.permute.xlu0 1
        %3639 = vperm.xlu0 %3638, %v392
        %v3640 = vpop.permute.xlu0 %3639
        %3642 = vset.pattern.permute.xlu0 1
        %3643 = vperm.xlu0 %3642, %v393
        %v3644 = vpop.permute.xlu0 %3643
        %3646 = vset.pattern.permute.xlu0 1
        %3647 = vperm.xlu0 %3646, %v394
        %v3648 = vpop.permute.xlu0 %3647
        %3650 = vset.pattern.permute.xlu0 1
        %3651 = vperm.xlu0 %3650, %v395
        %v3652 = vpop.permute.xlu0 %3651
        %3654 = vset.pattern.permute.xlu0 1
        %3655 = vperm.xlu0 %3654, %v396
        %v3656 = vpop.permute.xlu0 %3655
        %v3658 = vmul.f32 %v3148, %v3532
        %v3659 = vmul.f32 %v3149, %v3532
        %v3660 = vmul.f32 %v3150, %v3536
        %v3661 = vmul.f32 %v3151, %v3536
        %v3662 = vmul.f32 %v3152, %v3540
        %v3663 = vmul.f32 %v3153, %v3540
        %v3664 = vmul.f32 %v3154, %v3544
        %v3665 = vmul.f32 %v3155, %v3544
        %v3666 = vmul.f32 %v3156, %v3548
        %v3667 = vmul.f32 %v3157, %v3548
        %v3668 = vmul.f32 %v3158, %v3552
        %v3669 = vmul.f32 %v3159, %v3552
        %v3670 = vmul.f32 %v3160, %v3556
        %v3671 = vmul.f32 %v3161, %v3556
        %v3672 = vmul.f32 %v3162, %v3560
        %v3673 = vmul.f32 %v3163, %v3560
        %v3674 = vmul.f32 %v3164, %v3564
        %v3675 = vmul.f32 %v3165, %v3564
        %v3676 = vmul.f32 %v3166, %v3568
        %v3677 = vmul.f32 %v3167, %v3568
        %v3678 = vmul.f32 %v3168, %v3572
        %v3679 = vmul.f32 %v3169, %v3572
        %v3680 = vmul.f32 %v3170, %v3576
        %v3681 = vmul.f32 %v3171, %v3576
        %v3682 = vmul.f32 %v3172, %v3580
        %v3683 = vmul.f32 %v3173, %v3580
        %v3684 = vmul.f32 %v3174, %v3584
        %v3685 = vmul.f32 %v3175, %v3584
        %v3686 = vmul.f32 %v3176, %v3588
        %v3687 = vmul.f32 %v3177, %v3588
        %v3688 = vmul.f32 %v3178, %v3592
        %v3689 = vmul.f32 %v3179, %v3592
        %v3690 = vmul.f32 %v3180, %v3596
        %v3691 = vmul.f32 %v3181, %v3596
        %v3692 = vmul.f32 %v3182, %v3600
        %v3693 = vmul.f32 %v3183, %v3600
        %v3694 = vmul.f32 %v3184, %v3604
        %v3695 = vmul.f32 %v3185, %v3604
        %v3696 = vmul.f32 %v3186, %v3608
        %v3697 = vmul.f32 %v3187, %v3608
        %v3698 = vmul.f32 %v3188, %v3612
        %v3699 = vmul.f32 %v3189, %v3612
        %v3700 = vmul.f32 %v3190, %v3616
        %v3701 = vmul.f32 %v3191, %v3616
        %v3702 = vmul.f32 %v3192, %v3620
        %v3703 = vmul.f32 %v3193, %v3620
        %v3704 = vmul.f32 %v3194, %v3624
        %v3705 = vmul.f32 %v3195, %v3624
        %v3706 = vmul.f32 %v3196, %v3628
        %v3707 = vmul.f32 %v3197, %v3628
        %v3708 = vmul.f32 %v3198, %v3632
        %v3709 = vmul.f32 %v3199, %v3632
        %v3710 = vmul.f32 %v3200, %v3636
        %v3711 = vmul.f32 %v3201, %v3636
        %v3712 = vmul.f32 %v3202, %v3640
        %v3713 = vmul.f32 %v3203, %v3640
        %v3714 = vmul.f32 %v3204, %v3644
        %v3715 = vmul.f32 %v3205, %v3644
        %v3716 = vmul.f32 %v3206, %v3648
        %v3717 = vmul.f32 %v3207, %v3648
        %v3718 = vmul.f32 %v3208, %v3652
        %v3719 = vmul.f32 %v3209, %v3652
        %v3720 = vmul.f32 %v3210, %v3656
        %v3721 = vmul.f32 %v3211, %v3656
        %v3722 = vmax.f32 %v3658, %v3662
        %v3723 = vmax.f32 %v3660, %v3664
        %v3724 = vmax.f32 %v3722, %v3666
        %v3725 = vmax.f32 %v3723, %v3668
        %v3726 = vmax.f32 %v3724, %v3670
        %v3727 = vmax.f32 %v3725, %v3672
        %v3728 = vmax.f32 %v3726, %v3674
        %v3729 = vmax.f32 %v3727, %v3676
        %v3730 = vmax.f32 %v3728, %v3678
        %v3731 = vmax.f32 %v3729, %v3680
        %v3732 = vmax.f32 %v3730, %v3682
        %v3733 = vmax.f32 %v3731, %v3684
        %v3734 = vmax.f32 %v3732, %v3686
        %v3735 = vmax.f32 %v3733, %v3688
        %v3736 = vmax.f32 %v3734, %v3690
        %v3737 = vmax.f32 %v3735, %v3692
        %v3738 = vmax.f32 %v3736, %v3694
        %v3739 = vmax.f32 %v3737, %v3696
        %v3740 = vmax.f32 %v3738, %v3698
        %v3741 = vmax.f32 %v3739, %v3700
        %v3742 = vmax.f32 %v3740, %v3702
        %v3743 = vmax.f32 %v3741, %v3704
        %v3744 = vmax.f32 %v3742, %v3706
        %v3745 = vmax.f32 %v3743, %v3708
        %v3746 = vmax.f32 %v3744, %v3710
        %v3747 = vmax.f32 %v3745, %v3712
        %v3748 = vmax.f32 %v3746, %v3714
        %v3749 = vmax.f32 %v3747, %v3716
        %v3750 = vmax.f32 %v3748, %v3718
        %v3751 = vmax.f32 %v3749, %v3720
        %v3752 = vmax.f32 %v3750, %v3751
        %v3753 = vrot.slane %v3752, 4
        %v3754 = vmax.f32 %v3752, %v3753
        %v3755 = vrot.slane %v3754, 2
        %v3756 = vmax.f32 %v3754, %v3755
        %v3757 = vrot.slane %v3756, 1
        %v3758 = vmax.f32 %v3756, %v3757
        %v3759 = vmax.f32 %v3659, %v3663
        %v3760 = vmax.f32 %v3661, %v3665
        %v3761 = vmax.f32 %v3759, %v3667
        %v3762 = vmax.f32 %v3760, %v3669
        %v3763 = vmax.f32 %v3761, %v3671
        %v3764 = vmax.f32 %v3762, %v3673
        %v3765 = vmax.f32 %v3763, %v3675
        %v3766 = vmax.f32 %v3764, %v3677
        %v3767 = vmax.f32 %v3765, %v3679
        %v3768 = vmax.f32 %v3766, %v3681
        %v3769 = vmax.f32 %v3767, %v3683
        %v3770 = vmax.f32 %v3768, %v3685
        %v3771 = vmax.f32 %v3769, %v3687
        %v3772 = vmax.f32 %v3770, %v3689
        %v3773 = vmax.f32 %v3771, %v3691
        %v3774 = vmax.f32 %v3772, %v3693
        %v3775 = vmax.f32 %v3773, %v3695
        %v3776 = vmax.f32 %v3774, %v3697
        %v3777 = vmax.f32 %v3775, %v3699
        %v3778 = vmax.f32 %v3776, %v3701
        %v3779 = vmax.f32 %v3777, %v3703
        %v3780 = vmax.f32 %v3778, %v3705
        %v3781 = vmax.f32 %v3779, %v3707
        %v3782 = vmax.f32 %v3780, %v3709
        %v3783 = vmax.f32 %v3781, %v3711
        %v3784 = vmax.f32 %v3782, %v3713
        %v3785 = vmax.f32 %v3783, %v3715
        %v3786 = vmax.f32 %v3784, %v3717
        %v3787 = vmax.f32 %v3785, %v3719
        %v3788 = vmax.f32 %v3786, %v3721
        %v3789 = vmax.f32 %v3787, %v3788
        %v3790 = vrot.slane %v3789, 4
        %v3791 = vmax.f32 %v3789, %v3790
        %v3792 = vrot.slane %v3791, 2
        %v3793 = vmax.f32 %v3791, %v3792
        %v3794 = vrot.slane %v3793, 1
        %v3795 = vmax.f32 %v3793, %v3794
        %v3798 = vcombine.low %v3758, %v3795
        %v3800 = vunpack.c.l.s4 1966171168
        %v3801 = vunpack.c.0.s8 %v3800
        %v3802 = vlaneseq
        %v3803 = vshrl.u32 %v3802, 7
        %v3804 = vsub.s32 %v3801, %v3803
        %v3805 = vrot.slane %v3798, %v3804
        %v3807 = vunpack.c.l.s4 1966171168
        %v3808 = vunpack.c.0.s8 %v3807
        %v3809 = vlaneseq
        %v3810 = vshrl.u32 %v3809, 7
        %v3811 = vsub.s32 %v3808, %v3810
        %v3812 = vrot.slane %v3805, %v3811
        %s3814 = scalar_lea.vmem %s307, 3 [#allocation5]
        %3815 = vst.msk [vmem:[%s3814] ss:$4 sm:$0x3] %vm780, %v3812
        %s3816 = sand.u32 %s162, 1
        %s3817 = scalar_lea.sflag [#allocation4], %s3816
        %s3818 = sand.u32 %s162, 1
        %s3819 = smul.addr %s3818, 8
        %s3820 = scalar_lea.vmem [#allocation5], %s3819
        // Predicated region
        $region41: #{tpu_custom_call.1} parent=35 // pred_check
          %p3821 = pneg %p172
        $region42: #{tpu_custom_call.1} parent=35 // pred_check_branch
          %3823 = sbr.rel (%p3821) target = $region44
        $region43: #{tpu_custom_call.1} parent=35 // pred_region
          %s3825 = ssub.s32 128, 128
          %3826 = vsyncadd %s3817, %s3825
          %s3827 = smul.addr %s27, 2
          %s3828 = smul.addr %s26, 2
          %s3829 = sadd.s32 %s3827, %s3828
          %s3830 = smul.addr %s3829, 64
          %s3831 = scalar_lea.hbm %s4, %s3830
          %s3833 = sshll.u32 %s3820, 4
          %s3834 = int_to_ptr.vmem [resolvable:$true] %s3833
          %3836 = dma.vmem_to_hbm [thread:$0]  %s3834, 128, %s3831, %s3817
        $region44: #{tpu_custom_call.1} parent=35 // pred_fallthru
          _
      $region36: #{tpu_custom_call.1} parent=5 // pred_fallthru
        _
      %p3837 = scmp.le.s32.totalorder 2, %s16
      // Predicated region
      $region45: #{tpu_custom_call.1} parent=5 // pred_check
        %p3838 = pneg %p3837
      $region46: #{tpu_custom_call.1} parent=5 // pred_check_branch
        %3840 = sbr.rel (%p3838) target = $region48
      $region47: #{tpu_custom_call.1} parent=5 // pred_region
        %s3841 = ssub.s32 %s16, 2
        // Predicated region
        $region49: #{tpu_custom_call.1} parent=47 // pred_check
          %p3842 = pneg %p178
        $region50: #{tpu_custom_call.1} parent=47 // pred_check_branch
          %3844 = sbr.rel (%p3842) target = $region52
        $region51: #{tpu_custom_call.1} parent=47 // pred_region
          %s3845 = sand.u32 %s163, 1
          %s3846 = scalar_lea.sflag [#allocation4], %s3845
          %s3847 = sand.u32 %s163, 1
          %s3848 = smul.addr %s3847, 8
          %s3849 = scalar_lea.vmem [#allocation5], %s3848
          %3850 = dma.done %s3846, 128
        $region52: #{tpu_custom_call.1} parent=47 // pred_fallthru
          _
      $region48: #{tpu_custom_call.1} parent=5 // pred_fallthru
        _
    $region6: #{tpu_custom_call.1} parent=1 // loop_footer
      %s20 = sadd.s32 1, %s16
    $region7: #{tpu_custom_call.1} parent=1 // loop_footer_branch
      %15 = sbr.rel target = $region3
    $region8: #{tpu_custom_call.1} parent=1 // loop_exit
      _
    %3851 = vsyncpa [#allocation3], 1
    %s3852 = scalar_lea.sflag [#allocation3], 1
    %3853 = vsyncpa %s3852, 1
    %3854 = vsyncpa [#allocation4], 1
    %s3855 = scalar_lea.sflag [#allocation4], 1
    %3856 = vsyncpa %s3855, 1

</llo_original>
